<compile_context>
chip_gen: v6e
topology: v6e:2x2x1
jax: 0.10.0
libtpu: 0.0.40
codegen_flags: <defaults>
</compile_context>

<pallas_src>
import math
import numpy as np
import jax
import jax.numpy as jnp
from jax.experimental import pallas as pl
from jax.experimental.pallas import tpu as pltpu

# ---------------- configuration (small, shape-consistent with the module) ----------------
B, C, IMG, P = 2, 3, 16, 4          # batch, channels, image size, patch size
G = IMG // P                        # patches per side
N = G * G                           # num patches = 16
S = N + 1                           # tokens incl. CLS = 17
D = 32                              # hidden width
H = 4                               # attention heads
DH = D // H                         # head dim
DM = 4 * D                          # mlp hidden
LAYERS = 3                          # transformer depth
SELECT_LAYER = -2                   # args.mm_vision_select_layer
SELECT_IDX = SELECT_LAYER if SELECT_LAYER >= 0 else LAYERS + SELECT_LAYER
L_USED = SELECT_IDX + 1             # layers that can affect the output
EPS = 1e-5
CPP = C * P * P                     # flattened patch length
M = B * S                           # batch folded into the matmul M dim for dense matmuls


def _ln(x, g, b):
    mu = jnp.mean(x, axis=-1, keepdims=True)
    xm = x - mu                                    # computed once, reused for variance
    var = jnp.mean(xm * xm, axis=-1, keepdims=True)
    return xm * jax.lax.rsqrt(var + EPS) * g + b


# ---------------- the layer-streamed kernel ------------------------------------------------
def vit_layer_kernel(patch_ref, wconv_ref, add_ref, lnpre_ref,
                     wqkv_ref, bqkv_ref, wout_ref, wfc1_ref, wfc2_ref,
                     bfc1_ref, vec_ref, out_ref, x_ref):
    l = pl.program_id(0)

    # layer 0 only: patch-embed (conv1 as matmul) + CLS/pos add + ln_pre
    @pl.when(l == 0)
    def _():
        x0 = jnp.dot(patch_ref[...], wconv_ref[...], preferred_element_type=jnp.float32)  # (M,D)
        x0 = x0 + jnp.concatenate([add_ref[...]] * B, axis=0)   # broadcast (S,D) slab over batch
        x_ref[...] = _ln(x0, lnpre_ref[0:1, :], lnpre_ref[1:2, :])

    vec = vec_ref[0]                               # (6, D) packed per-layer vectors
    ln1g, ln1b = vec[0:1], vec[1:2]
    ln2g, ln2b = vec[2:3], vec[3:4]
    bo, bfc2 = vec[4:5], vec[5:6]

    x = x_ref[...]                                 # (M, D) residual stream

    # ---- pre-LN multi-head self-attention (attention batched per image, no block-diag mask)
    h = _ln(x, ln1g, ln1b)
    qkv = jnp.dot(h, wqkv_ref[0], preferred_element_type=jnp.float32) + bqkv_ref[0]   # (M, 3D)
    qkv3 = qkv.reshape(B, S, 3 * D)                # explicit batch dim for attention only

    heads = []
    for hh in range(H):                            # short fixed loop, unrolled
        q = qkv3[:, :, hh * DH:(hh + 1) * DH]                       # scale pre-folded into wqkv
        k = qkv3[:, :, D + hh * DH:D + (hh + 1) * DH]
        v = qkv3[:, :, 2 * D + hh * DH:2 * D + (hh + 1) * DH]
        s = jnp.einsum('bqd,bkd->bqk', q, k, preferred_element_type=jnp.float32)      # (B,S,S)
        s = s - jnp.max(s, axis=-1, keepdims=True)
        p = jnp.exp(s)
        p = p * pl.reciprocal(jnp.sum(p, axis=-1, keepdims=True), approx=True)
        heads.append(jnp.einsum('bqk,bkd->bqd', p, v, preferred_element_type=jnp.float32))
    ctx = jnp.concatenate(heads, axis=-1).reshape(M, D)             # (M, D), head-major columns
    x = x + jnp.dot(ctx, wout_ref[0], preferred_element_type=jnp.float32) + bo

    # ---- pre-LN MLP with QuickGELU
    h2 = _ln(x, ln2g, ln2b)
    mlp = jnp.dot(h2, wfc1_ref[0], preferred_element_type=jnp.float32) + bfc1_ref[0]
    mlp = mlp * jax.nn.sigmoid(1.702 * mlp)
    x = x + jnp.dot(mlp, wfc2_ref[0], preferred_element_type=jnp.float32) + bfc2

    x_ref[...] = x

    @pl.when(l == L_USED - 1)
    def _():
        out_ref[...] = x                           # token tensor of the selected layer


# ---------------- pallas_call wrapper ------------------------------------------------------
def _res_spec(a):
    """Resident (non-streamed) input: same block for every layer step."""
    nd = a.ndim
    return pl.BlockSpec(a.shape, lambda l, _nd=nd: (0,) * _nd)


def _layer_spec(a):
    """Per-layer stacked slab: stream one (1, ...) slice per grid step."""
    nd = a.ndim
    blk = (1,) + a.shape[1:]
    return pl.BlockSpec(blk, lambda l, _nd=nd: (l,) + (0,) * (_nd - 1))


def _cost_estimate():
    per_layer = (2 * M * D * 3 * D                       # fused QKV
                 + 2 * (2 * B * H * S * S * DH)          # scores + attn*V
                 + 2 * M * D * D                         # output projection
                 + 2 * 2 * M * D * DM                    # fc1 + fc2
                 + 24 * M * D)                           # LN / adds (approx)
    flops = 2 * M * CPP * D + L_USED * per_layer
    transc = L_USED * (B * H * S * S + M * DM + B * H * S + 4 * M) + 2 * M
    bytes_acc = 4 * (M * CPP + CPP * D + S * D + 2 * D
                     + L_USED * (D * 3 * D + 3 * D + D * D + D * DM + DM * D + DM + 6 * D)
                     + M * D)
    return pl.CostEstimate(flops=flops, transcendentals=transc, bytes_accessed=bytes_acc)


def kernel_params(params):
    """Reshape PyTorch-layout params into kernel-friendly, per-layer-stacked layouts (glue)."""
    kp = {}
    kp["wconv"] = params["conv_w"].reshape(D, CPP).T                       # (CPP, D)
    kp["add"] = params["pos"].at[0, :].add(params["cls"])                  # (S, D) CLS+pos slab
    kp["lnpre"] = jnp.stack([params["ln_pre_g"], params["ln_pre_b"]], 0)   # (2, D)

    scale = 1.0 / math.sqrt(DH)
    wqkv, bqkv, wout, wfc1, wfc2, bfc1, vec6 = [], [], [], [], [], [], []
    for p in params["blocks"][:L_USED]:          # layers past the selected one never run
        w = p["in_w"].T                          # (D, 3D) fused QKV
        b = p["in_b"]
        w = w.at[:, :D].multiply(scale)          # fold 1/sqrt(DH) into the Q projection
        b = b.at[:D].multiply(scale)
        wqkv.append(w)
        bqkv.append(b.reshape(1, 3 * D))
        wout.append(p["out_w"].T)                                          # (D, D)
        wfc1.append(p["fc1_w"].T)                                          # (D, DM)
        wfc2.append(p["fc2_w"].T)                                          # (DM, D)
        bfc1.append(p["fc1_b"].reshape(1, DM))
        vec6.append(jnp.stack([p["ln1_g"], p["ln1_b"], p["ln2_g"], p["ln2_b"],
                               p["out_b"], p["fc2_b"]], axis=0))           # (6, D) packed slab
    for name, xs in (("wqkv", wqkv), ("bqkv", bqkv), ("wout", wout), ("wfc1", wfc1),
                     ("wfc2", wfc2), ("bfc1", bfc1), ("vec6", vec6)):
        kp[name] = jnp.stack(xs, axis=0)
    return kp


def forward_pallas(images, params):
    kp = kernel_params(params)
    # patchify glue: NCHW -> (B*S, C*P*P) with a zero CLS row per image; patch vector ordered
    # (c, kh, kw) to match the flattened conv1 weight.
    x = images.reshape(B, C, G, P, G, P).transpose(0, 2, 4, 1, 3, 5).reshape(B, N, CPP)
    patches = jnp.concatenate([jnp.zeros((B, 1, CPP), jnp.float32), x], axis=1).reshape(M, CPP)

    resident = [patches, kp["wconv"], kp["add"], kp["lnpre"]]
    streamed = [kp["wqkv"], kp["bqkv"], kp["wout"], kp["wfc1"], kp["wfc2"],
                kp["bfc1"], kp["vec6"]]

    tok = pl.pallas_call(
        vit_layer_kernel,
        out_shape=jax.ShapeDtypeStruct((M, D), jnp.float32),
        grid=(L_USED,),
        in_specs=[_res_spec(a) for a in resident] + [_layer_spec(a) for a in streamed],
        out_specs=pl.BlockSpec((M, D), lambda l: (0, 0)),
        scratch_shapes=[pltpu.VMEM((M, D), jnp.float32)],      # residual tokens, resident
        compiler_params=pltpu.CompilerParams(dimension_semantics=("arbitrary",)),
        cost_estimate=_cost_estimate(),
    )(*resident, *streamed)

    feats = tok.reshape(B, S, D)
    # The source appends features in LND layout and feature_select slices [:, 1:] there.
    feats_lnd = jnp.transpose(feats, (1, 0, 2))                            # (S, B, D)
    return feats_lnd[:, 1:].astype(images.dtype)                           # (S, B-1, D)


# ---------------- parameters (deterministic synthetic init, PyTorch layouts) --------------
def init_params(key):
    ks = list(jax.random.split(key, 8 + LAYERS * 8))
    nrm = lambda k, shape: (0.02 * jax.random.normal(k, shape)).astype(jnp.float32)
    params = {
        "conv_w": nrm(ks[0], (D, C, P, P)),          # conv1.weight (out, in, kh, kw), no bias
        "cls": nrm(ks[1], (D,)),                     # class_embedding
        "pos": nrm(ks[2], (S, D)),                   # positional_embedding
        "ln_pre_g": jnp.ones((D,), jnp.float32),
        "ln_pre_b": jnp.zeros((D,), jnp.float32),
        "blocks": [],
    }
    for l in range(LAYERS):
        kb = jax.random.split(ks[8 + l], 6)
        params["blocks"].append({
            "ln1_g": jnp.ones((D,), jnp.float32), "ln1_b": jnp.zeros((D,), jnp.float32),
            "in_w": nrm(kb[0], (3 * D, D)), "in_b": nrm(kb[1], (3 * D,)),
            "out_w": nrm(kb[2], (D, D)), "out_b": nrm(kb[3], (D,)),
            "ln2_g": jnp.ones((D,), jnp.float32), "ln2_b": jnp.zeros((D,), jnp.float32),
            "fc1_w": nrm(kb[4], (DM, D)), "fc1_b": jnp.zeros((DM,), jnp.float32),
            "fc2_w": nrm(kb[5], (D, DM)), "fc2_b": jnp.zeros((D,), jnp.float32),
        })
    return params


# ---------------- pure-JAX reference (same math, PyTorch layouts) --------------------------
def _ln_ref(x, g, b):
    mu = jnp.mean(x, axis=-1, keepdims=True)
    var = jnp.mean((x - mu) ** 2, axis=-1, keepdims=True)
    return (x - mu) * jax.lax.rsqrt(var + EPS) * g + b


def forward_reference(images, params):
    x = images.reshape(B, C, G, P, G, P).transpose(0, 2, 4, 1, 3, 5).reshape(B, N, CPP)
    emb = jnp.einsum("bnk,kd->bnd", x, params["conv_w"].reshape(D, CPP).T)
    cls = jnp.broadcast_to(params["cls"][None, None, :], (B, 1, D))
    tok = jnp.concatenate([cls, emb], axis=1) + params["pos"][None]
    tok = _ln_ref(tok, params["ln_pre_g"], params["ln_pre_b"])
    features = []
    for p in params["blocks"]:
        h = _ln_ref(tok, p["ln1_g"], p["ln1_b"])
        qkv = jnp.einsum("bsd,ed->bse", h, p["in_w"]) + p["in_b"]
        q, k, v = jnp.split(qkv, 3, axis=-1)
        q = q.reshape(B, S, H, DH) / math.sqrt(DH)
        k = k.reshape(B, S, H, DH)
        v = v.reshape(B, S, H, DH)
        sc = jnp.einsum("bqhd,bkhd->bhqk", q, k)
        attn = jax.nn.softmax(sc, axis=-1)
        o = jnp.einsum("bhqk,bkhd->bqhd", attn, v).reshape(B, S, D)
        o = jnp.einsum("bse,de->bsd", o, p["out_w"]) + p["out_b"]
        tok = tok + o
        h2 = _ln_ref(tok, p["ln2_g"], p["ln2_b"])
        m = jnp.einsum("bsd,md->bsm", h2, p["fc1_w"]) + p["fc1_b"]
        m = m * jax.nn.sigmoid(1.702 * m)
        m = jnp.einsum("bsm,dm->bsd", m, p["fc2_w"]) + p["fc2_b"]
        tok = tok + m
        features.append(tok)
    feats_lnd = jnp.transpose(features[SELECT_LAYER], (1, 0, 2))
    return feats_lnd[:, 1:].astype(images.dtype)


# ---------------- main ---------------------------------------------------------------------
if __name__ == "__main__":
    key = jax.random.PRNGKey(0)
    k_img, k_par = jax.random.split(key)
    images = jax.random.normal(k_img, (B, C, IMG, IMG), dtype=jnp.float32)  # NCHW, like PyTorch
    params = init_params(k_par)

    out = jax.block_until_ready(forward_pallas(images, params))
    ref = jax.block_until_ready(forward_reference(images, params))

    assert out.shape == (S, B - 1, D), f"unexpected output shape {out.shape}"
    assert out.dtype == images.dtype
    np.testing.assert_allclose(np.asarray(out), np.asarray(ref), atol=2e-3, rtol=2e-2)
    print("KERNEL_OK")
</pallas_src>

<mosaic_0001>
module attributes {stable_mosaic.version = 11 : i64} {
  func.func @vit_layer_kernel(%arg0: i32, %arg1: memref<34x48xf32, #tpu.memory_space<vmem>>, %arg2: memref<48x32xf32, #tpu.memory_space<vmem>>, %arg3: memref<17x32xf32, #tpu.memory_space<vmem>>, %arg4: memref<2x32xf32, #tpu.memory_space<vmem>>, %arg5: memref<1x32x96xf32, #tpu.memory_space<vmem>>, %arg6: memref<1x1x96xf32, #tpu.memory_space<vmem>>, %arg7: memref<1x32x32xf32, #tpu.memory_space<vmem>>, %arg8: memref<1x32x128xf32, #tpu.memory_space<vmem>>, %arg9: memref<1x128x32xf32, #tpu.memory_space<vmem>>, %arg10: memref<1x1x128xf32, #tpu.memory_space<vmem>>, %arg11: memref<1x6x32xf32, #tpu.memory_space<vmem>>, %arg12: memref<34x32xf32, #tpu.memory_space<vmem>>, %arg13: memref<34x32xf32, #tpu.memory_space<vmem>>) attributes {dimension_semantics = [#tpu.dimension_semantics<arbitrary>], iteration_bounds = array<i64: 2>, scalar_prefetch = 0 : i64, scratch_operands = 1 : i64, tpu.core_type = #tpu.core_type<tc>, window_params = [{pipeline_mode = #tpu.pipeline_mode<synchronous>, transform_indices = @transform_0, window_bounds = array<i64: 34, 48>}, {pipeline_mode = #tpu.pipeline_mode<synchronous>, transform_indices = @transform_1, window_bounds = array<i64: 48, 32>}, {pipeline_mode = #tpu.pipeline_mode<synchronous>, transform_indices = @transform_2, window_bounds = array<i64: 17, 32>}, {pipeline_mode = #tpu.pipeline_mode<synchronous>, transform_indices = @transform_3, window_bounds = array<i64: 2, 32>}, {transform_indices = @transform_4, window_bounds = array<i64: 1, 32, 96>}, {transform_indices = @transform_5, window_bounds = array<i64: 1, 1, 96>}, {transform_indices = @transform_6, window_bounds = array<i64: 1, 32, 32>}, {transform_indices = @transform_7, window_bounds = array<i64: 1, 32, 128>}, {transform_indices = @transform_8, window_bounds = array<i64: 1, 128, 32>}, {transform_indices = @transform_9, window_bounds = array<i64: 1, 1, 128>}, {transform_indices = @transform_10, window_bounds = array<i64: 1, 6, 32>}, {pipeline_mode = #tpu.pipeline_mode<synchronous>, transform_indices = @transform_11, window_bounds = array<i64: 34, 32>}]} {
    %c0_i32 = arith.constant 0 : i32
    %0 = arith.cmpi eq, %arg0, %c0_i32 : i32
    %1 = arith.extui %0 : i1 to i32
    %c0_i32_0 = arith.constant 0 : i32
    %2 = arith.cmpi ne, %1, %c0_i32_0 : i32
    scf.if %2 {
      %c0_57 = arith.constant 0 : index
      %c0_58 = arith.constant 0 : index
      %153 = vector.load %arg1[%c0_57, %c0_58] : memref<34x48xf32, #tpu.memory_space<vmem>>, vector<34x48xf32>
      %c0_59 = arith.constant 0 : index
      %c0_60 = arith.constant 0 : index
      %154 = vector.load %arg2[%c0_59, %c0_60] : memref<48x32xf32, #tpu.memory_space<vmem>>, vector<48x32xf32>
      %cst_61 = arith.constant dense<0.000000e+00> : vector<34x32xf32>
      %155 = tpu.matmul %153, %154, %cst_61 {dimension_numbers = #tpu.dot_dimension_numbers<[1], [0], [0], [1], [0, 0, 1, 1], [], []>} : vector<34x48xf32>, vector<48x32xf32>, vector<34x32xf32> -> vector<34x32xf32>
      %c0_62 = arith.constant 0 : index
      %c0_63 = arith.constant 0 : index
      %156 = vector.load %arg3[%c0_62, %c0_63] : memref<17x32xf32, #tpu.memory_space<vmem>>, vector<17x32xf32>
      %157 = tpu.concatenate %156, %156 in 0 : vector<17x32xf32>, vector<17x32xf32> -> vector<34x32xf32>
      %158 = arith.addf %155, %157 : vector<34x32xf32>
      %c0_64 = arith.constant 0 : index
      %c0_65 = arith.constant 0 : index
      %159 = vector.load %arg4[%c0_64, %c0_65] : memref<2x32xf32, #tpu.memory_space<vmem>>, vector<1x32xf32>
      %c1 = arith.constant 1 : index
      %c0_66 = arith.constant 0 : index
      %160 = vector.load %arg4[%c1, %c0_66] : memref<2x32xf32, #tpu.memory_space<vmem>>, vector<1x32xf32>
      %cst_67 = arith.constant dense<0.000000e+00> : vector<34xf32>
      %161 = vector.multi_reduction <add>, %158, %cst_67 [1] : vector<34x32xf32> to vector<34xf32>
      %162 = vector.shape_cast %161 : vector<34xf32> to vector<34x1xf32>
      %cst_68 = arith.constant 3.200000e+01 : f32
      %163 = vector.broadcast %cst_68 : f32 to vector<34x1xf32>
      %164 = arith.divf %162, %163 : vector<34x1xf32>
      %165 = vector.broadcast %164 : vector<34x1xf32> to vector<34x32xf32>
      %166 = arith.subf %158, %165 : vector<34x32xf32>
      %167 = arith.mulf %166, %166 : vector<34x32xf32>
      %cst_69 = arith.constant dense<0.000000e+00> : vector<34xf32>
      %168 = vector.multi_reduction <add>, %167, %cst_69 [1] : vector<34x32xf32> to vector<34xf32>
      %169 = vector.shape_cast %168 : vector<34xf32> to vector<34x1xf32>
      %cst_70 = arith.constant 3.200000e+01 : f32
      %170 = vector.broadcast %cst_70 : f32 to vector<34x1xf32>
      %171 = arith.divf %169, %170 : vector<34x1xf32>
      %cst_71 = arith.constant 9.99999974E-6 : f32
      %172 = vector.broadcast %cst_71 : f32 to vector<34x1xf32>
      %173 = arith.addf %171, %172 : vector<34x1xf32>
      %174 = math.rsqrt %173 : vector<34x1xf32>
      %175 = vector.broadcast %174 : vector<34x1xf32> to vector<34x32xf32>
      %176 = arith.mulf %166, %175 : vector<34x32xf32>
      %177 = vector.broadcast %159 : vector<1x32xf32> to vector<34x32xf32>
      %178 = arith.mulf %176, %177 : vector<34x32xf32>
      %179 = vector.broadcast %160 : vector<1x32xf32> to vector<34x32xf32>
      %180 = arith.addf %178, %179 : vector<34x32xf32>
      %c0_72 = arith.constant 0 : index
      %c0_73 = arith.constant 0 : index
      %181 = vector.load %arg13[%c0_72, %c0_73] : memref<34x32xf32, #tpu.memory_space<vmem>>, vector<34x32xf32>
      tpu.vector_store %arg13[%c0_72, %c0_73], %180 {strides = array<i32>} : memref<34x32xf32, #tpu.memory_space<vmem>>, vector<34x32xf32>,
    } else {
    }
    %c0 = arith.constant 0 : index
    %c0_1 = arith.constant 0 : index
    %c0_2 = arith.constant 0 : index
    %3 = vector.load %arg11[%c0, %c0_1, %c0_2] : memref<1x6x32xf32, #tpu.memory_space<vmem>>, vector<1x6x32xf32>
    %4 = vector.shape_cast %3 : vector<1x6x32xf32> to vector<6x32xf32>
    %5 = vector.extract_strided_slice %4 {offsets = [0, 0], sizes = [1, 32], strides = [1, 1]} : vector<6x32xf32> to vector<1x32xf32>
    %6 = vector.extract_strided_slice %4 {offsets = [1, 0], sizes = [1, 32], strides = [1, 1]} : vector<6x32xf32> to vector<1x32xf32>
    %7 = vector.extract_strided_slice %4 {offsets = [2, 0], sizes = [1, 32], strides = [1, 1]} : vector<6x32xf32> to vector<1x32xf32>
    %8 = vector.extract_strided_slice %4 {offsets = [3, 0], sizes = [1, 32], strides = [1, 1]} : vector<6x32xf32> to vector<1x32xf32>
    %9 = vector.extract_strided_slice %4 {offsets = [4, 0], sizes = [1, 32], strides = [1, 1]} : vector<6x32xf32> to vector<1x32xf32>
    %10 = vector.extract_strided_slice %4 {offsets = [5, 0], sizes = [1, 32], strides = [1, 1]} : vector<6x32xf32> to vector<1x32xf32>
    %c0_3 = arith.constant 0 : index
    %c0_4 = arith.constant 0 : index
    %11 = vector.load %arg13[%c0_3, %c0_4] : memref<34x32xf32, #tpu.memory_space<vmem>>, vector<34x32xf32>
    %cst = arith.constant dense<0.000000e+00> : vector<34xf32>
    %12 = vector.multi_reduction <add>, %11, %cst [1] : vector<34x32xf32> to vector<34xf32>
    %13 = vector.shape_cast %12 : vector<34xf32> to vector<34x1xf32>
    %cst_5 = arith.constant 3.200000e+01 : f32
    %14 = vector.broadcast %cst_5 : f32 to vector<34x1xf32>
    %15 = arith.divf %13, %14 : vector<34x1xf32>
    %16 = vector.broadcast %15 : vector<34x1xf32> to vector<34x32xf32>
    %17 = arith.subf %11, %16 : vector<34x32xf32>
    %18 = arith.mulf %17, %17 : vector<34x32xf32>
    %cst_6 = arith.constant dense<0.000000e+00> : vector<34xf32>
    %19 = vector.multi_reduction <add>, %18, %cst_6 [1] : vector<34x32xf32> to vector<34xf32>
    %20 = vector.shape_cast %19 : vector<34xf32> to vector<34x1xf32>
    %cst_7 = arith.constant 3.200000e+01 : f32
    %21 = vector.broadcast %cst_7 : f32 to vector<34x1xf32>
    %22 = arith.divf %20, %21 : vector<34x1xf32>
    %cst_8 = arith.constant 9.99999974E-6 : f32
    %23 = vector.broadcast %cst_8 : f32 to vector<34x1xf32>
    %24 = arith.addf %22, %23 : vector<34x1xf32>
    %25 = math.rsqrt %24 : vector<34x1xf32>
    %26 = vector.broadcast %25 : vector<34x1xf32> to vector<34x32xf32>
    %27 = arith.mulf %17, %26 : vector<34x32xf32>
    %28 = vector.broadcast %5 : vector<1x32xf32> to vector<34x32xf32>
    %29 = arith.mulf %27, %28 : vector<34x32xf32>
    %30 = vector.broadcast %6 : vector<1x32xf32> to vector<34x32xf32>
    %31 = arith.addf %29, %30 : vector<34x32xf32>
    %c0_9 = arith.constant 0 : index
    %c0_10 = arith.constant 0 : index
    %c0_11 = arith.constant 0 : index
    %32 = vector.load %arg5[%c0_9, %c0_10, %c0_11] : memref<1x32x96xf32, #tpu.memory_space<vmem>>, vector<1x32x96xf32>
    %33 = vector.shape_cast %32 : vector<1x32x96xf32> to vector<32x96xf32>
    %cst_12 = arith.constant dense<0.000000e+00> : vector<34x96xf32>
    %34 = tpu.matmul %31, %33, %cst_12 {dimension_numbers = #tpu.dot_dimension_numbers<[1], [0], [0], [1], [0, 0, 1, 1], [], []>} : vector<34x32xf32>, vector<32x96xf32>, vector<34x96xf32> -> vector<34x96xf32>
    %c0_13 = arith.constant 0 : index
    %c0_14 = arith.constant 0 : index
    %c0_15 = arith.constant 0 : index
    %35 = vector.load %arg6[%c0_13, %c0_14, %c0_15] : memref<1x1x96xf32, #tpu.memory_space<vmem>>, vector<1x1x96xf32>
    %36 = vector.shape_cast %35 : vector<1x1x96xf32> to vector<1x96xf32>
    %37 = vector.broadcast %36 : vector<1x96xf32> to vector<34x96xf32>
    %38 = arith.addf %34, %37 : vector<34x96xf32>
    %39 = vector.shape_cast %38 : vector<34x96xf32> to vector<2x17x96xf32>
    %40 = vector.extract_strided_slice %39 {offsets = [0, 0, 0], sizes = [2, 17, 8], strides = [1, 1, 1]} : vector<2x17x96xf32> to vector<2x17x8xf32>
    %41 = vector.extract_strided_slice %39 {offsets = [0, 0, 32], sizes = [2, 17, 8], strides = [1, 1, 1]} : vector<2x17x96xf32> to vector<2x17x8xf32>
    %42 = vector.extract_strided_slice %39 {offsets = [0, 0, 64], sizes = [2, 17, 8], strides = [1, 1, 1]} : vector<2x17x96xf32> to vector<2x17x8xf32>
    "tpu.trace_start"() <{level = 10 : i32, message = "bqd,bkd->bqk"}> : () -> ()
    %cst_16 = arith.constant dense<0.000000e+00> : vector<2x17x17xf32>
    %43 = tpu.matmul %40, %41, %cst_16 {dimension_numbers = #tpu.dot_dimension_numbers<[2], [2], [1], [1], [0, 0, 0, 1, 1, 1], [0], [0]>} : vector<2x17x8xf32>, vector<2x17x8xf32>, vector<2x17x17xf32> -> vector<2x17x17xf32>
    "tpu.trace_stop"() : () -> ()
    %cst_17 = arith.constant dense<0xFF800000> : vector<2x17xf32>
    %44 = vector.multi_reduction <maximumf>, %43, %cst_17 [2] : vector<2x17x17xf32> to vector<2x17xf32>
    %45 = vector.shape_cast %44 : vector<2x17xf32> to vector<2x17x1xf32>
    %46 = vector.broadcast %45 : vector<2x17x1xf32> to vector<2x17x17xf32>
    %47 = arith.subf %43, %46 : vector<2x17x17xf32>
    %48 = math.exp %47 : vector<2x17x17xf32>
    %cst_18 = arith.constant dense<0.000000e+00> : vector<2x17xf32>
    %49 = vector.multi_reduction <add>, %48, %cst_18 [2] : vector<2x17x17xf32> to vector<2x17xf32>
    %50 = vector.shape_cast %49 : vector<2x17xf32> to vector<2x17x1xf32>
    %51 = tpu.reciprocal %50 {approx = true} : vector<2x17x1xf32> -> vector<2x17x1xf32>
    %52 = vector.broadcast %51 : vector<2x17x1xf32> to vector<2x17x17xf32>
    %53 = arith.mulf %48, %52 : vector<2x17x17xf32>
    "tpu.trace_start"() <{level = 10 : i32, message = "bqk,bkd->bqd"}> : () -> ()
    %cst_19 = arith.constant dense<0.000000e+00> : vector<2x17x8xf32>
    %54 = tpu.matmul %53, %42, %cst_19 {dimension_numbers = #tpu.dot_dimension_numbers<[2], [1], [1], [2], [0, 0, 0, 1, 1, 2], [0], [0]>} : vector<2x17x17xf32>, vector<2x17x8xf32>, vector<2x17x8xf32> -> vector<2x17x8xf32>
    "tpu.trace_stop"() : () -> ()
    %55 = vector.extract_strided_slice %39 {offsets = [0, 0, 8], sizes = [2, 17, 8], strides = [1, 1, 1]} : vector<2x17x96xf32> to vector<2x17x8xf32>
    %56 = vector.extract_strided_slice %39 {offsets = [0, 0, 40], sizes = [2, 17, 8], strides = [1, 1, 1]} : vector<2x17x96xf32> to vector<2x17x8xf32>
    %57 = vector.extract_strided_slice %39 {offsets = [0, 0, 72], sizes = [2, 17, 8], strides = [1, 1, 1]} : vector<2x17x96xf32> to vector<2x17x8xf32>
    "tpu.trace_start"() <{level = 10 : i32, message = "bqd,bkd->bqk"}> : () -> ()
    %cst_20 = arith.constant dense<0.000000e+00> : vector<2x17x17xf32>
    %58 = tpu.matmul %55, %56, %cst_20 {dimension_numbers = #tpu.dot_dimension_numbers<[2], [2], [1], [1], [0, 0, 0, 1, 1, 1], [0], [0]>} : vector<2x17x8xf32>, vector<2x17x8xf32>, vector<2x17x17xf32> -> vector<2x17x17xf32>
    "tpu.trace_stop"() : () -> ()
    %cst_21 = arith.constant dense<0xFF800000> : vector<2x17xf32>
    %59 = vector.multi_reduction <maximumf>, %58, %cst_21 [2] : vector<2x17x17xf32> to vector<2x17xf32>
    %60 = vector.shape_cast %59 : vector<2x17xf32> to vector<2x17x1xf32>
    %61 = vector.broadcast %60 : vector<2x17x1xf32> to vector<2x17x17xf32>
    %62 = arith.subf %58, %61 : vector<2x17x17xf32>
    %63 = math.exp %62 : vector<2x17x17xf32>
    %cst_22 = arith.constant dense<0.000000e+00> : vector<2x17xf32>
    %64 = vector.multi_reduction <add>, %63, %cst_22 [2] : vector<2x17x17xf32> to vector<2x17xf32>
    %65 = vector.shape_cast %64 : vector<2x17xf32> to vector<2x17x1xf32>
    %66 = tpu.reciprocal %65 {approx = true} : vector<2x17x1xf32> -> vector<2x17x1xf32>
    %67 = vector.broadcast %66 : vector<2x17x1xf32> to vector<2x17x17xf32>
    %68 = arith.mulf %63, %67 : vector<2x17x17xf32>
    "tpu.trace_start"() <{level = 10 : i32, message = "bqk,bkd->bqd"}> : () -> ()
    %cst_23 = arith.constant dense<0.000000e+00> : vector<2x17x8xf32>
    %69 = tpu.matmul %68, %57, %cst_23 {dimension_numbers = #tpu.dot_dimension_numbers<[2], [1], [1], [2], [0, 0, 0, 1, 1, 2], [0], [0]>} : vector<2x17x17xf32>, vector<2x17x8xf32>, vector<2x17x8xf32> -> vector<2x17x8xf32>
    "tpu.trace_stop"() : () -> ()
    %70 = vector.extract_strided_slice %39 {offsets = [0, 0, 16], sizes = [2, 17, 8], strides = [1, 1, 1]} : vector<2x17x96xf32> to vector<2x17x8xf32>
    %71 = vector.extract_strided_slice %39 {offsets = [0, 0, 48], sizes = [2, 17, 8], strides = [1, 1, 1]} : vector<2x17x96xf32> to vector<2x17x8xf32>
    %72 = vector.extract_strided_slice %39 {offsets = [0, 0, 80], sizes = [2, 17, 8], strides = [1, 1, 1]} : vector<2x17x96xf32> to vector<2x17x8xf32>
    "tpu.trace_start"() <{level = 10 : i32, message = "bqd,bkd->bqk"}> : () -> ()
    %cst_24 = arith.constant dense<0.000000e+00> : vector<2x17x17xf32>
    %73 = tpu.matmul %70, %71, %cst_24 {dimension_numbers = #tpu.dot_dimension_numbers<[2], [2], [1], [1], [0, 0, 0, 1, 1, 1], [0], [0]>} : vector<2x17x8xf32>, vector<2x17x8xf32>, vector<2x17x17xf32> -> vector<2x17x17xf32>
    "tpu.trace_stop"() : () -> ()
    %cst_25 = arith.constant dense<0xFF800000> : vector<2x17xf32>
    %74 = vector.multi_reduction <maximumf>, %73, %cst_25 [2] : vector<2x17x17xf32> to vector<2x17xf32>
    %75 = vector.shape_cast %74 : vector<2x17xf32> to vector<2x17x1xf32>
    %76 = vector.broadcast %75 : vector<2x17x1xf32> to vector<2x17x17xf32>
    %77 = arith.subf %73, %76 : vector<2x17x17xf32>
    %78 = math.exp %77 : vector<2x17x17xf32>
    %cst_26 = arith.constant dense<0.000000e+00> : vector<2x17xf32>
    %79 = vector.multi_reduction <add>, %78, %cst_26 [2] : vector<2x17x17xf32> to vector<2x17xf32>
    %80 = vector.shape_cast %79 : vector<2x17xf32> to vector<2x17x1xf32>
    %81 = tpu.reciprocal %80 {approx = true} : vector<2x17x1xf32> -> vector<2x17x1xf32>
    %82 = vector.broadcast %81 : vector<2x17x1xf32> to vector<2x17x17xf32>
    %83 = arith.mulf %78, %82 : vector<2x17x17xf32>
    "tpu.trace_start"() <{level = 10 : i32, message = "bqk,bkd->bqd"}> : () -> ()
    %cst_27 = arith.constant dense<0.000000e+00> : vector<2x17x8xf32>
    %84 = tpu.matmul %83, %72, %cst_27 {dimension_numbers = #tpu.dot_dimension_numbers<[2], [1], [1], [2], [0, 0, 0, 1, 1, 2], [0], [0]>} : vector<2x17x17xf32>, vector<2x17x8xf32>, vector<2x17x8xf32> -> vector<2x17x8xf32>
    "tpu.trace_stop"() : () -> ()
    %85 = vector.extract_strided_slice %39 {offsets = [0, 0, 24], sizes = [2, 17, 8], strides = [1, 1, 1]} : vector<2x17x96xf32> to vector<2x17x8xf32>
    %86 = vector.extract_strided_slice %39 {offsets = [0, 0, 56], sizes = [2, 17, 8], strides = [1, 1, 1]} : vector<2x17x96xf32> to vector<2x17x8xf32>
    %87 = vector.extract_strided_slice %39 {offsets = [0, 0, 88], sizes = [2, 17, 8], strides = [1, 1, 1]} : vector<2x17x96xf32> to vector<2x17x8xf32>
    "tpu.trace_start"() <{level = 10 : i32, message = "bqd,bkd->bqk"}> : () -> ()
    %cst_28 = arith.constant dense<0.000000e+00> : vector<2x17x17xf32>
    %88 = tpu.matmul %85, %86, %cst_28 {dimension_numbers = #tpu.dot_dimension_numbers<[2], [2], [1], [1], [0, 0, 0, 1, 1, 1], [0], [0]>} : vector<2x17x8xf32>, vector<2x17x8xf32>, vector<2x17x17xf32> -> vector<2x17x17xf32>
    "tpu.trace_stop"() : () -> ()
    %cst_29 = arith.constant dense<0xFF800000> : vector<2x17xf32>
    %89 = vector.multi_reduction <maximumf>, %88, %cst_29 [2] : vector<2x17x17xf32> to vector<2x17xf32>
    %90 = vector.shape_cast %89 : vector<2x17xf32> to vector<2x17x1xf32>
    %91 = vector.broadcast %90 : vector<2x17x1xf32> to vector<2x17x17xf32>
    %92 = arith.subf %88, %91 : vector<2x17x17xf32>
    %93 = math.exp %92 : vector<2x17x17xf32>
    %cst_30 = arith.constant dense<0.000000e+00> : vector<2x17xf32>
    %94 = vector.multi_reduction <add>, %93, %cst_30 [2] : vector<2x17x17xf32> to vector<2x17xf32>
    %95 = vector.shape_cast %94 : vector<2x17xf32> to vector<2x17x1xf32>
    %96 = tpu.reciprocal %95 {approx = true} : vector<2x17x1xf32> -> vector<2x17x1xf32>
    %97 = vector.broadcast %96 : vector<2x17x1xf32> to vector<2x17x17xf32>
    %98 = arith.mulf %93, %97 : vector<2x17x17xf32>
    "tpu.trace_start"() <{level = 10 : i32, message = "bqk,bkd->bqd"}> : () -> ()
    %cst_31 = arith.constant dense<0.000000e+00> : vector<2x17x8xf32>
    %99 = tpu.matmul %98, %87, %cst_31 {dimension_numbers = #tpu.dot_dimension_numbers<[2], [1], [1], [2], [0, 0, 0, 1, 1, 2], [0], [0]>} : vector<2x17x17xf32>, vector<2x17x8xf32>, vector<2x17x8xf32> -> vector<2x17x8xf32>
    "tpu.trace_stop"() : () -> ()
    %100 = tpu.concatenate %54, %69, %84, %99 in 2 : vector<2x17x8xf32>, vector<2x17x8xf32>, vector<2x17x8xf32>, vector<2x17x8xf32> -> vector<2x17x32xf32>
    %101 = vector.shape_cast %100 : vector<2x17x32xf32> to vector<34x32xf32>
    %c0_32 = arith.constant 0 : index
    %c0_33 = arith.constant 0 : index
    %c0_34 = arith.constant 0 : index
    %102 = vector.load %arg7[%c0_32, %c0_33, %c0_34] : memref<1x32x32xf32, #tpu.memory_space<vmem>>, vector<1x32x32xf32>
    %103 = vector.shape_cast %102 : vector<1x32x32xf32> to vector<32x32xf32>
    %cst_35 = arith.constant dense<0.000000e+00> : vector<34x32xf32>
    %104 = tpu.matmul %101, %103, %cst_35 {dimension_numbers = #tpu.dot_dimension_numbers<[1], [0], [0], [1], [0, 0, 1, 1], [], []>} : vector<34x32xf32>, vector<32x32xf32>, vector<34x32xf32> -> vector<34x32xf32>
    %105 = arith.addf %11, %104 : vector<34x32xf32>
    %106 = vector.broadcast %9 : vector<1x32xf32> to vector<34x32xf32>
    %107 = arith.addf %105, %106 : vector<34x32xf32>
    %cst_36 = arith.constant dense<0.000000e+00> : vector<34xf32>
    %108 = vector.multi_reduction <add>, %107, %cst_36 [1] : vector<34x32xf32> to vector<34xf32>
    %109 = vector.shape_cast %108 : vector<34xf32> to vector<34x1xf32>
    %cst_37 = arith.constant 3.200000e+01 : f32
    %110 = vector.broadcast %cst_37 : f32 to vector<34x1xf32>
    %111 = arith.divf %109, %110 : vector<34x1xf32>
    %112 = vector.broadcast %111 : vector<34x1xf32> to vector<34x32xf32>
    %113 = arith.subf %107, %112 : vector<34x32xf32>
    %114 = arith.mulf %113, %113 : vector<34x32xf32>
    %cst_38 = arith.constant dense<0.000000e+00> : vector<34xf32>
    %115 = vector.multi_reduction <add>, %114, %cst_38 [1] : vector<34x32xf32> to vector<34xf32>
    %116 = vector.shape_cast %115 : vector<34xf32> to vector<34x1xf32>
    %cst_39 = arith.constant 3.200000e+01 : f32
    %117 = vector.broadcast %cst_39 : f32 to vector<34x1xf32>
    %118 = arith.divf %116, %117 : vector<34x1xf32>
    %cst_40 = arith.constant 9.99999974E-6 : f32
    %119 = vector.broadcast %cst_40 : f32 to vector<34x1xf32>
    %120 = arith.addf %118, %119 : vector<34x1xf32>
    %121 = math.rsqrt %120 : vector<34x1xf32>
    %122 = vector.broadcast %121 : vector<34x1xf32> to vector<34x32xf32>
    %123 = arith.mulf %113, %122 : vector<34x32xf32>
    %124 = vector.broadcast %7 : vector<1x32xf32> to vector<34x32xf32>
    %125 = arith.mulf %123, %124 : vector<34x32xf32>
    %126 = vector.broadcast %8 : vector<1x32xf32> to vector<34x32xf32>
    %127 = arith.addf %125, %126 : vector<34x32xf32>
    %c0_41 = arith.constant 0 : index
    %c0_42 = arith.constant 0 : index
    %c0_43 = arith.constant 0 : index
    %128 = vector.load %arg8[%c0_41, %c0_42, %c0_43] : memref<1x32x128xf32, #tpu.memory_space<vmem>>, vector<1x32x128xf32>
    %129 = vector.shape_cast %128 : vector<1x32x128xf32> to vector<32x128xf32>
    %cst_44 = arith.constant dense<0.000000e+00> : vector<34x128xf32>
    %130 = tpu.matmul %127, %129, %cst_44 {dimension_numbers = #tpu.dot_dimension_numbers<[1], [0], [0], [1], [0, 0, 1, 1], [], []>} : vector<34x32xf32>, vector<32x128xf32>, vector<34x128xf32> -> vector<34x128xf32>
    %c0_45 = arith.constant 0 : index
    %c0_46 = arith.constant 0 : index
    %c0_47 = arith.constant 0 : index
    %131 = vector.load %arg10[%c0_45, %c0_46, %c0_47] : memref<1x1x128xf32, #tpu.memory_space<vmem>>, vector<1x1x128xf32>
    %132 = vector.shape_cast %131 : vector<1x1x128xf32> to vector<1x128xf32>
    %133 = vector.broadcast %132 : vector<1x128xf32> to vector<34x128xf32>
    %134 = arith.addf %130, %133 : vector<34x128xf32>
    %cst_48 = arith.constant 1.702000e+00 : f32
    %135 = vector.broadcast %cst_48 : f32 to vector<34x128xf32>
    %136 = arith.mulf %135, %134 : vector<34x128xf32>
    %137 = arith.negf %136 : vector<34x128xf32>
    %138 = math.exp %137 : vector<34x128xf32>
    %cst_49 = arith.constant 1.000000e+00 : f32
    %139 = vector.broadcast %cst_49 : f32 to vector<34x128xf32>
    %140 = arith.addf %139, %138 : vector<34x128xf32>
    %141 = arith.divf %139, %140 : vector<34x128xf32>
    %142 = arith.mulf %134, %141 : vector<34x128xf32>
    %c0_50 = arith.constant 0 : index
    %c0_51 = arith.constant 0 : index
    %c0_52 = arith.constant 0 : index
    %143 = vector.load %arg9[%c0_50, %c0_51, %c0_52] : memref<1x128x32xf32, #tpu.memory_space<vmem>>, vector<1x128x32xf32>
    %144 = vector.shape_cast %143 : vector<1x128x32xf32> to vector<128x32xf32>
    %cst_53 = arith.constant dense<0.000000e+00> : vector<34x32xf32>
    %145 = tpu.matmul %142, %144, %cst_53 {dimension_numbers = #tpu.dot_dimension_numbers<[1], [0], [0], [1], [0, 0, 1, 1], [], []>} : vector<34x128xf32>, vector<128x32xf32>, vector<34x32xf32> -> vector<34x32xf32>
    %146 = arith.addf %107, %145 : vector<34x32xf32>
    %147 = vector.broadcast %10 : vector<1x32xf32> to vector<34x32xf32>
    %148 = arith.addf %146, %147 : vector<34x32xf32>
    %c0_54 = arith.constant 0 : index
    %c0_55 = arith.constant 0 : index
    %149 = vector.load %arg13[%c0_54, %c0_55] : memref<34x32xf32, #tpu.memory_space<vmem>>, vector<34x32xf32>
    tpu.vector_store %arg13[%c0_54, %c0_55], %148 {strides = array<i32>} : memref<34x32xf32, #tpu.memory_space<vmem>>, vector<34x32xf32>,
    %c1_i32 = arith.constant 1 : i32
    %150 = arith.cmpi eq, %arg0, %c1_i32 : i32
    %151 = arith.extui %150 : i1 to i32
    %c0_i32_56 = arith.constant 0 : i32
    %152 = arith.cmpi ne, %151, %c0_i32_56 : i32
    scf.if %152 {
      %c0_57 = arith.constant 0 : index
      %c0_58 = arith.constant 0 : index
      %153 = vector.load %arg12[%c0_57, %c0_58] : memref<34x32xf32, #tpu.memory_space<vmem>>, vector<34x32xf32>
      tpu.vector_store %arg12[%c0_57, %c0_58], %148 {strides = array<i32>} : memref<34x32xf32, #tpu.memory_space<vmem>>, vector<34x32xf32>,
    } else {
    }
    return
  }
  func.func @transform_0(%arg0: i32) -> (i32, i32) {
    %c0_i32 = arith.constant 0 : i32
    %c0_i32_0 = arith.constant 0 : i32
    %c0_i32_1 = arith.constant 0 : i32
    return %c0_i32, %c0_i32_0 : i32, i32
  }
  func.func @transform_1(%arg0: i32) -> (i32, i32) {
    %c0_i32 = arith.constant 0 : i32
    %c0_i32_0 = arith.constant 0 : i32
    %c0_i32_1 = arith.constant 0 : i32
    return %c0_i32, %c0_i32_0 : i32, i32
  }
  func.func @transform_2(%arg0: i32) -> (i32, i32) {
    %c0_i32 = arith.constant 0 : i32
    %c0_i32_0 = arith.constant 0 : i32
    %c0_i32_1 = arith.constant 0 : i32
    return %c0_i32, %c0_i32_0 : i32, i32
  }
  func.func @transform_3(%arg0: i32) -> (i32, i32) {
    %c0_i32 = arith.constant 0 : i32
    %c0_i32_0 = arith.constant 0 : i32
    %c0_i32_1 = arith.constant 0 : i32
    return %c0_i32, %c0_i32_0 : i32, i32
  }
  func.func @transform_4(%arg0: i32) -> (i32, i32, i32) {
    %c0_i32 = arith.constant 0 : i32
    %c0_i32_0 = arith.constant 0 : i32
    %c0_i32_1 = arith.constant 0 : i32
    return %arg0, %c0_i32, %c0_i32_0 : i32, i32, i32
  }
  func.func @transform_5(%arg0: i32) -> (i32, i32, i32) {
    %c0_i32 = arith.constant 0 : i32
    %c0_i32_0 = arith.constant 0 : i32
    %c0_i32_1 = arith.constant 0 : i32
    return %arg0, %c0_i32, %c0_i32_0 : i32, i32, i32
  }
  func.func @transform_6(%arg0: i32) -> (i32, i32, i32) {
    %c0_i32 = arith.constant 0 : i32
    %c0_i32_0 = arith.constant 0 : i32
    %c0_i32_1 = arith.constant 0 : i32
    return %arg0, %c0_i32, %c0_i32_0 : i32, i32, i32
  }
  func.func @transform_7(%arg0: i32) -> (i32, i32, i32) {
    %c0_i32 = arith.constant 0 : i32
    %c0_i32_0 = arith.constant 0 : i32
    %c0_i32_1 = arith.constant 0 : i32
    return %arg0, %c0_i32, %c0_i32_0 : i32, i32, i32
  }
  func.func @transform_8(%arg0: i32) -> (i32, i32, i32) {
    %c0_i32 = arith.constant 0 : i32
    %c0_i32_0 = arith.constant 0 : i32
    %c0_i32_1 = arith.constant 0 : i32
    return %arg0, %c0_i32, %c0_i32_0 : i32, i32, i32
  }
  func.func @transform_9(%arg0: i32) -> (i32, i32, i32) {
    %c0_i32 = arith.constant 0 : i32
    %c0_i32_0 = arith.constant 0 : i32
    %c0_i32_1 = arith.constant 0 : i32
    return %arg0, %c0_i32, %c0_i32_0 : i32, i32, i32
  }
  func.func @transform_10(%arg0: i32) -> (i32, i32, i32) {
    %c0_i32 = arith.constant 0 : i32
    %c0_i32_0 = arith.constant 0 : i32
    %c0_i32_1 = arith.constant 0 : i32
    return %arg0, %c0_i32, %c0_i32_0 : i32, i32, i32
  }
  func.func @transform_11(%arg0: i32) -> (i32, i32) {
    %c0_i32 = arith.constant 0 : i32
    %c0_i32_0 = arith.constant 0 : i32
    %c0_i32_1 = arith.constant 0 : i32
    return %c0_i32, %c0_i32_0 : i32, i32
  }
}

</mosaic_0001>

<llo_original>
// kernel: tpu_custom_call.1
$region0: #{tpu_custom_call.1}
  #allocation0 [shape = 'u32[]', space=smem, size = 0x4, offset = 0x4, fixed_abs, tag = 'smem constant byte address 0x4 - core index']
  #allocation1 [shape = 'u32[144,128]{1,0:T(1,128)}', space=vmem, size = 0x12000, scoped, tag = 'internal scratch']
  #allocation2 [shape = 'f32[34,32]{1,0:T(8,128)}', space=vmem, size = 0x5000, scoped, tag = 'scratch operand']
  %s0 = inlined_call_operand.vmem [shape: f32[34,48], index: 0, kind: input, shape index: {}]
  %s1 = inlined_call_operand.vmem [shape: f32[48,32], index: 1, kind: input, shape index: {}]
  %s2 = inlined_call_operand.vmem [shape: f32[17,32], index: 2, kind: input, shape index: {}]
  %s3 = inlined_call_operand.vmem [shape: f32[2,32], index: 3, kind: input, shape index: {}]
  %s4 = inlined_call_operand.vmem [shape: f32[2,32,96], index: 4, kind: input, shape index: {}]
  %s5 = inlined_call_operand.vmem [shape: f32[2,1,96], index: 5, kind: input, shape index: {}]
  %s6 = inlined_call_operand.vmem [shape: f32[2,32,32], index: 6, kind: input, shape index: {}]
  %s7 = inlined_call_operand.vmem [shape: f32[2,32,128], index: 7, kind: input, shape index: {}]
  %s8 = inlined_call_operand.vmem [shape: f32[2,128,32], index: 8, kind: input, shape index: {}]
  %s9 = inlined_call_operand.vmem [shape: f32[2,1,128], index: 9, kind: input, shape index: {}]
  %s10 = inlined_call_operand.vmem [shape: f32[2,6,32], index: 10, kind: input, shape index: {}]
  %s11 = inlined_call_operand.vmem [shape: f32[34,32], index: 11, kind: output, shape index: {}]
  %s12 = sld [smem:[#allocation0]]
  $region85: #{tpu_custom_call.1} parent=0
    _
  %s14 = ssub.s32 1, %s12
  %s15 = scalar_select 0, %s14, %s12
  loop: start=0, step=1, limit=4
  $region2: #{tpu_custom_call.1} parent=0 // loop_pre_header
    _
  $region3: #{tpu_custom_call.1} parent=0 // loop_header
    %s17 = sphi 0, %s21
    %p18 = scmp.ge.s32.totalorder %s17, 4
    %s25 = sphi 0, %s25
    %s27 = sphi 0, %s25
    %s28 = sphi 0, %s27
    %s42 = sphi 0, %s28
    %s46 = sphi 0, %s46
    %s48 = sphi 0, %s46
    %s49 = sphi 0, %s48
    %s63 = sphi 0, %s49
    %s67 = sphi 0, %s67
    %s69 = sphi 0, %s67
    %s70 = sphi 0, %s69
    %s84 = sphi 0, %s70
    %s88 = sphi 0, %s88
    %s90 = sphi 0, %s88
    %s91 = sphi 0, %s90
    %s105 = sphi 0, %s91
    %s111 = sphi 0, %s113
    %s114 = sphi 0, %s111
    %s115 = sphi 0, %s114
    %s131 = sphi 0, %s115
    %s137 = sphi 0, %s139
    %s140 = sphi 0, %s137
    %s141 = sphi 0, %s140
    %s157 = sphi 0, %s141
    %s163 = sphi 0, %s165
    %s166 = sphi 0, %s163
    %s167 = sphi 0, %s166
    %s183 = sphi 0, %s167
    %s189 = sphi 0, %s191
    %s192 = sphi 0, %s189
    %s193 = sphi 0, %s192
    %s209 = sphi 0, %s193
    %s215 = sphi 0, %s217
    %s218 = sphi 0, %s215
    %s219 = sphi 0, %s218
    %s235 = sphi 0, %s219
    %s241 = sphi 0, %s243
    %s244 = sphi 0, %s241
    %s245 = sphi 0, %s244
    %s261 = sphi 0, %s245
    %s267 = sphi 0, %s269
    %s270 = sphi 0, %s267
    %s271 = sphi 0, %s270
    %s287 = sphi 0, %s271
    %s291 = sphi 0, %s291
    %s293 = sphi 0, %s291
    %s294 = sphi 0, %s293
    %s308 = sphi 0, %s294
  $region4: #{tpu_custom_call.1} parent=0 // loop_header_branch
    %20 = sbr.rel (%p18) target = $region8
  $region5: #{tpu_custom_call.1} parent=0 // loop_body
    %s22 = ssub.s32 %s17, 1
    %s23 = ssub.s32 %s17, 2
    %s24 = sadd.s32 %s17, 1
    %s26 = sadd.s32 %s25, 1
    %p29 = scmp.eq.s32.totalorder %s17, 1
    %p30 = scmp.ne.s32.totalorder %s25, %s27
    %p31 = scmp.eq.s32.totalorder %s17, 0
    %p32 = por %p30, %p31
    %p33 = scmp.ne.s32.totalorder %s25, %s27
    %p34 = scmp.eq.s32.totalorder %s22, 1
    %p35 = por %p33, %p34
    %p36 = scmp.ne.s32.totalorder %s27, %s28
    %p37 = scmp.eq.s32.totalorder %s22, 0
    %p38 = por %p36, %p37
    %p39 = scmp.ne.s32.totalorder %s27, %s28
    %p40 = scmp.eq.s32.totalorder %s23, 1
    %p41 = por %p39, %p40
    %p43 = scmp.ne.s32.totalorder %s28, %s42
    %p44 = scmp.eq.s32.totalorder %s23, 0
    %p45 = por %p43, %p44
    %s47 = sadd.s32 %s46, 1
    %p50 = scmp.eq.s32.totalorder %s17, 1
    %p51 = scmp.ne.s32.totalorder %s46, %s48
    %p52 = scmp.eq.s32.totalorder %s17, 0
    %p53 = por %p51, %p52
    %p54 = scmp.ne.s32.totalorder %s46, %s48
    %p55 = scmp.eq.s32.totalorder %s22, 1
    %p56 = por %p54, %p55
    %p57 = scmp.ne.s32.totalorder %s48, %s49
    %p58 = scmp.eq.s32.totalorder %s22, 0
    %p59 = por %p57, %p58
    %p60 = scmp.ne.s32.totalorder %s48, %s49
    %p61 = scmp.eq.s32.totalorder %s23, 1
    %p62 = por %p60, %p61
    %p64 = scmp.ne.s32.totalorder %s49, %s63
    %p65 = scmp.eq.s32.totalorder %s23, 0
    %p66 = por %p64, %p65
    %s68 = sadd.s32 %s67, 1
    %p71 = scmp.eq.s32.totalorder %s17, 1
    %p72 = scmp.ne.s32.totalorder %s67, %s69
    %p73 = scmp.eq.s32.totalorder %s17, 0
    %p74 = por %p72, %p73
    %p75 = scmp.ne.s32.totalorder %s67, %s69
    %p76 = scmp.eq.s32.totalorder %s22, 1
    %p77 = por %p75, %p76
    %p78 = scmp.ne.s32.totalorder %s69, %s70
    %p79 = scmp.eq.s32.totalorder %s22, 0
    %p80 = por %p78, %p79
    %p81 = scmp.ne.s32.totalorder %s69, %s70
    %p82 = scmp.eq.s32.totalorder %s23, 1
    %p83 = por %p81, %p82
    %p85 = scmp.ne.s32.totalorder %s70, %s84
    %p86 = scmp.eq.s32.totalorder %s23, 0
    %p87 = por %p85, %p86
    %s89 = sadd.s32 %s88, 1
    %p92 = scmp.eq.s32.totalorder %s17, 1
    %p93 = scmp.ne.s32.totalorder %s88, %s90
    %p94 = scmp.eq.s32.totalorder %s17, 0
    %p95 = por %p93, %p94
    %p96 = scmp.ne.s32.totalorder %s88, %s90
    %p97 = scmp.eq.s32.totalorder %s22, 1
    %p98 = por %p96, %p97
    %p99 = scmp.ne.s32.totalorder %s90, %s91
    %p100 = scmp.eq.s32.totalorder %s22, 0
    %p101 = por %p99, %p100
    %p102 = scmp.ne.s32.totalorder %s90, %s91
    %p103 = scmp.eq.s32.totalorder %s23, 1
    %p104 = por %p102, %p103
    %p106 = scmp.ne.s32.totalorder %s91, %s105
    %p107 = scmp.eq.s32.totalorder %s23, 0
    %p108 = por %p106, %p107
    %s109 = ssub.s32 %s17, %s24
    %p110 = scmp.eq.s32.totalorder %s109, 0
    %s112 = sadd.s32 %s111, 1
    %s113 = scalar_select %p110, %s111, %s112
    %p116 = pneg %p110
    %p117 = scmp.eq.s32.totalorder %s17, 1
    %p118 = por %p116, %p117
    %p119 = scmp.ne.s32.totalorder %s111, %s114
    %p120 = scmp.eq.s32.totalorder %s17, 0
    %p121 = por %p119, %p120
    %p122 = scmp.ne.s32.totalorder %s111, %s114
    %p123 = scmp.eq.s32.totalorder %s22, 1
    %p124 = por %p122, %p123
    %p125 = scmp.ne.s32.totalorder %s114, %s115
    %p126 = scmp.eq.s32.totalorder %s22, 0
    %p127 = por %p125, %p126
    %p128 = scmp.ne.s32.totalorder %s114, %s115
    %p129 = scmp.eq.s32.totalorder %s23, 1
    %p130 = por %p128, %p129
    %p132 = scmp.ne.s32.totalorder %s115, %s131
    %p133 = scmp.eq.s32.totalorder %s23, 0
    %p134 = por %p132, %p133
    %s135 = ssub.s32 %s17, %s24
    %p136 = scmp.eq.s32.totalorder %s135, 0
    %s138 = sadd.s32 %s137, 1
    %s139 = scalar_select %p136, %s137, %s138
    %p142 = pneg %p136
    %p143 = scmp.eq.s32.totalorder %s17, 1
    %p144 = por %p142, %p143
    %p145 = scmp.ne.s32.totalorder %s137, %s140
    %p146 = scmp.eq.s32.totalorder %s17, 0
    %p147 = por %p145, %p146
    %p148 = scmp.ne.s32.totalorder %s137, %s140
    %p149 = scmp.eq.s32.totalorder %s22, 1
    %p150 = por %p148, %p149
    %p151 = scmp.ne.s32.totalorder %s140, %s141
    %p152 = scmp.eq.s32.totalorder %s22, 0
    %p153 = por %p151, %p152
    %p154 = scmp.ne.s32.totalorder %s140, %s141
    %p155 = scmp.eq.s32.totalorder %s23, 1
    %p156 = por %p154, %p155
    %p158 = scmp.ne.s32.totalorder %s141, %s157
    %p159 = scmp.eq.s32.totalorder %s23, 0
    %p160 = por %p158, %p159
    %s161 = ssub.s32 %s17, %s24
    %p162 = scmp.eq.s32.totalorder %s161, 0
    %s164 = sadd.s32 %s163, 1
    %s165 = scalar_select %p162, %s163, %s164
    %p168 = pneg %p162
    %p169 = scmp.eq.s32.totalorder %s17, 1
    %p170 = por %p168, %p169
    %p171 = scmp.ne.s32.totalorder %s163, %s166
    %p172 = scmp.eq.s32.totalorder %s17, 0
    %p173 = por %p171, %p172
    %p174 = scmp.ne.s32.totalorder %s163, %s166
    %p175 = scmp.eq.s32.totalorder %s22, 1
    %p176 = por %p174, %p175
    %p177 = scmp.ne.s32.totalorder %s166, %s167
    %p178 = scmp.eq.s32.totalorder %s22, 0
    %p179 = por %p177, %p178
    %p180 = scmp.ne.s32.totalorder %s166, %s167
    %p181 = scmp.eq.s32.totalorder %s23, 1
    %p182 = por %p180, %p181
    %p184 = scmp.ne.s32.totalorder %s167, %s183
    %p185 = scmp.eq.s32.totalorder %s23, 0
    %p186 = por %p184, %p185
    %s187 = ssub.s32 %s17, %s24
    %p188 = scmp.eq.s32.totalorder %s187, 0
    %s190 = sadd.s32 %s189, 1
    %s191 = scalar_select %p188, %s189, %s190
    %p194 = pneg %p188
    %p195 = scmp.eq.s32.totalorder %s17, 1
    %p196 = por %p194, %p195
    %p197 = scmp.ne.s32.totalorder %s189, %s192
    %p198 = scmp.eq.s32.totalorder %s17, 0
    %p199 = por %p197, %p198
    %p200 = scmp.ne.s32.totalorder %s189, %s192
    %p201 = scmp.eq.s32.totalorder %s22, 1
    %p202 = por %p200, %p201
    %p203 = scmp.ne.s32.totalorder %s192, %s193
    %p204 = scmp.eq.s32.totalorder %s22, 0
    %p205 = por %p203, %p204
    %p206 = scmp.ne.s32.totalorder %s192, %s193
    %p207 = scmp.eq.s32.totalorder %s23, 1
    %p208 = por %p206, %p207
    %p210 = scmp.ne.s32.totalorder %s193, %s209
    %p211 = scmp.eq.s32.totalorder %s23, 0
    %p212 = por %p210, %p211
    %s213 = ssub.s32 %s17, %s24
    %p214 = scmp.eq.s32.totalorder %s213, 0
    %s216 = sadd.s32 %s215, 1
    %s217 = scalar_select %p214, %s215, %s216
    %p220 = pneg %p214
    %p221 = scmp.eq.s32.totalorder %s17, 1
    %p222 = por %p220, %p221
    %p223 = scmp.ne.s32.totalorder %s215, %s218
    %p224 = scmp.eq.s32.totalorder %s17, 0
    %p225 = por %p223, %p224
    %p226 = scmp.ne.s32.totalorder %s215, %s218
    %p227 = scmp.eq.s32.totalorder %s22, 1
    %p228 = por %p226, %p227
    %p229 = scmp.ne.s32.totalorder %s218, %s219
    %p230 = scmp.eq.s32.totalorder %s22, 0
    %p231 = por %p229, %p230
    %p232 = scmp.ne.s32.totalorder %s218, %s219
    %p233 = scmp.eq.s32.totalorder %s23, 1
    %p234 = por %p232, %p233
    %p236 = scmp.ne.s32.totalorder %s219, %s235
    %p237 = scmp.eq.s32.totalorder %s23, 0
    %p238 = por %p236, %p237
    %s239 = ssub.s32 %s17, %s24
    %p240 = scmp.eq.s32.totalorder %s239, 0
    %s242 = sadd.s32 %s241, 1
    %s243 = scalar_select %p240, %s241, %s242
    %p246 = pneg %p240
    %p247 = scmp.eq.s32.totalorder %s17, 1
    %p248 = por %p246, %p247
    %p249 = scmp.ne.s32.totalorder %s241, %s244
    %p250 = scmp.eq.s32.totalorder %s17, 0
    %p251 = por %p249, %p250
    %p252 = scmp.ne.s32.totalorder %s241, %s244
    %p253 = scmp.eq.s32.totalorder %s22, 1
    %p254 = por %p252, %p253
    %p255 = scmp.ne.s32.totalorder %s244, %s245
    %p256 = scmp.eq.s32.totalorder %s22, 0
    %p257 = por %p255, %p256
    %p258 = scmp.ne.s32.totalorder %s244, %s245
    %p259 = scmp.eq.s32.totalorder %s23, 1
    %p260 = por %p258, %p259
    %p262 = scmp.ne.s32.totalorder %s245, %s261
    %p263 = scmp.eq.s32.totalorder %s23, 0
    %p264 = por %p262, %p263
    %s265 = ssub.s32 %s17, %s24
    %p266 = scmp.eq.s32.totalorder %s265, 0
    %s268 = sadd.s32 %s267, 1
    %s269 = scalar_select %p266, %s267, %s268
    %p272 = pneg %p266
    %p273 = scmp.eq.s32.totalorder %s17, 1
    %p274 = por %p272, %p273
    %p275 = scmp.ne.s32.totalorder %s267, %s270
    %p276 = scmp.eq.s32.totalorder %s17, 0
    %p277 = por %p275, %p276
    %p278 = scmp.ne.s32.totalorder %s267, %s270
    %p279 = scmp.eq.s32.totalorder %s22, 1
    %p280 = por %p278, %p279
    %p281 = scmp.ne.s32.totalorder %s270, %s271
    %p282 = scmp.eq.s32.totalorder %s22, 0
    %p283 = por %p281, %p282
    %p284 = scmp.ne.s32.totalorder %s270, %s271
    %p285 = scmp.eq.s32.totalorder %s23, 1
    %p286 = por %p284, %p285
    %p288 = scmp.ne.s32.totalorder %s271, %s287
    %p289 = scmp.eq.s32.totalorder %s23, 0
    %p290 = por %p288, %p289
    %s292 = sadd.s32 %s291, 1
    %p295 = scmp.eq.s32.totalorder %s17, 1
    %p296 = scmp.ne.s32.totalorder %s291, %s293
    %p297 = scmp.eq.s32.totalorder %s17, 0
    %p298 = por %p296, %p297
    %p299 = scmp.ne.s32.totalorder %s291, %s293
    %p300 = scmp.eq.s32.totalorder %s22, 1
    %p301 = por %p299, %p300
    %p302 = scmp.ne.s32.totalorder %s293, %s294
    %p303 = scmp.eq.s32.totalorder %s22, 0
    %p304 = por %p302, %p303
    %p305 = scmp.ne.s32.totalorder %s293, %s294
    %p306 = scmp.eq.s32.totalorder %s23, 1
    %p307 = por %p305, %p306
    %p309 = scmp.ne.s32.totalorder %s294, %s308
    %p310 = scmp.eq.s32.totalorder %s23, 0
    %p311 = por %p309, %p310
    %p312 = scmp.le.s32.totalorder 1, %s17
    %p313 = scmp.lt.s32.totalorder %s17, 3
    %p314 = pnand %p312, %p313
    %p315 = pneg %p314
    // Predicated region
    $region9: #{tpu_custom_call.1} parent=5 // pred_check
      _
    $region10: #{tpu_custom_call.1} parent=5 // pred_check_branch
      %317 = sbr.rel (%p314) target = $region12
    $region11: #{tpu_custom_call.1} parent=5 // pred_region
      %s318 = ssub.s32 %s17, 1
      // Predicated region
      $region13: #{tpu_custom_call.1} parent=11 // pred_check
        %p319 = pneg %p38
      $region14: #{tpu_custom_call.1} parent=11 // pred_check_branch
        %321 = sbr.rel (%p319) target = $region16
      $region15: #{tpu_custom_call.1} parent=11 // pred_region
        _
      $region16: #{tpu_custom_call.1} parent=11 // pred_fallthru
        _
      // Predicated region
      $region17: #{tpu_custom_call.1} parent=11 // pred_check
        %p322 = pneg %p59
      $region18: #{tpu_custom_call.1} parent=11 // pred_check_branch
        %324 = sbr.rel (%p322) target = $region20
      $region19: #{tpu_custom_call.1} parent=11 // pred_region
        _
      $region20: #{tpu_custom_call.1} parent=11 // pred_fallthru
        _
      // Predicated region
      $region21: #{tpu_custom_call.1} parent=11 // pred_check
        %p325 = pneg %p80
      $region22: #{tpu_custom_call.1} parent=11 // pred_check_branch
        %327 = sbr.rel (%p325) target = $region24
      $region23: #{tpu_custom_call.1} parent=11 // pred_region
        _
      $region24: #{tpu_custom_call.1} parent=11 // pred_fallthru
        _
      // Predicated region
      $region25: #{tpu_custom_call.1} parent=11 // pred_check
        %p328 = pneg %p101
      $region26: #{tpu_custom_call.1} parent=11 // pred_check_branch
        %330 = sbr.rel (%p328) target = $region28
      $region27: #{tpu_custom_call.1} parent=11 // pred_region
        _
      $region28: #{tpu_custom_call.1} parent=11 // pred_fallthru
        _
    $region12: #{tpu_custom_call.1} parent=5 // pred_fallthru
      _
    %p331 = scmp.lt.s32.totalorder %s17, 2
    // Predicated region
    $region29: #{tpu_custom_call.1} parent=5 // pred_check
      %p332 = pneg %p331
    $region30: #{tpu_custom_call.1} parent=5 // pred_check_branch
      %334 = sbr.rel (%p332) target = $region32
    $region31: #{tpu_custom_call.1} parent=5 // pred_region
      // Predicated region
      $region33: #{tpu_custom_call.1} parent=31 // pred_check
        %p335 = pneg %p121
      $region34: #{tpu_custom_call.1} parent=31 // pred_check_branch
        %337 = sbr.rel (%p335) target = $region36
      $region35: #{tpu_custom_call.1} parent=31 // pred_region
        %p338 = scmp.lt.s32.totalorder %s17, 1
        %s339 = scalar_select %p338, %s17, 1
        %s340 = smul.addr %s339, 4
        %s341 = smul.addr %s340, 8
        %s342 = scalar_lea.vmem %s4, %s341
      $region36: #{tpu_custom_call.1} parent=31 // pred_fallthru
        _
      // Predicated region
      $region37: #{tpu_custom_call.1} parent=31 // pred_check
        %p343 = pneg %p147
      $region38: #{tpu_custom_call.1} parent=31 // pred_check_branch
        %345 = sbr.rel (%p343) target = $region40
      $region39: #{tpu_custom_call.1} parent=31 // pred_region
        %p346 = scmp.lt.s32.totalorder %s17, 1
        %s347 = scalar_select %p346, %s17, 1
        %s348 = scalar_lea.vmem %s5, %s347
      $region40: #{tpu_custom_call.1} parent=31 // pred_fallthru
        _
      // Predicated region
      $region41: #{tpu_custom_call.1} parent=31 // pred_check
        %p349 = pneg %p173
      $region42: #{tpu_custom_call.1} parent=31 // pred_check_branch
        %351 = sbr.rel (%p349) target = $region44
      $region43: #{tpu_custom_call.1} parent=31 // pred_region
        %p352 = scmp.lt.s32.totalorder %s17, 1
        %s353 = scalar_select %p352, %s17, 1
        %s354 = smul.addr %s353, 4
        %s355 = smul.addr %s354, 8
        %s356 = scalar_lea.vmem %s6, %s355
      $region44: #{tpu_custom_call.1} parent=31 // pred_fallthru
        _
      // Predicated region
      $region45: #{tpu_custom_call.1} parent=31 // pred_check
        %p357 = pneg %p199
      $region46: #{tpu_custom_call.1} parent=31 // pred_check_branch
        %359 = sbr.rel (%p357) target = $region48
      $region47: #{tpu_custom_call.1} parent=31 // pred_region
        %p360 = scmp.lt.s32.totalorder %s17, 1
        %s361 = scalar_select %p360, %s17, 1
        %s362 = smul.addr %s361, 4
        %s363 = smul.addr %s362, 8
        %s364 = scalar_lea.vmem %s7, %s363
      $region48: #{tpu_custom_call.1} parent=31 // pred_fallthru
        _
      // Predicated region
      $region49: #{tpu_custom_call.1} parent=31 // pred_check
        %p365 = pneg %p225
      $region50: #{tpu_custom_call.1} parent=31 // pred_check_branch
        %367 = sbr.rel (%p365) target = $region52
      $region51: #{tpu_custom_call.1} parent=31 // pred_region
        %p368 = scmp.lt.s32.totalorder %s17, 1
        %s369 = scalar_select %p368, %s17, 1
        %s370 = smul.addr %s369, 16
        %s371 = smul.addr %s370, 8
        %s372 = scalar_lea.vmem %s8, %s371
      $region52: #{tpu_custom_call.1} parent=31 // pred_fallthru
        _
      // Predicated region
      $region53: #{tpu_custom_call.1} parent=31 // pred_check
        %p373 = pneg %p251
      $region54: #{tpu_custom_call.1} parent=31 // pred_check_branch
        %375 = sbr.rel (%p373) target = $region56
      $region55: #{tpu_custom_call.1} parent=31 // pred_region
        %p376 = scmp.lt.s32.totalorder %s17, 1
        %s377 = scalar_select %p376, %s17, 1
        %s378 = scalar_lea.vmem %s9, %s377
      $region56: #{tpu_custom_call.1} parent=31 // pred_fallthru
        _
      // Predicated region
      $region57: #{tpu_custom_call.1} parent=31 // pred_check
        %p379 = pneg %p277
      $region58: #{tpu_custom_call.1} parent=31 // pred_check_branch
        %381 = sbr.rel (%p379) target = $region60
      $region59: #{tpu_custom_call.1} parent=31 // pred_region
        %p382 = scmp.lt.s32.totalorder %s17, 1
        %s383 = scalar_select %p382, %s17, 1
        %s384 = smul.addr %s383, 8
        %s385 = scalar_lea.vmem %s10, %s384
      $region60: #{tpu_custom_call.1} parent=31 // pred_fallthru
        _
    $region32: #{tpu_custom_call.1} parent=5 // pred_fallthru
      _
    %p386 = scmp.le.s32.totalorder 1, %s17
    %p387 = scmp.lt.s32.totalorder %s17, 3
    %p388 = pnand %p386, %p387
    %p389 = pneg %p388
    // Predicated region
    $region61: #{tpu_custom_call.1} parent=5 // pred_check
      _
    $region62: #{tpu_custom_call.1} parent=5 // pred_check_branch
      %391 = sbr.rel (%p388) target = $region64
    $region63: #{tpu_custom_call.1} parent=5 // pred_region
      %s392 = ssub.s32 %s17, 1
      %p393 = pneg %p38
      %p394 = pneg %p35
      %p395 = pneg %p59
      %p396 = pneg %p56
      %p397 = pneg %p80
      %p398 = pneg %p77
      %p399 = pneg %p101
      %p400 = pneg %p98
      %p401 = scmp.lt.s32.totalorder %s22, 1
      %s402 = scalar_select %p401, %s22, 1
      %s403 = smul.addr %s402, 4
      %s404 = smul.addr %s403, 8
      %s405 = scalar_lea.vmem %s4, %s404
      %p406 = pneg %p127
      %p407 = pneg %p124
      %p408 = scmp.lt.s32.totalorder %s22, 1
      %s409 = scalar_select %p408, %s22, 1
      %s410 = scalar_lea.vmem %s5, %s409
      %p411 = pneg %p153
      %p412 = pneg %p150
      %p413 = scmp.lt.s32.totalorder %s22, 1
      %s414 = scalar_select %p413, %s22, 1
      %s415 = smul.addr %s414, 4
      %s416 = smul.addr %s415, 8
      %s417 = scalar_lea.vmem %s6, %s416
      %p418 = pneg %p179
      %p419 = pneg %p176
      %p420 = scmp.lt.s32.totalorder %s22, 1
      %s421 = scalar_select %p420, %s22, 1
      %s422 = smul.addr %s421, 4
      %s423 = smul.addr %s422, 8
      %s424 = scalar_lea.vmem %s7, %s423
      %p425 = pneg %p205
      %p426 = pneg %p202
      %p427 = scmp.lt.s32.totalorder %s22, 1
      %s428 = scalar_select %p427, %s22, 1
      %s429 = smul.addr %s428, 16
      %s430 = smul.addr %s429, 8
      %s431 = scalar_lea.vmem %s8, %s430
      %p432 = pneg %p231
      %p433 = pneg %p228
      %p434 = scmp.lt.s32.totalorder %s22, 1
      %s435 = scalar_select %p434, %s22, 1
      %s436 = scalar_lea.vmem %s9, %s435
      %p437 = pneg %p257
      %p438 = pneg %p254
      %p439 = scmp.lt.s32.totalorder %s22, 1
      %s440 = scalar_select %p439, %s22, 1
      %s441 = smul.addr %s440, 8
      %s442 = scalar_lea.vmem %s10, %s441
      %p443 = pneg %p283
      %p444 = pneg %p280
      %p445 = pneg %p304
      %p446 = pneg %p301
      %p447 = scmp.lt.s32.totalorder %s22, 1
      %s448 = scalar_select %p447, %s22, 1
      %s449 = smul.addr %s448, 4
      %s450 = smul.addr %s449, 8
      %s451 = scalar_lea.vmem %s4, %s450
      %p452 = scmp.lt.s32.totalorder %s22, 1
      %s453 = scalar_select %p452, %s22, 1
      %s454 = scalar_lea.vmem %s5, %s453
      %p455 = scmp.lt.s32.totalorder %s22, 1
      %s456 = scalar_select %p455, %s22, 1
      %s457 = smul.addr %s456, 4
      %s458 = smul.addr %s457, 8
      %s459 = scalar_lea.vmem %s6, %s458
      %p460 = scmp.lt.s32.totalorder %s22, 1
      %s461 = scalar_select %p460, %s22, 1
      %s462 = smul.addr %s461, 4
      %s463 = smul.addr %s462, 8
      %s464 = scalar_lea.vmem %s7, %s463
      %p465 = scmp.lt.s32.totalorder %s22, 1
      %s466 = scalar_select %p465, %s22, 1
      %s467 = smul.addr %s466, 16
      %s468 = smul.addr %s467, 8
      %s469 = scalar_lea.vmem %s8, %s468
      %p470 = scmp.lt.s32.totalorder %s22, 1
      %s471 = scalar_select %p470, %s22, 1
      %s472 = scalar_lea.vmem %s9, %s471
      %p473 = scmp.lt.s32.totalorder %s22, 1
      %s474 = scalar_select %p473, %s22, 1
      %s475 = smul.addr %s474, 8
      %s476 = scalar_lea.vmem %s10, %s475
      %p477 = scmp.eq.s32.totalorder %s22, 0
      // Predicated region
      $region65: #{tpu_custom_call.1} parent=63 // pred_check
        %p478 = pneg %p477
      $region66: #{tpu_custom_call.1} parent=63 // pred_check_branch
        %480 = sbr.rel (%p478) target = $region68
      $region67: #{tpu_custom_call.1} parent=63 // pred_region
        %v481 = vld [vmem:[%s0] sm:$0xff]
        %v482 = vld [vmem:[%s0 + $0x8] sm:$0xff]
        %v483 = vld [vmem:[%s0 + $0x10] sm:$0xff]
        %v484 = vld [vmem:[%s0 + $0x18] sm:$0xff]
        %v485 = vld [vmem:[%s0 + $0x20] sm:$0x3]
        %v486 = vld [vmem:[%s1] sm:$0xff]
        %v487 = vld [vmem:[%s1 + $0x8] sm:$0xff]
        %v488 = vld [vmem:[%s1 + $0x10] sm:$0xff]
        %v489 = vld [vmem:[%s1 + $0x18] sm:$0xff]
        %v490 = vld [vmem:[%s1 + $0x20] sm:$0xff]
        %v491 = vld [vmem:[%s1 + $0x28] sm:$0xff]
        %v492 = vld [vmem:[%s2] sm:$0xff]
        %v493 = vld [vmem:[%s2 + $0x8] sm:$0xff]
        %v494 = vld [vmem:[%s2 + $0x10] sm:$0x1]
        %vm498 = vcmask 1040384
        %v499 = vrot.slane %v492, 7
        %v500 = vrot.slane %v493, 7
        %v501 = vsel %vm498, %v499, %v500
        %v502 = vrot.slane %v494, 7
        %v503 = vsel %vm498, %v500, %v502
        %v507 = vsel %vm498, %v494, %v499
        %vm508 = vcmask 392192
        %v510 = vsel %vm508, %v481, 0
        %v513 = vsel %vm508, %v482, 0
        %v516 = vsel %vm508, %v483, 0
        %v519 = vsel %vm508, %v484, 0
        %v522 = vsel %vm508, %v485, 0
        %524 = vmatprep.subr.mxu0 0.0
        %525 = vmatpush1.msra.mxu0 0.0
        %526 = vmatprep.subr.mxu0 0.0
        %527 = vmatpush1.msra.mxu0 0.0
        %528 = vmatprep.subr.mxu0 0.0
        %529 = vmatpush1.msra.mxu0 0.0
        %530 = vmatprep.subr.mxu0 0.0
        %531 = vmatpush1.msra.mxu0 0.0
        %532 = vmatprep.subr.mxu0 0.0
        %533 = vmatpush1.msra.mxu0 0.0
        %534 = vmatprep.subr.mxu0 0.0
        %535 = vmatpush1.msra.mxu0 0.0
        %536 = vmatprep.subr.mxu0 0.0
        %537 = vmatpush1.msra.mxu0 0.0
        %538 = vmatprep.subr.mxu0 0.0
        %539 = vmatpush1.msra.mxu0 0.0
        %540 = vmatprep.subr.mxu0 0.0
        %541 = vmatpush1.msra.mxu0 0.0
        %542 = vmatprep.subr.mxu0 0.0
        %543 = vmatpush1.msra.mxu0 0.0
        %544 = vmatprep.subr.mxu0 0.0
        %545 = vmatpush1.msra.mxu0 %v491
        %546 = vmatprep.subr.mxu0 0.0
        %547 = vmatpush1.msra.mxu0 %v490
        %548 = vmatprep.subr.mxu0 0.0
        %549 = vmatpush1.msra.mxu0 %v489
        %550 = vmatprep.subr.mxu0 0.0
        %551 = vmatpush1.msra.mxu0 %v488
        %552 = vmatprep.subr.mxu0 0.0
        %553 = vmatpush1.msra.mxu0 %v487
        %554 = vmatprep.subr.mxu0 0.0
        %555 = vmatpush1.msra.mxu0 %v486
        %556 = vmatprep.subr.mxu0 0.0
        %557 = vmatpush2.msra.mxu0 0.0
        %558 = vmatprep.subr.mxu0 0.0
        %559 = vmatpush2.msra.mxu0 0.0
        %560 = vmatprep.subr.mxu0 0.0
        %561 = vmatpush2.msra.mxu0 0.0
        %562 = vmatprep.subr.mxu0 0.0
        %563 = vmatpush2.msra.mxu0 0.0
        %564 = vmatprep.subr.mxu0 0.0
        %565 = vmatpush2.msra.mxu0 0.0
        %566 = vmatprep.subr.mxu0 0.0
        %567 = vmatpush2.msra.mxu0 0.0
        %568 = vmatprep.subr.mxu0 0.0
        %569 = vmatpush2.msra.mxu0 0.0
        %570 = vmatprep.subr.mxu0 0.0
        %571 = vmatpush2.msra.mxu0 0.0
        %572 = vmatprep.subr.mxu0 0.0
        %573 = vmatpush2.msra.mxu0 0.0
        %574 = vmatprep.subr.mxu0 0.0
        %575 = vmatpush2.msra.mxu0 0.0
        %576 = vmatprep.subr.mxu0 0.0
        %577 = vmatpush2.msra.mxu0 0.0
        %578 = vmatprep.subr.mxu0 0.0
        %579 = vmatpush2.msra.mxu0 0.0
        %580 = vmatprep.subr.mxu0 0.0
        %581 = vmatpush2.msra.mxu0 0.0
        %582 = vmatprep.subr.mxu0 0.0
        %583 = vmatpush2.msra.mxu0 0.0
        %584 = vmatprep.subr.mxu0 0.0
        %585 = vmatpush2.msra.mxu0 0.0
        %586 = vmatprep.subr.mxu0 0.0
        %587 = vmatpush2.msra.mxu0 0.0
        %588 = vmatprep.mubr.f32.mxu0 0.0
        %589 = vmatmul.mubr.f32.gmra.mxu0 %v510
        %v590 = vpop.f32.mrf.mxu0
        %v591 = vadd.f32 %v492, %v590
        %v592 = vpop.f32.mrf.mxu0
        %593 = vmatprep.mubr.f32.mxu0 0.0
        %594 = vmatmul.mubr.f32.gmra.mxu0 %v513
        %v595 = vpop.f32.mrf.mxu0
        %v596 = vadd.f32 %v493, %v595
        %v597 = vpop.f32.mrf.mxu0
        %598 = vmatprep.mubr.f32.mxu0 0.0
        %599 = vmatmul.mubr.f32.gmra.mxu0 %v516
        %v600 = vpop.f32.mrf.mxu0
        %v601 = vadd.f32 %v507, %v600
        %v602 = vpop.f32.mrf.mxu0
        %603 = vmatprep.mubr.f32.mxu0 0.0
        %604 = vmatmul.mubr.f32.gmra.mxu0 %v519
        %v605 = vpop.f32.mrf.mxu0
        %v606 = vadd.f32 %v501, %v605
        %v607 = vpop.f32.mrf.mxu0
        %608 = vmatprep.mubr.f32.mxu0 0.0
        %609 = vmatmul.mubr.f32.gmra.mxu0 %v522
        %v610 = vpop.f32.mrf.mxu0
        %v611 = vadd.f32 %v503, %v610
        %v612 = vpop.f32.mrf.mxu0
        %613 = vdwg.mxu0
        %v614 = vld [vmem:[%s3] sm:$0x1]
        %v615 = vld [vmem:[%s3 + $0x1] sm:$0x1]
        %vm616 = vcmask 261120
        %v617 = vsel %vm616, %v591, 0.0
        %618 = vadd.xlane.f32.xlu0 %v617
        %v619 = vpop.xlane.xlu0 %618
        %v620 = vsel %vm616, %v596, 0.0
        %621 = vadd.xlane.f32.xlu0 %v620
        %v622 = vpop.xlane.xlu0 %621
        %v623 = vsel %vm616, %v601, 0.0
        %624 = vadd.xlane.f32.xlu0 %v623
        %v625 = vpop.xlane.xlu0 %624
        %v626 = vsel %vm616, %v606, 0.0
        %627 = vadd.xlane.f32.xlu0 %v626
        %v628 = vpop.xlane.xlu0 %627
        %vm629 = vcmask 254976
        %v630 = vsel %vm629, %v611, 0.0
        %631 = vadd.xlane.f32.xlu0 %v630
        %v632 = vpop.xlane.xlu0 %631
        %v633 = vrcp.pop 32.0
        %v634 = vmul.f32 %v619, %v633
        %v635 = vmul.f32 %v622, %v633
        %v636 = vmul.f32 %v625, %v633
        %v637 = vmul.f32 %v628, %v633
        %v638 = vmul.f32 %v632, %v633
        %v639 = vsub.f32 %v591, %v634
        %v640 = vsub.f32 %v596, %v635
        %v641 = vsub.f32 %v601, %v636
        %v642 = vsub.f32 %v606, %v637
        %v643 = vsub.f32 %v611, %v638
        %v644 = vmul.f32 %v639, %v639
        %v645 = vmul.f32 %v640, %v640
        %v646 = vmul.f32 %v641, %v641
        %v647 = vmul.f32 %v642, %v642
        %v648 = vmul.f32 %v643, %v643
        %v649 = vsel %vm616, %v644, 0.0
        %650 = vadd.xlane.f32.xlu0 %v649
        %v651 = vpop.xlane.xlu0 %650
        %v652 = vsel %vm616, %v645, 0.0
        %653 = vadd.xlane.f32.xlu0 %v652
        %v654 = vpop.xlane.xlu0 %653
        %v655 = vsel %vm616, %v646, 0.0
        %656 = vadd.xlane.f32.xlu0 %v655
        %v657 = vpop.xlane.xlu0 %656
        %v658 = vsel %vm616, %v647, 0.0
        %659 = vadd.xlane.f32.xlu0 %v658
        %v660 = vpop.xlane.xlu0 %659
        %v661 = vsel %vm629, %v648, 0.0
        %662 = vadd.xlane.f32.xlu0 %v661
        %v663 = vpop.xlane.xlu0 %662
        %v664 = vmul.f32 %v651, %v633
        %v665 = vmul.f32 %v654, %v633
        %v666 = vmul.f32 %v657, %v633
        %v667 = vmul.f32 %v660, %v633
        %v668 = vmul.f32 %v663, %v633
        %v669 = vadd.f32 %v664, 1e-05
        %v670 = vadd.f32 %v665, 1e-05
        %v671 = vadd.f32 %v666, 1e-05
        %v672 = vadd.f32 %v667, 1e-05
        %v673 = vadd.f32 %v668, 1e-05
        %v674 = vrsqrt.pop %v669
        %v675 = vrsqrt.pop %v670
        %v676 = vrsqrt.pop %v671
        %v677 = vrsqrt.pop %v672
        %v678 = vrsqrt.pop %v673
        %v679 = vmul.f32 %v639, %v674
        %v680 = vmul.f32 %v640, %v675
        %v681 = vmul.f32 %v641, %v676
        %v682 = vmul.f32 %v642, %v677
        %v683 = vmul.f32 %v643, %v678
        %v684 = vlaneseq
        %v685 = vshrl.u32 %v684, 7
        %v686 = vsub.s32 0, %v685
        %v687 = vrot.slane %v614, %v686
        %v688 = vmul.f32 %v679, %v687
        %v689 = vmul.f32 %v680, %v687
        %v690 = vmul.f32 %v681, %v687
        %v691 = vmul.f32 %v682, %v687
        %v692 = vmul.f32 %v683, %v687
        %v693 = vlaneseq
        %v694 = vshrl.u32 %v693, 7
        %v695 = vsub.s32 0, %v694
        %v696 = vrot.slane %v615, %v695
        %v697 = vadd.f32 %v688, %v696
        %v698 = vadd.f32 %v689, %v696
        %v699 = vadd.f32 %v690, %v696
        %v700 = vadd.f32 %v691, %v696
        %v701 = vadd.f32 %v692, %v696
        %702 = vst.msk [vmem:[#allocation2] sm:$0xff] %vm616, %v697
        %703 = vst.msk [vmem:[#allocation2 + $0x8] sm:$0xff] %vm616, %v698
        %704 = vst.msk [vmem:[#allocation2 + $0x10] sm:$0xff] %vm616, %v699
        %705 = vst.msk [vmem:[#allocation2 + $0x18] sm:$0xff] %vm616, %v700
        %706 = vst.msk [vmem:[#allocation2 + $0x20] sm:$0x3] %vm629, %v701
      $region68: #{tpu_custom_call.1} parent=63 // pred_fallthru
        _
      %v707 = vld [vmem:[%s476] sm:$0x3f]
      %v708 = vld [vmem:[#allocation2] sm:$0xff]
      %v709 = vld [vmem:[#allocation2 + $0x8] sm:$0xff]
      %v710 = vld [vmem:[#allocation2 + $0x10] sm:$0xff]
      %v711 = vld [vmem:[#allocation2 + $0x18] sm:$0xff]
      %v712 = vld [vmem:[#allocation2 + $0x20] sm:$0x3]
      %vm713 = vcmask 261120
      %v714 = vsel %vm713, %v708, 0.0
      %715 = vadd.xlane.f32.xlu0 %v714
      %v716 = vpop.xlane.xlu0 %715
      %v717 = vsel %vm713, %v709, 0.0
      %718 = vadd.xlane.f32.xlu0 %v717
      %v719 = vpop.xlane.xlu0 %718
      %v720 = vsel %vm713, %v710, 0.0
      %721 = vadd.xlane.f32.xlu0 %v720
      %v722 = vpop.xlane.xlu0 %721
      %v723 = vsel %vm713, %v711, 0.0
      %724 = vadd.xlane.f32.xlu0 %v723
      %v725 = vpop.xlane.xlu0 %724
      %vm726 = vcmask 254976
      %v727 = vsel %vm726, %v712, 0.0
      %728 = vadd.xlane.f32.xlu0 %v727
      %v729 = vpop.xlane.xlu0 %728
      %v730 = vrcp.pop 32.0
      %v731 = vmul.f32 %v716, %v730
      %v732 = vmul.f32 %v719, %v730
      %v733 = vmul.f32 %v722, %v730
      %v734 = vmul.f32 %v725, %v730
      %v735 = vmul.f32 %v729, %v730
      %v736 = vsub.f32 %v708, %v731
      %v737 = vsub.f32 %v709, %v732
      %v738 = vsub.f32 %v710, %v733
      %v739 = vsub.f32 %v711, %v734
      %v740 = vsub.f32 %v712, %v735
      %v741 = vmul.f32 %v736, %v736
      %v742 = vmul.f32 %v737, %v737
      %v743 = vmul.f32 %v738, %v738
      %v744 = vmul.f32 %v739, %v739
      %v745 = vmul.f32 %v740, %v740
      %v746 = vsel %vm713, %v741, 0.0
      %747 = vadd.xlane.f32.xlu0 %v746
      %v748 = vpop.xlane.xlu0 %747
      %v749 = vsel %vm713, %v742, 0.0
      %750 = vadd.xlane.f32.xlu0 %v749
      %v751 = vpop.xlane.xlu0 %750
      %v752 = vsel %vm713, %v743, 0.0
      %753 = vadd.xlane.f32.xlu0 %v752
      %v754 = vpop.xlane.xlu0 %753
      %v755 = vsel %vm713, %v744, 0.0
      %756 = vadd.xlane.f32.xlu0 %v755
      %v757 = vpop.xlane.xlu0 %756
      %v758 = vsel %vm726, %v745, 0.0
      %759 = vadd.xlane.f32.xlu0 %v758
      %v760 = vpop.xlane.xlu0 %759
      %v761 = vmul.f32 %v748, %v730
      %v762 = vmul.f32 %v751, %v730
      %v763 = vmul.f32 %v754, %v730
      %v764 = vmul.f32 %v757, %v730
      %v765 = vmul.f32 %v760, %v730
      %v766 = vadd.f32 %v761, 1e-05
      %v767 = vadd.f32 %v762, 1e-05
      %v768 = vadd.f32 %v763, 1e-05
      %v769 = vadd.f32 %v764, 1e-05
      %v770 = vadd.f32 %v765, 1e-05
      %v771 = vrsqrt.pop %v766
      %v772 = vrsqrt.pop %v767
      %v773 = vrsqrt.pop %v768
      %v774 = vrsqrt.pop %v769
      %v775 = vrsqrt.pop %v770
      %v776 = vmul.f32 %v736, %v771
      %v777 = vmul.f32 %v737, %v772
      %v778 = vmul.f32 %v738, %v773
      %v779 = vmul.f32 %v739, %v774
      %v780 = vmul.f32 %v740, %v775
      %v781 = vlaneseq
      %v782 = vshrl.u32 %v781, 7
      %v783 = vsub.s32 0, %v782
      %v784 = vrot.slane %v707, %v783
      %v785 = vmul.f32 %v776, %v784
      %v786 = vmul.f32 %v777, %v784
      %v787 = vmul.f32 %v778, %v784
      %v788 = vmul.f32 %v779, %v784
      %v789 = vmul.f32 %v780, %v784
      %v790 = vlaneseq
      %v791 = vshrl.u32 %v790, 7
      %v792 = vsub.s32 1, %v791
      %v793 = vrot.slane %v707, %v792
      %v794 = vadd.f32 %v785, %v793
      %v795 = vadd.f32 %v786, %v793
      %v796 = vadd.f32 %v787, %v793
      %v797 = vadd.f32 %v788, %v793
      %v798 = vadd.f32 %v789, %v793
      %v799 = vld [vmem:[%s451] sm:$0xff]
      %v800 = vld [vmem:[%s451 + $0x8] sm:$0xff]
      %v801 = vld [vmem:[%s451 + $0x10] sm:$0xff]
      %v802 = vld [vmem:[%s451 + $0x18] sm:$0xff]
      %v803 = vld [vmem:[%s454] sm:$0x1]
      %v805 = vlaneseq
      %v806 = vshrl.u32 %v805, 7
      %v807 = vsub.s32 0, %v806
      %v808 = vrot.slane %v803, %v807
      %v811 = vsel %vm713, %v794, 0
      %v814 = vsel %vm713, %v795, 0
      %v817 = vsel %vm713, %v796, 0
      %v820 = vsel %vm713, %v797, 0
      %v823 = vsel %vm713, %v798, 0
      %825 = vmatprep.subr.mxu0 0.0
      %826 = vmatpush1.msra.mxu0 0.0
      %827 = vmatprep.subr.mxu0 0.0
      %828 = vmatpush1.msra.mxu0 0.0
      %829 = vmatprep.subr.mxu0 0.0
      %830 = vmatpush1.msra.mxu0 0.0
      %831 = vmatprep.subr.mxu0 0.0
      %832 = vmatpush1.msra.mxu0 0.0
      %833 = vmatprep.subr.mxu0 0.0
      %834 = vmatpush1.msra.mxu0 0.0
      %835 = vmatprep.subr.mxu0 0.0
      %836 = vmatpush1.msra.mxu0 0.0
      %837 = vmatprep.subr.mxu0 0.0
      %838 = vmatpush1.msra.mxu0 0.0
      %839 = vmatprep.subr.mxu0 0.0
      %840 = vmatpush1.msra.mxu0 0.0
      %841 = vmatprep.subr.mxu0 0.0
      %842 = vmatpush1.msra.mxu0 0.0
      %843 = vmatprep.subr.mxu0 0.0
      %844 = vmatpush1.msra.mxu0 0.0
      %845 = vmatprep.subr.mxu0 0.0
      %846 = vmatpush1.msra.mxu0 0.0
      %847 = vmatprep.subr.mxu0 0.0
      %848 = vmatpush1.msra.mxu0 0.0
      %849 = vmatprep.subr.mxu0 0.0
      %850 = vmatpush1.msra.mxu0 %v802
      %851 = vmatprep.subr.mxu0 0.0
      %852 = vmatpush1.msra.mxu0 %v801
      %853 = vmatprep.subr.mxu0 0.0
      %854 = vmatpush1.msra.mxu0 %v800
      %855 = vmatprep.subr.mxu0 0.0
      %856 = vmatpush1.msra.mxu0 %v799
      %857 = vmatprep.subr.mxu0 0.0
      %858 = vmatpush2.msra.mxu0 0.0
      %859 = vmatprep.subr.mxu0 0.0
      %860 = vmatpush2.msra.mxu0 0.0
      %861 = vmatprep.subr.mxu0 0.0
      %862 = vmatpush2.msra.mxu0 0.0
      %863 = vmatprep.subr.mxu0 0.0
      %864 = vmatpush2.msra.mxu0 0.0
      %865 = vmatprep.subr.mxu0 0.0
      %866 = vmatpush2.msra.mxu0 0.0
      %867 = vmatprep.subr.mxu0 0.0
      %868 = vmatpush2.msra.mxu0 0.0
      %869 = vmatprep.subr.mxu0 0.0
      %870 = vmatpush2.msra.mxu0 0.0
      %871 = vmatprep.subr.mxu0 0.0
      %872 = vmatpush2.msra.mxu0 0.0
      %873 = vmatprep.subr.mxu0 0.0
      %874 = vmatpush2.msra.mxu0 0.0
      %875 = vmatprep.subr.mxu0 0.0
      %876 = vmatpush2.msra.mxu0 0.0
      %877 = vmatprep.subr.mxu0 0.0
      %878 = vmatpush2.msra.mxu0 0.0
      %879 = vmatprep.subr.mxu0 0.0
      %880 = vmatpush2.msra.mxu0 0.0
      %881 = vmatprep.subr.mxu0 0.0
      %882 = vmatpush2.msra.mxu0 0.0
      %883 = vmatprep.subr.mxu0 0.0
      %884 = vmatpush2.msra.mxu0 0.0
      %885 = vmatprep.subr.mxu0 0.0
      %886 = vmatpush2.msra.mxu0 0.0
      %887 = vmatprep.subr.mxu0 0.0
      %888 = vmatpush2.msra.mxu0 0.0
      %889 = vmatprep.mubr.f32.mxu0 0.0
      %890 = vmatmul.mubr.f32.gmra.mxu0 %v811
      %v891 = vpop.f32.mrf.mxu0
      %v892 = vadd.f32 %v808, %v891
      %v893 = vpop.f32.mrf.mxu0
      %894 = vmatprep.mubr.f32.mxu0 0.0
      %895 = vmatmul.mubr.f32.gmra.mxu0 %v814
      %v896 = vpop.f32.mrf.mxu0
      %v897 = vadd.f32 %v808, %v896
      %v898 = vpop.f32.mrf.mxu0
      %899 = vmatprep.mubr.f32.mxu0 0.0
      %900 = vmatmul.mubr.f32.gmra.mxu0 %v817
      %v901 = vpop.f32.mrf.mxu0
      %v902 = vadd.f32 %v808, %v901
      %v903 = vpop.f32.mrf.mxu0
      %904 = vmatprep.mubr.f32.mxu0 0.0
      %905 = vmatmul.mubr.f32.gmra.mxu0 %v820
      %v906 = vpop.f32.mrf.mxu0
      %v907 = vadd.f32 %v808, %v906
      %v908 = vpop.f32.mrf.mxu0
      %909 = vmatprep.mubr.f32.mxu0 0.0
      %910 = vmatmul.mubr.f32.gmra.mxu0 %v823
      %v911 = vpop.f32.mrf.mxu0
      %v912 = vadd.f32 %v808, %v911
      %v913 = vpop.f32.mrf.mxu0
      %914 = vdwg.mxu0
      %v920 = vcombine.high %v892, %v892
      %v922 = vunpack.c.l.s4 1966171168
      %v923 = vunpack.c.0.s8 %v922
      %v924 = vlaneseq
      %v925 = vshrl.u32 %v924, 7
      %v926 = vsub.s32 %v923, %v925
      %v927 = vrot.slane %v892, %v926
      %v929 = vunpack.c.l.s4 1966171168
      %v930 = vunpack.c.0.s8 %v929
      %v931 = vlaneseq
      %v932 = vshrl.u32 %v931, 7
      %v933 = vsub.s32 %v930, %v932
      %v934 = vrot.slane %v920, %v933
      %v935 = vcombine.high %v927, %v927
      %v936 = vcombine.high %v934, %v934
      %v938 = vunpack.c.l.s4 1966171168
      %v939 = vunpack.c.0.s8 %v938
      %v940 = vlaneseq
      %v941 = vshrl.u32 %v940, 7
      %v942 = vsub.s32 %v939, %v941
      %v943 = vrot.slane %v927, %v942
      %v945 = vunpack.c.l.s4 1966171168
      %v946 = vunpack.c.0.s8 %v945
      %v947 = vlaneseq
      %v948 = vshrl.u32 %v947, 7
      %v949 = vsub.s32 %v946, %v948
      %v950 = vrot.slane %v934, %v949
      %v952 = vunpack.c.l.s4 1966171168
      %v953 = vunpack.c.0.s8 %v952
      %v954 = vlaneseq
      %v955 = vshrl.u32 %v954, 7
      %v956 = vsub.s32 %v953, %v955
      %v957 = vrot.slane %v935, %v956
      %v959 = vunpack.c.l.s4 1966171168
      %v960 = vunpack.c.0.s8 %v959
      %v961 = vlaneseq
      %v962 = vshrl.u32 %v961, 7
      %v963 = vsub.s32 %v960, %v962
      %v964 = vrot.slane %v936, %v963
      %v965 = vcombine.high %v943, %v943
      %v966 = vcombine.high %v950, %v950
      %v967 = vcombine.high %v957, %v957
      %v968 = vcombine.high %v964, %v964
      %v969 = vcombine.high %v897, %v897
      %v971 = vunpack.c.l.s4 1966171168
      %v972 = vunpack.c.0.s8 %v971
      %v973 = vlaneseq
      %v974 = vshrl.u32 %v973, 7
      %v975 = vsub.s32 %v972, %v974
      %v976 = vrot.slane %v897, %v975
      %v978 = vunpack.c.l.s4 1966171168
      %v979 = vunpack.c.0.s8 %v978
      %v980 = vlaneseq
      %v981 = vshrl.u32 %v980, 7
      %v982 = vsub.s32 %v979, %v981
      %v983 = vrot.slane %v969, %v982
      %v984 = vcombine.high %v976, %v976
      %v985 = vcombine.high %v983, %v983
      %v987 = vunpack.c.l.s4 1966171168
      %v988 = vunpack.c.0.s8 %v987
      %v989 = vlaneseq
      %v990 = vshrl.u32 %v989, 7
      %v991 = vsub.s32 %v988, %v990
      %v992 = vrot.slane %v976, %v991
      %v994 = vunpack.c.l.s4 1966171168
      %v995 = vunpack.c.0.s8 %v994
      %v996 = vlaneseq
      %v997 = vshrl.u32 %v996, 7
      %v998 = vsub.s32 %v995, %v997
      %v999 = vrot.slane %v983, %v998
      %v1001 = vunpack.c.l.s4 1966171168
      %v1002 = vunpack.c.0.s8 %v1001
      %v1003 = vlaneseq
      %v1004 = vshrl.u32 %v1003, 7
      %v1005 = vsub.s32 %v1002, %v1004
      %v1006 = vrot.slane %v984, %v1005
      %v1008 = vunpack.c.l.s4 1966171168
      %v1009 = vunpack.c.0.s8 %v1008
      %v1010 = vlaneseq
      %v1011 = vshrl.u32 %v1010, 7
      %v1012 = vsub.s32 %v1009, %v1011
      %v1013 = vrot.slane %v985, %v1012
      %v1014 = vcombine.high %v992, %v992
      %v1015 = vcombine.high %v999, %v999
      %v1016 = vcombine.high %v1006, %v1006
      %v1017 = vcombine.high %v1013, %v1013
      %v1018 = vcombine.high %v902, %v902
      %v1020 = vunpack.c.l.s4 1966171168
      %v1021 = vunpack.c.0.s8 %v1020
      %v1022 = vlaneseq
      %v1023 = vshrl.u32 %v1022, 7
      %v1024 = vsub.s32 %v1021, %v1023
      %v1025 = vrot.slane %v902, %v1024
      %v1027 = vunpack.c.l.s4 1966171168
      %v1028 = vunpack.c.0.s8 %v1027
      %v1029 = vlaneseq
      %v1030 = vshrl.u32 %v1029, 7
      %v1031 = vsub.s32 %v1028, %v1030
      %v1032 = vrot.slane %v1018, %v1031
      %v1033 = vcombine.high %v1025, %v1025
      %v1034 = vcombine.high %v1032, %v1032
      %v1036 = vunpack.c.l.s4 1966171168
      %v1037 = vunpack.c.0.s8 %v1036
      %v1038 = vlaneseq
      %v1039 = vshrl.u32 %v1038, 7
      %v1040 = vsub.s32 %v1037, %v1039
      %v1041 = vrot.slane %v1025, %v1040
      %v1043 = vunpack.c.l.s4 1966171168
      %v1044 = vunpack.c.0.s8 %v1043
      %v1045 = vlaneseq
      %v1046 = vshrl.u32 %v1045, 7
      %v1047 = vsub.s32 %v1044, %v1046
      %v1048 = vrot.slane %v1032, %v1047
      %v1050 = vunpack.c.l.s4 1966171168
      %v1051 = vunpack.c.0.s8 %v1050
      %v1052 = vlaneseq
      %v1053 = vshrl.u32 %v1052, 7
      %v1054 = vsub.s32 %v1051, %v1053
      %v1055 = vrot.slane %v1033, %v1054
      %v1057 = vunpack.c.l.s4 1966171168
      %v1058 = vunpack.c.0.s8 %v1057
      %v1059 = vlaneseq
      %v1060 = vshrl.u32 %v1059, 7
      %v1061 = vsub.s32 %v1058, %v1060
      %v1062 = vrot.slane %v1034, %v1061
      %v1063 = vcombine.high %v1041, %v1041
      %v1064 = vcombine.high %v1048, %v1048
      %v1065 = vcombine.high %v1055, %v1055
      %v1066 = vcombine.high %v1062, %v1062
      %v1067 = vcombine.high %v907, %v907
      %v1069 = vunpack.c.l.s4 1966171168
      %v1070 = vunpack.c.0.s8 %v1069
      %v1071 = vlaneseq
      %v1072 = vshrl.u32 %v1071, 7
      %v1073 = vsub.s32 %v1070, %v1072
      %v1074 = vrot.slane %v907, %v1073
      %v1076 = vunpack.c.l.s4 1966171168
      %v1077 = vunpack.c.0.s8 %v1076
      %v1078 = vlaneseq
      %v1079 = vshrl.u32 %v1078, 7
      %v1080 = vsub.s32 %v1077, %v1079
      %v1081 = vrot.slane %v1067, %v1080
      %v1082 = vcombine.high %v1074, %v1074
      %v1083 = vcombine.high %v1081, %v1081
      %v1085 = vunpack.c.l.s4 1966171168
      %v1086 = vunpack.c.0.s8 %v1085
      %v1087 = vlaneseq
      %v1088 = vshrl.u32 %v1087, 7
      %v1089 = vsub.s32 %v1086, %v1088
      %v1090 = vrot.slane %v1074, %v1089
      %v1092 = vunpack.c.l.s4 1966171168
      %v1093 = vunpack.c.0.s8 %v1092
      %v1094 = vlaneseq
      %v1095 = vshrl.u32 %v1094, 7
      %v1096 = vsub.s32 %v1093, %v1095
      %v1097 = vrot.slane %v1081, %v1096
      %v1099 = vunpack.c.l.s4 1966171168
      %v1100 = vunpack.c.0.s8 %v1099
      %v1101 = vlaneseq
      %v1102 = vshrl.u32 %v1101, 7
      %v1103 = vsub.s32 %v1100, %v1102
      %v1104 = vrot.slane %v1082, %v1103
      %v1106 = vunpack.c.l.s4 1966171168
      %v1107 = vunpack.c.0.s8 %v1106
      %v1108 = vlaneseq
      %v1109 = vshrl.u32 %v1108, 7
      %v1110 = vsub.s32 %v1107, %v1109
      %v1111 = vrot.slane %v1083, %v1110
      %v1112 = vcombine.high %v1090, %v1090
      %v1113 = vcombine.high %v1097, %v1097
      %v1114 = vcombine.high %v1104, %v1104
      %v1115 = vcombine.high %v1111, %v1111
      %v1117 = vunpack.c.l.s4 1966171168
      %v1118 = vunpack.c.0.s8 %v1117
      %v1119 = vlaneseq
      %v1120 = vshrl.u32 %v1119, 7
      %v1121 = vsub.s32 %v1118, %v1120
      %v1122 = vrot.slane %v912, %v1121
      %v1123 = vcombine.high %v1122, %v1122
      %v1125 = vunpack.c.l.s4 1966171168
      %v1126 = vunpack.c.0.s8 %v1125
      %v1127 = vlaneseq
      %v1128 = vshrl.u32 %v1127, 7
      %v1129 = vsub.s32 %v1126, %v1128
      %v1130 = vrot.slane %v1122, %v1129
      %v1132 = vunpack.c.l.s4 1966171168
      %v1133 = vunpack.c.0.s8 %v1132
      %v1134 = vlaneseq
      %v1135 = vshrl.u32 %v1134, 7
      %v1136 = vsub.s32 %v1133, %v1135
      %v1137 = vrot.slane %v1123, %v1136
      %v1138 = vcombine.low %v943, %v957
      %v1139 = vcombine.low %v965, %v967
      %v1140 = vcombine.low %v950, %v964
      %v1141 = vcombine.low %v966, %v968
      %v1143 = vunpack.c.l.s4 1966171168
      %v1144 = vunpack.c.0.s8 %v1143
      %v1145 = vlaneseq
      %v1146 = vshrl.u32 %v1145, 7
      %v1147 = vsub.s32 %v1144, %v1146
      %v1148 = vrot.slane %v1138, %v1147
      %v1150 = vunpack.c.l.s4 1966171168
      %v1151 = vunpack.c.0.s8 %v1150
      %v1152 = vlaneseq
      %v1153 = vshrl.u32 %v1152, 7
      %v1154 = vsub.s32 %v1151, %v1153
      %v1155 = vrot.slane %v1139, %v1154
      %v1157 = vunpack.c.l.s4 1966171168
      %v1158 = vunpack.c.0.s8 %v1157
      %v1159 = vlaneseq
      %v1160 = vshrl.u32 %v1159, 7
      %v1161 = vsub.s32 %v1158, %v1160
      %v1162 = vrot.slane %v1140, %v1161
      %v1164 = vunpack.c.l.s4 1966171168
      %v1165 = vunpack.c.0.s8 %v1164
      %v1166 = vlaneseq
      %v1167 = vshrl.u32 %v1166, 7
      %v1168 = vsub.s32 %v1165, %v1167
      %v1169 = vrot.slane %v1141, %v1168
      %v1170 = vcombine.low %v1148, %v1155
      %v1171 = vcombine.low %v1162, %v1169
      %v1173 = vunpack.c.l.s4 1966171168
      %v1174 = vunpack.c.0.s8 %v1173
      %v1175 = vlaneseq
      %v1176 = vshrl.u32 %v1175, 7
      %v1177 = vsub.s32 %v1174, %v1176
      %v1178 = vrot.slane %v1170, %v1177
      %v1180 = vunpack.c.l.s4 1966171168
      %v1181 = vunpack.c.0.s8 %v1180
      %v1182 = vlaneseq
      %v1183 = vshrl.u32 %v1182, 7
      %v1184 = vsub.s32 %v1181, %v1183
      %v1185 = vrot.slane %v1171, %v1184
      %v1186 = vcombine.low %v1178, %v1185
      %v1187 = vcombine.low %v992, %v1006
      %v1188 = vcombine.low %v1014, %v1016
      %v1189 = vcombine.low %v999, %v1013
      %v1190 = vcombine.low %v1015, %v1017
      %v1192 = vunpack.c.l.s4 1966171168
      %v1193 = vunpack.c.0.s8 %v1192
      %v1194 = vlaneseq
      %v1195 = vshrl.u32 %v1194, 7
      %v1196 = vsub.s32 %v1193, %v1195
      %v1197 = vrot.slane %v1187, %v1196
      %v1199 = vunpack.c.l.s4 1966171168
      %v1200 = vunpack.c.0.s8 %v1199
      %v1201 = vlaneseq
      %v1202 = vshrl.u32 %v1201, 7
      %v1203 = vsub.s32 %v1200, %v1202
      %v1204 = vrot.slane %v1188, %v1203
      %v1206 = vunpack.c.l.s4 1966171168
      %v1207 = vunpack.c.0.s8 %v1206
      %v1208 = vlaneseq
      %v1209 = vshrl.u32 %v1208, 7
      %v1210 = vsub.s32 %v1207, %v1209
      %v1211 = vrot.slane %v1189, %v1210
      %v1213 = vunpack.c.l.s4 1966171168
      %v1214 = vunpack.c.0.s8 %v1213
      %v1215 = vlaneseq
      %v1216 = vshrl.u32 %v1215, 7
      %v1217 = vsub.s32 %v1214, %v1216
      %v1218 = vrot.slane %v1190, %v1217
      %v1219 = vcombine.low %v1197, %v1204
      %v1220 = vcombine.low %v1211, %v1218
      %v1222 = vunpack.c.l.s4 1966171168
      %v1223 = vunpack.c.0.s8 %v1222
      %v1224 = vlaneseq
      %v1225 = vshrl.u32 %v1224, 7
      %v1226 = vsub.s32 %v1223, %v1225
      %v1227 = vrot.slane %v1219, %v1226
      %v1229 = vunpack.c.l.s4 1966171168
      %v1230 = vunpack.c.0.s8 %v1229
      %v1231 = vlaneseq
      %v1232 = vshrl.u32 %v1231, 7
      %v1233 = vsub.s32 %v1230, %v1232
      %v1234 = vrot.slane %v1220, %v1233
      %v1235 = vcombine.low %v1227, %v1234
      %v1237 = vunpack.c.l.s4 1966171168
      %v1238 = vunpack.c.0.s8 %v1237
      %v1239 = vlaneseq
      %v1240 = vshrl.u32 %v1239, 7
      %v1241 = vsub.s32 %v1238, %v1240
      %v1242 = vrot.slane %v1041, %v1241
      %v1244 = vunpack.c.l.s4 1966171168
      %v1245 = vunpack.c.0.s8 %v1244
      %v1246 = vlaneseq
      %v1247 = vshrl.u32 %v1246, 7
      %v1248 = vsub.s32 %v1245, %v1247
      %v1249 = vrot.slane %v1242, %v1248
      %1250 = vrot.lane.b32.xlu0 %v1186, 96
      %v1251 = vpop.permute.xlu0 %1250
      %1252 = vrot.lane.b32.xlu0 %v1235, 96
      %v1253 = vpop.permute.xlu0 %1252
      %1254 = vrot.lane.b32.xlu0 %v1249, 96
      %v1255 = vpop.permute.xlu0 %1254
      %vm1256 = vcmask 64512
      %v1257 = vsel %vm1256, %v1186, 0
      %v1259 = vsel %vm1256, %v1235, 0
      %v1261 = vsel %vm1256, %v1249, 0
      %v1263 = vsel %vm1256, %v1251, 0
      %v1265 = vsel %vm1256, %v1253, 0
      %v1267 = vsel %vm1256, %v1255, 0
      %1269 = vmatprep.subr.mxu0 0.0
      %1270 = vmatpush1.xpose.msra.mxu0 0.0
      %1271 = vmatprep.subr.mxu0 0.0
      %1272 = vmatpush1.xpose.msra.mxu0 0.0
      %1273 = vmatprep.subr.mxu0 0.0
      %1274 = vmatpush1.xpose.msra.mxu0 0.0
      %1275 = vmatprep.subr.mxu0 0.0
      %1276 = vmatpush1.xpose.msra.mxu0 0.0
      %1277 = vmatprep.subr.mxu0 0.0
      %1278 = vmatpush1.xpose.msra.mxu0 0.0
      %1279 = vmatprep.subr.mxu0 0.0
      %1280 = vmatpush1.xpose.msra.mxu0 0.0
      %1281 = vmatprep.subr.mxu0 0.0
      %1282 = vmatpush1.xpose.msra.mxu0 0.0
      %1283 = vmatprep.subr.mxu0 0.0
      %1284 = vmatpush1.xpose.msra.mxu0 0.0
      %1285 = vmatprep.subr.mxu0 0.0
      %1286 = vmatpush1.xpose.msra.mxu0 0.0
      %1287 = vmatprep.subr.mxu0 0.0
      %1288 = vmatpush1.xpose.msra.mxu0 0.0
      %1289 = vmatprep.subr.mxu0 0.0
      %1290 = vmatpush1.xpose.msra.mxu0 0.0
      %1291 = vmatprep.subr.mxu0 0.0
      %1292 = vmatpush1.xpose.msra.mxu0 0.0
      %1293 = vmatprep.subr.mxu0 0.0
      %1294 = vmatpush1.xpose.msra.mxu0 0.0
      %1295 = vmatprep.subr.mxu0 0.0
      %1296 = vmatpush1.xpose.msra.mxu0 %v1267
      %1297 = vmatprep.subr.mxu0 0.0
      %1298 = vmatpush1.xpose.msra.mxu0 %v1265
      %1299 = vmatprep.subr.mxu0 0.0
      %1300 = vmatpush1.xpose.msra.mxu0 %v1263
      %1301 = vmatprep.subr.mxu0 0.0
      %1302 = vmatpush2.xpose.msra.mxu0 0.0
      %1303 = vmatprep.subr.mxu0 0.0
      %1304 = vmatpush2.xpose.msra.mxu0 0.0
      %1305 = vmatprep.subr.mxu0 0.0
      %1306 = vmatpush2.xpose.msra.mxu0 0.0
      %1307 = vmatprep.subr.mxu0 0.0
      %1308 = vmatpush2.xpose.msra.mxu0 0.0
      %1309 = vmatprep.subr.mxu0 0.0
      %1310 = vmatpush2.xpose.msra.mxu0 0.0
      %1311 = vmatprep.subr.mxu0 0.0
      %1312 = vmatpush2.xpose.msra.mxu0 0.0
      %1313 = vmatprep.subr.mxu0 0.0
      %1314 = vmatpush2.xpose.msra.mxu0 0.0
      %1315 = vmatprep.subr.mxu0 0.0
      %1316 = vmatpush2.xpose.msra.mxu0 0.0
      %1317 = vmatprep.subr.mxu0 0.0
      %1318 = vmatpush2.xpose.msra.mxu0 0.0
      %1319 = vmatprep.subr.mxu0 0.0
      %1320 = vmatpush2.xpose.msra.mxu0 0.0
      %1321 = vmatprep.subr.mxu0 0.0
      %1322 = vmatpush2.xpose.msra.mxu0 0.0
      %1323 = vmatprep.subr.mxu0 0.0
      %1324 = vmatpush2.xpose.msra.mxu0 0.0
      %1325 = vmatprep.subr.mxu0 0.0
      %1326 = vmatpush2.xpose.msra.mxu0 0.0
      %1327 = vmatprep.subr.mxu0 0.0
      %1328 = vmatpush2.xpose.msra.mxu0 0.0
      %1329 = vmatprep.subr.mxu0 0.0
      %1330 = vmatpush2.xpose.msra.mxu0 0.0
      %1331 = vmatprep.subr.mxu0 0.0
      %1332 = vmatpush2.xpose.msra.mxu0 0.0
      %1333 = vmatprep.mubr.f32.mxu0 0.0
      %1334 = vmatmul.mubr.f32.gmra.mxu0 %v1257
      %v1335 = vpop.f32.mrf.mxu0
      %v1336 = vadd.f32 0.0, %v1335
      %v1337 = vpop.f32.mrf.mxu0
      %1338 = vmatprep.mubr.f32.mxu0 0.0
      %1339 = vmatmul.mubr.f32.gmra.mxu0 %v1259
      %v1340 = vpop.f32.mrf.mxu0
      %v1341 = vadd.f32 0.0, %v1340
      %v1342 = vpop.f32.mrf.mxu0
      %1343 = vmatprep.mubr.f32.mxu0 0.0
      %1344 = vmatmul.mubr.f32.gmra.mxu0 %v1261
      %v1345 = vpop.f32.mrf.mxu0
      %v1346 = vadd.f32 0.0, %v1345
      %v1347 = vpop.f32.mrf.mxu0
      %1348 = vdwg.mxu0
      %v1349 = vcombine.low %v1055, %v1063
      %v1350 = vcombine.low %v1065, %v1048
      %v1351 = vcombine.low %v1062, %v1064
      %v1352 = vcombine.low %v1066, %v1090
      %v1354 = vunpack.c.l.s4 1966171168
      %v1355 = vunpack.c.0.s8 %v1354
      %v1356 = vlaneseq
      %v1357 = vshrl.u32 %v1356, 7
      %v1358 = vsub.s32 %v1355, %v1357
      %v1359 = vrot.slane %v1349, %v1358
      %v1361 = vunpack.c.l.s4 1966171168
      %v1362 = vunpack.c.0.s8 %v1361
      %v1363 = vlaneseq
      %v1364 = vshrl.u32 %v1363, 7
      %v1365 = vsub.s32 %v1362, %v1364
      %v1366 = vrot.slane %v1350, %v1365
      %v1368 = vunpack.c.l.s4 1966171168
      %v1369 = vunpack.c.0.s8 %v1368
      %v1370 = vlaneseq
      %v1371 = vshrl.u32 %v1370, 7
      %v1372 = vsub.s32 %v1369, %v1371
      %v1373 = vrot.slane %v1351, %v1372
      %v1375 = vunpack.c.l.s4 1966171168
      %v1376 = vunpack.c.0.s8 %v1375
      %v1377 = vlaneseq
      %v1378 = vshrl.u32 %v1377, 7
      %v1379 = vsub.s32 %v1376, %v1378
      %v1380 = vrot.slane %v1352, %v1379
      %v1381 = vcombine.low %v1359, %v1366
      %v1382 = vcombine.low %v1373, %v1380
      %v1384 = vunpack.c.l.s4 1966171168
      %v1385 = vunpack.c.0.s8 %v1384
      %v1386 = vlaneseq
      %v1387 = vshrl.u32 %v1386, 7
      %v1388 = vsub.s32 %v1385, %v1387
      %v1389 = vrot.slane %v1381, %v1388
      %v1391 = vunpack.c.l.s4 1966171168
      %v1392 = vunpack.c.0.s8 %v1391
      %v1393 = vlaneseq
      %v1394 = vshrl.u32 %v1393, 7
      %v1395 = vsub.s32 %v1392, %v1394
      %v1396 = vrot.slane %v1382, %v1395
      %v1397 = vcombine.low %v1389, %v1396
      %v1398 = vcombine.low %v1104, %v1112
      %v1399 = vcombine.low %v1114, %v1097
      %v1400 = vcombine.low %v1111, %v1113
      %v1401 = vcombine.low %v1115, %v1130
      %v1403 = vunpack.c.l.s4 1966171168
      %v1404 = vunpack.c.0.s8 %v1403
      %v1405 = vlaneseq
      %v1406 = vshrl.u32 %v1405, 7
      %v1407 = vsub.s32 %v1404, %v1406
      %v1408 = vrot.slane %v1398, %v1407
      %v1410 = vunpack.c.l.s4 1966171168
      %v1411 = vunpack.c.0.s8 %v1410
      %v1412 = vlaneseq
      %v1413 = vshrl.u32 %v1412, 7
      %v1414 = vsub.s32 %v1411, %v1413
      %v1415 = vrot.slane %v1399, %v1414
      %v1417 = vunpack.c.l.s4 1966171168
      %v1418 = vunpack.c.0.s8 %v1417
      %v1419 = vlaneseq
      %v1420 = vshrl.u32 %v1419, 7
      %v1421 = vsub.s32 %v1418, %v1420
      %v1422 = vrot.slane %v1400, %v1421
      %v1424 = vunpack.c.l.s4 1966171168
      %v1425 = vunpack.c.0.s8 %v1424
      %v1426 = vlaneseq
      %v1427 = vshrl.u32 %v1426, 7
      %v1428 = vsub.s32 %v1425, %v1427
      %v1429 = vrot.slane %v1401, %v1428
      %v1430 = vcombine.low %v1408, %v1415
      %v1431 = vcombine.low %v1422, %v1429
      %v1433 = vunpack.c.l.s4 1966171168
      %v1434 = vunpack.c.0.s8 %v1433
      %v1435 = vlaneseq
      %v1436 = vshrl.u32 %v1435, 7
      %v1437 = vsub.s32 %v1434, %v1436
      %v1438 = vrot.slane %v1430, %v1437
      %v1440 = vunpack.c.l.s4 1966171168
      %v1441 = vunpack.c.0.s8 %v1440
      %v1442 = vlaneseq
      %v1443 = vshrl.u32 %v1442, 7
      %v1444 = vsub.s32 %v1441, %v1443
      %v1445 = vrot.slane %v1431, %v1444
      %v1446 = vcombine.low %v1438, %v1445
      %v1448 = vunpack.c.l.s4 1966171168
      %v1449 = vunpack.c.0.s8 %v1448
      %v1450 = vlaneseq
      %v1451 = vshrl.u32 %v1450, 7
      %v1452 = vsub.s32 %v1449, %v1451
      %v1453 = vrot.slane %v1137, %v1452
      %v1455 = vunpack.c.l.s4 1966171168
      %v1456 = vunpack.c.0.s8 %v1455
      %v1457 = vlaneseq
      %v1458 = vshrl.u32 %v1457, 7
      %v1459 = vsub.s32 %v1456, %v1458
      %v1460 = vrot.slane %v1453, %v1459
      %1461 = vrot.lane.b32.xlu0 %v1397, 96
      %v1462 = vpop.permute.xlu0 %1461
      %1463 = vrot.lane.b32.xlu0 %v1446, 96
      %v1464 = vpop.permute.xlu0 %1463
      %1465 = vrot.lane.b32.xlu0 %v1460, 96
      %v1466 = vpop.permute.xlu0 %1465
      %v1467 = vsel %vm1256, %v1397, 0
      %v1469 = vsel %vm1256, %v1446, 0
      %v1471 = vsel %vm1256, %v1460, 0
      %v1473 = vsel %vm1256, %v1462, 0
      %v1475 = vsel %vm1256, %v1464, 0
      %v1477 = vsel %vm1256, %v1466, 0
      %1479 = vmatprep.subr.mxu0 0.0
      %1480 = vmatpush1.xpose.msra.mxu0 0.0
      %1481 = vmatprep.subr.mxu0 0.0
      %1482 = vmatpush1.xpose.msra.mxu0 0.0
      %1483 = vmatprep.subr.mxu0 0.0
      %1484 = vmatpush1.xpose.msra.mxu0 0.0
      %1485 = vmatprep.subr.mxu0 0.0
      %1486 = vmatpush1.xpose.msra.mxu0 0.0
      %1487 = vmatprep.subr.mxu0 0.0
      %1488 = vmatpush1.xpose.msra.mxu0 0.0
      %1489 = vmatprep.subr.mxu0 0.0
      %1490 = vmatpush1.xpose.msra.mxu0 0.0
      %1491 = vmatprep.subr.mxu0 0.0
      %1492 = vmatpush1.xpose.msra.mxu0 0.0
      %1493 = vmatprep.subr.mxu0 0.0
      %1494 = vmatpush1.xpose.msra.mxu0 0.0
      %1495 = vmatprep.subr.mxu0 0.0
      %1496 = vmatpush1.xpose.msra.mxu0 0.0
      %1497 = vmatprep.subr.mxu0 0.0
      %1498 = vmatpush1.xpose.msra.mxu0 0.0
      %1499 = vmatprep.subr.mxu0 0.0
      %1500 = vmatpush1.xpose.msra.mxu0 0.0
      %1501 = vmatprep.subr.mxu0 0.0
      %1502 = vmatpush1.xpose.msra.mxu0 0.0
      %1503 = vmatprep.subr.mxu0 0.0
      %1504 = vmatpush1.xpose.msra.mxu0 0.0
      %1505 = vmatprep.subr.mxu0 0.0
      %1506 = vmatpush1.xpose.msra.mxu0 %v1477
      %1507 = vmatprep.subr.mxu0 0.0
      %1508 = vmatpush1.xpose.msra.mxu0 %v1475
      %1509 = vmatprep.subr.mxu0 0.0
      %1510 = vmatpush1.xpose.msra.mxu0 %v1473
      %1511 = vmatprep.subr.mxu0 0.0
      %1512 = vmatpush2.xpose.msra.mxu0 0.0
      %1513 = vmatprep.subr.mxu0 0.0
      %1514 = vmatpush2.xpose.msra.mxu0 0.0
      %1515 = vmatprep.subr.mxu0 0.0
      %1516 = vmatpush2.xpose.msra.mxu0 0.0
      %1517 = vmatprep.subr.mxu0 0.0
      %1518 = vmatpush2.xpose.msra.mxu0 0.0
      %1519 = vmatprep.subr.mxu0 0.0
      %1520 = vmatpush2.xpose.msra.mxu0 0.0
      %1521 = vmatprep.subr.mxu0 0.0
      %1522 = vmatpush2.xpose.msra.mxu0 0.0
      %1523 = vmatprep.subr.mxu0 0.0
      %1524 = vmatpush2.xpose.msra.mxu0 0.0
      %1525 = vmatprep.subr.mxu0 0.0
      %1526 = vmatpush2.xpose.msra.mxu0 0.0
      %1527 = vmatprep.subr.mxu0 0.0
      %1528 = vmatpush2.xpose.msra.mxu0 0.0
      %1529 = vmatprep.subr.mxu0 0.0
      %1530 = vmatpush2.xpose.msra.mxu0 0.0
      %1531 = vmatprep.subr.mxu0 0.0
      %1532 = vmatpush2.xpose.msra.mxu0 0.0
      %1533 = vmatprep.subr.mxu0 0.0
      %1534 = vmatpush2.xpose.msra.mxu0 0.0
      %1535 = vmatprep.subr.mxu0 0.0
      %1536 = vmatpush2.xpose.msra.mxu0 0.0
      %1537 = vmatprep.subr.mxu0 0.0
      %1538 = vmatpush2.xpose.msra.mxu0 0.0
      %1539 = vmatprep.subr.mxu0 0.0
      %1540 = vmatpush2.xpose.msra.mxu0 0.0
      %1541 = vmatprep.subr.mxu0 0.0
      %1542 = vmatpush2.xpose.msra.mxu0 0.0
      %1543 = vmatprep.mubr.f32.mxu0 0.0
      %1544 = vmatmul.mubr.f32.gmra.mxu0 %v1467
      %v1545 = vpop.f32.mrf.mxu0
      %v1546 = vadd.f32 0.0, %v1545
      %v1547 = vpop.f32.mrf.mxu0
      %1548 = vmatprep.mubr.f32.mxu0 0.0
      %1549 = vmatmul.mubr.f32.gmra.mxu0 %v1469
      %v1550 = vpop.f32.mrf.mxu0
      %v1551 = vadd.f32 0.0, %v1550
      %v1552 = vpop.f32.mrf.mxu0
      %1553 = vmatprep.mubr.f32.mxu0 0.0
      %1554 = vmatmul.mubr.f32.gmra.mxu0 %v1471
      %v1555 = vpop.f32.mrf.mxu0
      %v1556 = vadd.f32 0.0, %v1555
      %v1557 = vpop.f32.mrf.mxu0
      %1558 = vdwg.mxu0
      %vm1559 = vcmask 138240
      %v1560 = vsel %vm1559, %v1336, -inf
      %1561 = vmax.xlane.f32.xlu0 %v1560
      %v1562 = vpop.xlane.xlu0 %1561
      %v1563 = vsel %vm1559, %v1341, -inf
      %1564 = vmax.xlane.f32.xlu0 %v1563
      %v1565 = vpop.xlane.xlu0 %1564
      %vm1566 = vcmask 131072
      %v1567 = vsel %vm1566, %v1346, -inf
      %1568 = vmax.xlane.f32.xlu0 %v1567
      %v1569 = vpop.xlane.xlu0 %1568
      %v1570 = vsel %vm1559, %v1546, -inf
      %1571 = vmax.xlane.f32.xlu0 %v1570
      %v1572 = vpop.xlane.xlu0 %1571
      %v1573 = vsel %vm1559, %v1551, -inf
      %1574 = vmax.xlane.f32.xlu0 %v1573
      %v1575 = vpop.xlane.xlu0 %1574
      %v1576 = vsel %vm1566, %v1556, -inf
      %1577 = vmax.xlane.f32.xlu0 %v1576
      %v1578 = vpop.xlane.xlu0 %1577
      %v1579 = vsub.f32 %v1336, %v1562
      %v1580 = vsub.f32 %v1341, %v1565
      %v1581 = vsub.f32 %v1346, %v1569
      %v1582 = vsub.f32 %v1546, %v1572
      %v1583 = vsub.f32 %v1551, %v1575
      %v1584 = vsub.f32 %v1556, %v1578
      %v1585 = vmul.f32 %v1579, 1.442695
      %v1586 = vpow.pop %v1585
      %v1587 = vmul.f32 %v1580, 1.442695
      %v1588 = vpow.pop %v1587
      %v1589 = vmul.f32 %v1581, 1.442695
      %v1590 = vpow.pop %v1589
      %v1591 = vmul.f32 %v1582, 1.442695
      %v1592 = vpow.pop %v1591
      %v1593 = vmul.f32 %v1583, 1.442695
      %v1594 = vpow.pop %v1593
      %v1595 = vmul.f32 %v1584, 1.442695
      %v1596 = vpow.pop %v1595
      %v1597 = vsel %vm1559, %v1586, 0.0
      %1598 = vadd.xlane.f32.xlu0 %v1597
      %v1599 = vpop.xlane.xlu0 %1598
      %v1600 = vsel %vm1559, %v1588, 0.0
      %1601 = vadd.xlane.f32.xlu0 %v1600
      %v1602 = vpop.xlane.xlu0 %1601
      %v1603 = vsel %vm1566, %v1590, 0.0
      %1604 = vadd.xlane.f32.xlu0 %v1603
      %v1605 = vpop.xlane.xlu0 %1604
      %v1606 = vsel %vm1559, %v1592, 0.0
      %1607 = vadd.xlane.f32.xlu0 %v1606
      %v1608 = vpop.xlane.xlu0 %1607
      %v1609 = vsel %vm1559, %v1594, 0.0
      %1610 = vadd.xlane.f32.xlu0 %v1609
      %v1611 = vpop.xlane.xlu0 %1610
      %v1612 = vsel %vm1566, %v1596, 0.0
      %1613 = vadd.xlane.f32.xlu0 %v1612
      %v1614 = vpop.xlane.xlu0 %1613
      %v1615 = vrcp.pop %v1599
      %v1616 = vrcp.pop %v1602
      %v1617 = vrcp.pop %v1605
      %v1618 = vrcp.pop %v1608
      %v1619 = vrcp.pop %v1611
      %v1620 = vrcp.pop %v1614
      %v1621 = vmul.f32 %v1586, %v1615
      %v1622 = vmul.f32 %v1588, %v1616
      %v1623 = vmul.f32 %v1590, %v1617
      %v1624 = vmul.f32 %v1592, %v1618
      %v1625 = vmul.f32 %v1594, %v1619
      %v1626 = vmul.f32 %v1596, %v1620
      %1627 = vrot.lane.b32.xlu0 %v1186, 64
      %v1628 = vpop.permute.xlu0 %1627
      %1629 = vrot.lane.b32.xlu0 %v1235, 64
      %v1630 = vpop.permute.xlu0 %1629
      %1631 = vrot.lane.b32.xlu0 %v1249, 64
      %v1632 = vpop.permute.xlu0 %1631
      %v1636 = vsel %vm1559, %v1621, 0
      %v1639 = vsel %vm1559, %v1622, 0
      %v1642 = vsel %vm1559, %v1623, 0
      %vm1644 = vcmask 1040384
      %v1645 = vsel %vm1644, %v1632, 0
      %1647 = vmatprep.subr.mxu0 0.0
      %1648 = vmatpush1.msra.mxu0 0.0
      %1649 = vmatprep.subr.mxu0 0.0
      %1650 = vmatpush1.msra.mxu0 0.0
      %1651 = vmatprep.subr.mxu0 0.0
      %1652 = vmatpush1.msra.mxu0 0.0
      %1653 = vmatprep.subr.mxu0 0.0
      %1654 = vmatpush1.msra.mxu0 0.0
      %1655 = vmatprep.subr.mxu0 0.0
      %1656 = vmatpush1.msra.mxu0 0.0
      %1657 = vmatprep.subr.mxu0 0.0
      %1658 = vmatpush1.msra.mxu0 0.0
      %1659 = vmatprep.subr.mxu0 0.0
      %1660 = vmatpush1.msra.mxu0 0.0
      %1661 = vmatprep.subr.mxu0 0.0
      %1662 = vmatpush1.msra.mxu0 0.0
      %1663 = vmatprep.subr.mxu0 0.0
      %1664 = vmatpush1.msra.mxu0 0.0
      %1665 = vmatprep.subr.mxu0 0.0
      %1666 = vmatpush1.msra.mxu0 0.0
      %1667 = vmatprep.subr.mxu0 0.0
      %1668 = vmatpush1.msra.mxu0 0.0
      %1669 = vmatprep.subr.mxu0 0.0
      %1670 = vmatpush1.msra.mxu0 0.0
      %1671 = vmatprep.subr.mxu0 0.0
      %1672 = vmatpush1.msra.mxu0 0.0
      %1673 = vmatprep.subr.mxu0 0.0
      %1674 = vmatpush1.msra.mxu0 %v1645
      %1675 = vmatprep.subr.mxu0 0.0
      %1676 = vmatpush1.msra.mxu0 %v1630
      %1677 = vmatprep.subr.mxu0 0.0
      %1678 = vmatpush1.msra.mxu0 %v1628
      %1679 = vmatprep.subr.mxu0 0.0
      %1680 = vmatpush2.msra.mxu0 0.0
      %1681 = vmatprep.subr.mxu0 0.0
      %1682 = vmatpush2.msra.mxu0 0.0
      %1683 = vmatprep.subr.mxu0 0.0
      %1684 = vmatpush2.msra.mxu0 0.0
      %1685 = vmatprep.subr.mxu0 0.0
      %1686 = vmatpush2.msra.mxu0 0.0
      %1687 = vmatprep.subr.mxu0 0.0
      %1688 = vmatpush2.msra.mxu0 0.0
      %1689 = vmatprep.subr.mxu0 0.0
      %1690 = vmatpush2.msra.mxu0 0.0
      %1691 = vmatprep.subr.mxu0 0.0
      %1692 = vmatpush2.msra.mxu0 0.0
      %1693 = vmatprep.subr.mxu0 0.0
      %1694 = vmatpush2.msra.mxu0 0.0
      %1695 = vmatprep.subr.mxu0 0.0
      %1696 = vmatpush2.msra.mxu0 0.0
      %1697 = vmatprep.subr.mxu0 0.0
      %1698 = vmatpush2.msra.mxu0 0.0
      %1699 = vmatprep.subr.mxu0 0.0
      %1700 = vmatpush2.msra.mxu0 0.0
      %1701 = vmatprep.subr.mxu0 0.0
      %1702 = vmatpush2.msra.mxu0 0.0
      %1703 = vmatprep.subr.mxu0 0.0
      %1704 = vmatpush2.msra.mxu0 0.0
      %1705 = vmatprep.subr.mxu0 0.0
      %1706 = vmatpush2.msra.mxu0 0.0
      %1707 = vmatprep.subr.mxu0 0.0
      %1708 = vmatpush2.msra.mxu0 0.0
      %1709 = vmatprep.subr.mxu0 0.0
      %1710 = vmatpush2.msra.mxu0 0.0
      %1711 = vmatprep.mubr.f32.mxu0 0.0
      %1712 = vmatmul.mubr.f32.gmra.mxu0 %v1636
      %v1713 = vpop.f32.mrf.mxu0
      %v1714 = vadd.f32 0.0, %v1713
      %v1715 = vpop.f32.mrf.mxu0
      %1716 = vmatprep.mubr.f32.mxu0 0.0
      %1717 = vmatmul.mubr.f32.gmra.mxu0 %v1639
      %v1718 = vpop.f32.mrf.mxu0
      %v1719 = vadd.f32 0.0, %v1718
      %v1720 = vpop.f32.mrf.mxu0
      %1721 = vmatprep.mubr.f32.mxu0 0.0
      %1722 = vmatmul.mubr.f32.gmra.mxu0 %v1642
      %v1723 = vpop.f32.mrf.mxu0
      %v1724 = vadd.f32 0.0, %v1723
      %v1725 = vpop.f32.mrf.mxu0
      %1726 = vdwg.mxu0
      %1727 = vrot.lane.b32.xlu0 %v1397, 64
      %v1728 = vpop.permute.xlu0 %1727
      %1729 = vrot.lane.b32.xlu0 %v1446, 64
      %v1730 = vpop.permute.xlu0 %1729
      %1731 = vrot.lane.b32.xlu0 %v1460, 64
      %v1732 = vpop.permute.xlu0 %1731
      %v1736 = vsel %vm1559, %v1624, 0
      %v1739 = vsel %vm1559, %v1625, 0
      %v1742 = vsel %vm1559, %v1626, 0
      %v1744 = vsel %vm1644, %v1732, 0
      %1746 = vmatprep.subr.mxu0 0.0
      %1747 = vmatpush1.msra.mxu0 0.0
      %1748 = vmatprep.subr.mxu0 0.0
      %1749 = vmatpush1.msra.mxu0 0.0
      %1750 = vmatprep.subr.mxu0 0.0
      %1751 = vmatpush1.msra.mxu0 0.0
      %1752 = vmatprep.subr.mxu0 0.0
      %1753 = vmatpush1.msra.mxu0 0.0
      %1754 = vmatprep.subr.mxu0 0.0
      %1755 = vmatpush1.msra.mxu0 0.0
      %1756 = vmatprep.subr.mxu0 0.0
      %1757 = vmatpush1.msra.mxu0 0.0
      %1758 = vmatprep.subr.mxu0 0.0
      %1759 = vmatpush1.msra.mxu0 0.0
      %1760 = vmatprep.subr.mxu0 0.0
      %1761 = vmatpush1.msra.mxu0 0.0
      %1762 = vmatprep.subr.mxu0 0.0
      %1763 = vmatpush1.msra.mxu0 0.0
      %1764 = vmatprep.subr.mxu0 0.0
      %1765 = vmatpush1.msra.mxu0 0.0
      %1766 = vmatprep.subr.mxu0 0.0
      %1767 = vmatpush1.msra.mxu0 0.0
      %1768 = vmatprep.subr.mxu0 0.0
      %1769 = vmatpush1.msra.mxu0 0.0
      %1770 = vmatprep.subr.mxu0 0.0
      %1771 = vmatpush1.msra.mxu0 0.0
      %1772 = vmatprep.subr.mxu0 0.0
      %1773 = vmatpush1.msra.mxu0 %v1744
      %1774 = vmatprep.subr.mxu0 0.0
      %1775 = vmatpush1.msra.mxu0 %v1730
      %1776 = vmatprep.subr.mxu0 0.0
      %1777 = vmatpush1.msra.mxu0 %v1728
      %1778 = vmatprep.subr.mxu0 0.0
      %1779 = vmatpush2.msra.mxu0 0.0
      %1780 = vmatprep.subr.mxu0 0.0
      %1781 = vmatpush2.msra.mxu0 0.0
      %1782 = vmatprep.subr.mxu0 0.0
      %1783 = vmatpush2.msra.mxu0 0.0
      %1784 = vmatprep.subr.mxu0 0.0
      %1785 = vmatpush2.msra.mxu0 0.0
      %1786 = vmatprep.subr.mxu0 0.0
      %1787 = vmatpush2.msra.mxu0 0.0
      %1788 = vmatprep.subr.mxu0 0.0
      %1789 = vmatpush2.msra.mxu0 0.0
      %1790 = vmatprep.subr.mxu0 0.0
      %1791 = vmatpush2.msra.mxu0 0.0
      %1792 = vmatprep.subr.mxu0 0.0
      %1793 = vmatpush2.msra.mxu0 0.0
      %1794 = vmatprep.subr.mxu0 0.0
      %1795 = vmatpush2.msra.mxu0 0.0
      %1796 = vmatprep.subr.mxu0 0.0
      %1797 = vmatpush2.msra.mxu0 0.0
      %1798 = vmatprep.subr.mxu0 0.0
      %1799 = vmatpush2.msra.mxu0 0.0
      %1800 = vmatprep.subr.mxu0 0.0
      %1801 = vmatpush2.msra.mxu0 0.0
      %1802 = vmatprep.subr.mxu0 0.0
      %1803 = vmatpush2.msra.mxu0 0.0
      %1804 = vmatprep.subr.mxu0 0.0
      %1805 = vmatpush2.msra.mxu0 0.0
      %1806 = vmatprep.subr.mxu0 0.0
      %1807 = vmatpush2.msra.mxu0 0.0
      %1808 = vmatprep.subr.mxu0 0.0
      %1809 = vmatpush2.msra.mxu0 0.0
      %1810 = vmatprep.mubr.f32.mxu0 0.0
      %1811 = vmatmul.mubr.f32.gmra.mxu0 %v1736
      %v1812 = vpop.f32.mrf.mxu0
      %v1813 = vadd.f32 0.0, %v1812
      %v1814 = vpop.f32.mrf.mxu0
      %1815 = vmatprep.mubr.f32.mxu0 0.0
      %1816 = vmatmul.mubr.f32.gmra.mxu0 %v1739
      %v1817 = vpop.f32.mrf.mxu0
      %v1818 = vadd.f32 0.0, %v1817
      %v1819 = vpop.f32.mrf.mxu0
      %1820 = vmatprep.mubr.f32.mxu0 0.0
      %1821 = vmatmul.mubr.f32.gmra.mxu0 %v1742
      %v1822 = vpop.f32.mrf.mxu0
      %v1823 = vadd.f32 0.0, %v1822
      %v1824 = vpop.f32.mrf.mxu0
      %1825 = vdwg.mxu0
      %1826 = vrot.lane.b32.xlu0 %v1186, 120
      %v1827 = vpop.permute.xlu0 %1826
      %1828 = vrot.lane.b32.xlu0 %v1235, 120
      %v1829 = vpop.permute.xlu0 %1828
      %1830 = vrot.lane.b32.xlu0 %v1249, 120
      %v1831 = vpop.permute.xlu0 %1830
      %1832 = vrot.lane.b32.xlu0 %v1186, 88
      %v1833 = vpop.permute.xlu0 %1832
      %1834 = vrot.lane.b32.xlu0 %v1235, 88
      %v1835 = vpop.permute.xlu0 %1834
      %1836 = vrot.lane.b32.xlu0 %v1249, 88
      %v1837 = vpop.permute.xlu0 %1836
      %v1838 = vsel %vm1256, %v1827, 0
      %v1840 = vsel %vm1256, %v1829, 0
      %v1842 = vsel %vm1256, %v1831, 0
      %v1844 = vsel %vm1256, %v1833, 0
      %v1846 = vsel %vm1256, %v1835, 0
      %v1848 = vsel %vm1256, %v1837, 0
      %1850 = vmatprep.subr.mxu0 0.0
      %1851 = vmatpush1.xpose.msra.mxu0 0.0
      %1852 = vmatprep.subr.mxu0 0.0
      %1853 = vmatpush1.xpose.msra.mxu0 0.0
      %1854 = vmatprep.subr.mxu0 0.0
      %1855 = vmatpush1.xpose.msra.mxu0 0.0
      %1856 = vmatprep.subr.mxu0 0.0
      %1857 = vmatpush1.xpose.msra.mxu0 0.0
      %1858 = vmatprep.subr.mxu0 0.0
      %1859 = vmatpush1.xpose.msra.mxu0 0.0
      %1860 = vmatprep.subr.mxu0 0.0
      %1861 = vmatpush1.xpose.msra.mxu0 0.0
      %1862 = vmatprep.subr.mxu0 0.0
      %1863 = vmatpush1.xpose.msra.mxu0 0.0
      %1864 = vmatprep.subr.mxu0 0.0
      %1865 = vmatpush1.xpose.msra.mxu0 0.0
      %1866 = vmatprep.subr.mxu0 0.0
      %1867 = vmatpush1.xpose.msra.mxu0 0.0
      %1868 = vmatprep.subr.mxu0 0.0
      %1869 = vmatpush1.xpose.msra.mxu0 0.0
      %1870 = vmatprep.subr.mxu0 0.0
      %1871 = vmatpush1.xpose.msra.mxu0 0.0
      %1872 = vmatprep.subr.mxu0 0.0
      %1873 = vmatpush1.xpose.msra.mxu0 0.0
      %1874 = vmatprep.subr.mxu0 0.0
      %1875 = vmatpush1.xpose.msra.mxu0 0.0
      %1876 = vmatprep.subr.mxu0 0.0
      %1877 = vmatpush1.xpose.msra.mxu0 %v1848
      %1878 = vmatprep.subr.mxu0 0.0
      %1879 = vmatpush1.xpose.msra.mxu0 %v1846
      %1880 = vmatprep.subr.mxu0 0.0
      %1881 = vmatpush1.xpose.msra.mxu0 %v1844
      %1882 = vmatprep.subr.mxu0 0.0
      %1883 = vmatpush2.xpose.msra.mxu0 0.0
      %1884 = vmatprep.subr.mxu0 0.0
      %1885 = vmatpush2.xpose.msra.mxu0 0.0
      %1886 = vmatprep.subr.mxu0 0.0
      %1887 = vmatpush2.xpose.msra.mxu0 0.0
      %1888 = vmatprep.subr.mxu0 0.0
      %1889 = vmatpush2.xpose.msra.mxu0 0.0
      %1890 = vmatprep.subr.mxu0 0.0
      %1891 = vmatpush2.xpose.msra.mxu0 0.0
      %1892 = vmatprep.subr.mxu0 0.0
      %1893 = vmatpush2.xpose.msra.mxu0 0.0
      %1894 = vmatprep.subr.mxu0 0.0
      %1895 = vmatpush2.xpose.msra.mxu0 0.0
      %1896 = vmatprep.subr.mxu0 0.0
      %1897 = vmatpush2.xpose.msra.mxu0 0.0
      %1898 = vmatprep.subr.mxu0 0.0
      %1899 = vmatpush2.xpose.msra.mxu0 0.0
      %1900 = vmatprep.subr.mxu0 0.0
      %1901 = vmatpush2.xpose.msra.mxu0 0.0
      %1902 = vmatprep.subr.mxu0 0.0
      %1903 = vmatpush2.xpose.msra.mxu0 0.0
      %1904 = vmatprep.subr.mxu0 0.0
      %1905 = vmatpush2.xpose.msra.mxu0 0.0
      %1906 = vmatprep.subr.mxu0 0.0
      %1907 = vmatpush2.xpose.msra.mxu0 0.0
      %1908 = vmatprep.subr.mxu0 0.0
      %1909 = vmatpush2.xpose.msra.mxu0 0.0
      %1910 = vmatprep.subr.mxu0 0.0
      %1911 = vmatpush2.xpose.msra.mxu0 0.0
      %1912 = vmatprep.subr.mxu0 0.0
      %1913 = vmatpush2.xpose.msra.mxu0 0.0
      %1914 = vmatprep.mubr.f32.mxu0 0.0
      %1915 = vmatmul.mubr.f32.gmra.mxu0 %v1838
      %v1916 = vpop.f32.mrf.mxu0
      %v1917 = vadd.f32 0.0, %v1916
      %v1918 = vpop.f32.mrf.mxu0
      %1919 = vmatprep.mubr.f32.mxu0 0.0
      %1920 = vmatmul.mubr.f32.gmra.mxu0 %v1840
      %v1921 = vpop.f32.mrf.mxu0
      %v1922 = vadd.f32 0.0, %v1921
      %v1923 = vpop.f32.mrf.mxu0
      %1924 = vmatprep.mubr.f32.mxu0 0.0
      %1925 = vmatmul.mubr.f32.gmra.mxu0 %v1842
      %v1926 = vpop.f32.mrf.mxu0
      %v1927 = vadd.f32 0.0, %v1926
      %v1928 = vpop.f32.mrf.mxu0
      %1929 = vdwg.mxu0
      %1930 = vrot.lane.b32.xlu0 %v1397, 120
      %v1931 = vpop.permute.xlu0 %1930
      %1932 = vrot.lane.b32.xlu0 %v1446, 120
      %v1933 = vpop.permute.xlu0 %1932
      %1934 = vrot.lane.b32.xlu0 %v1460, 120
      %v1935 = vpop.permute.xlu0 %1934
      %1936 = vrot.lane.b32.xlu0 %v1397, 88
      %v1937 = vpop.permute.xlu0 %1936
      %1938 = vrot.lane.b32.xlu0 %v1446, 88
      %v1939 = vpop.permute.xlu0 %1938
      %1940 = vrot.lane.b32.xlu0 %v1460, 88
      %v1941 = vpop.permute.xlu0 %1940
      %v1942 = vsel %vm1256, %v1931, 0
      %v1944 = vsel %vm1256, %v1933, 0
      %v1946 = vsel %vm1256, %v1935, 0
      %v1948 = vsel %vm1256, %v1937, 0
      %v1950 = vsel %vm1256, %v1939, 0
      %v1952 = vsel %vm1256, %v1941, 0
      %1954 = vmatprep.subr.mxu0 0.0
      %1955 = vmatpush1.xpose.msra.mxu0 0.0
      %1956 = vmatprep.subr.mxu0 0.0
      %1957 = vmatpush1.xpose.msra.mxu0 0.0
      %1958 = vmatprep.subr.mxu0 0.0
      %1959 = vmatpush1.xpose.msra.mxu0 0.0
      %1960 = vmatprep.subr.mxu0 0.0
      %1961 = vmatpush1.xpose.msra.mxu0 0.0
      %1962 = vmatprep.subr.mxu0 0.0
      %1963 = vmatpush1.xpose.msra.mxu0 0.0
      %1964 = vmatprep.subr.mxu0 0.0
      %1965 = vmatpush1.xpose.msra.mxu0 0.0
      %1966 = vmatprep.subr.mxu0 0.0
      %1967 = vmatpush1.xpose.msra.mxu0 0.0
      %1968 = vmatprep.subr.mxu0 0.0
      %1969 = vmatpush1.xpose.msra.mxu0 0.0
      %1970 = vmatprep.subr.mxu0 0.0
      %1971 = vmatpush1.xpose.msra.mxu0 0.0
      %1972 = vmatprep.subr.mxu0 0.0
      %1973 = vmatpush1.xpose.msra.mxu0 0.0
      %1974 = vmatprep.subr.mxu0 0.0
      %1975 = vmatpush1.xpose.msra.mxu0 0.0
      %1976 = vmatprep.subr.mxu0 0.0
      %1977 = vmatpush1.xpose.msra.mxu0 0.0
      %1978 = vmatprep.subr.mxu0 0.0
      %1979 = vmatpush1.xpose.msra.mxu0 0.0
      %1980 = vmatprep.subr.mxu0 0.0
      %1981 = vmatpush1.xpose.msra.mxu0 %v1952
      %1982 = vmatprep.subr.mxu0 0.0
      %1983 = vmatpush1.xpose.msra.mxu0 %v1950
      %1984 = vmatprep.subr.mxu0 0.0
      %1985 = vmatpush1.xpose.msra.mxu0 %v1948
      %1986 = vmatprep.subr.mxu0 0.0
      %1987 = vmatpush2.xpose.msra.mxu0 0.0
      %1988 = vmatprep.subr.mxu0 0.0
      %1989 = vmatpush2.xpose.msra.mxu0 0.0
      %1990 = vmatprep.subr.mxu0 0.0
      %1991 = vmatpush2.xpose.msra.mxu0 0.0
      %1992 = vmatprep.subr.mxu0 0.0
      %1993 = vmatpush2.xpose.msra.mxu0 0.0
      %1994 = vmatprep.subr.mxu0 0.0
      %1995 = vmatpush2.xpose.msra.mxu0 0.0
      %1996 = vmatprep.subr.mxu0 0.0
      %1997 = vmatpush2.xpose.msra.mxu0 0.0
      %1998 = vmatprep.subr.mxu0 0.0
      %1999 = vmatpush2.xpose.msra.mxu0 0.0
      %2000 = vmatprep.subr.mxu0 0.0
      %2001 = vmatpush2.xpose.msra.mxu0 0.0
      %2002 = vmatprep.subr.mxu0 0.0
      %2003 = vmatpush2.xpose.msra.mxu0 0.0
      %2004 = vmatprep.subr.mxu0 0.0
      %2005 = vmatpush2.xpose.msra.mxu0 0.0
      %2006 = vmatprep.subr.mxu0 0.0
      %2007 = vmatpush2.xpose.msra.mxu0 0.0
      %2008 = vmatprep.subr.mxu0 0.0
      %2009 = vmatpush2.xpose.msra.mxu0 0.0
      %2010 = vmatprep.subr.mxu0 0.0
      %2011 = vmatpush2.xpose.msra.mxu0 0.0
      %2012 = vmatprep.subr.mxu0 0.0
      %2013 = vmatpush2.xpose.msra.mxu0 0.0
      %2014 = vmatprep.subr.mxu0 0.0
      %2015 = vmatpush2.xpose.msra.mxu0 0.0
      %2016 = vmatprep.subr.mxu0 0.0
      %2017 = vmatpush2.xpose.msra.mxu0 0.0
      %2018 = vmatprep.mubr.f32.mxu0 0.0
      %2019 = vmatmul.mubr.f32.gmra.mxu0 %v1942
      %v2020 = vpop.f32.mrf.mxu0
      %v2021 = vadd.f32 0.0, %v2020
      %v2022 = vpop.f32.mrf.mxu0
      %2023 = vmatprep.mubr.f32.mxu0 0.0
      %2024 = vmatmul.mubr.f32.gmra.mxu0 %v1944
      %v2025 = vpop.f32.mrf.mxu0
      %v2026 = vadd.f32 0.0, %v2025
      %v2027 = vpop.f32.mrf.mxu0
      %2028 = vmatprep.mubr.f32.mxu0 0.0
      %2029 = vmatmul.mubr.f32.gmra.mxu0 %v1946
      %v2030 = vpop.f32.mrf.mxu0
      %v2031 = vadd.f32 0.0, %v2030
      %v2032 = vpop.f32.mrf.mxu0
      %2033 = vdwg.mxu0
      %v2034 = vsel %vm1559, %v1917, -inf
      %2035 = vmax.xlane.f32.xlu0 %v2034
      %v2036 = vpop.xlane.xlu0 %2035
      %v2037 = vsel %vm1559, %v1922, -inf
      %2038 = vmax.xlane.f32.xlu0 %v2037
      %v2039 = vpop.xlane.xlu0 %2038
      %v2040 = vsel %vm1566, %v1927, -inf
      %2041 = vmax.xlane.f32.xlu0 %v2040
      %v2042 = vpop.xlane.xlu0 %2041
      %v2043 = vsel %vm1559, %v2021, -inf
      %2044 = vmax.xlane.f32.xlu0 %v2043
      %v2045 = vpop.xlane.xlu0 %2044
      %v2046 = vsel %vm1559, %v2026, -inf
      %2047 = vmax.xlane.f32.xlu0 %v2046
      %v2048 = vpop.xlane.xlu0 %2047
      %v2049 = vsel %vm1566, %v2031, -inf
      %2050 = vmax.xlane.f32.xlu0 %v2049
      %v2051 = vpop.xlane.xlu0 %2050
      %v2052 = vsub.f32 %v1917, %v2036
      %v2053 = vsub.f32 %v1922, %v2039
      %v2054 = vsub.f32 %v1927, %v2042
      %v2055 = vsub.f32 %v2021, %v2045
      %v2056 = vsub.f32 %v2026, %v2048
      %v2057 = vsub.f32 %v2031, %v2051
      %v2058 = vmul.f32 %v2052, 1.442695
      %v2059 = vpow.pop %v2058
      %v2060 = vmul.f32 %v2053, 1.442695
      %v2061 = vpow.pop %v2060
      %v2062 = vmul.f32 %v2054, 1.442695
      %v2063 = vpow.pop %v2062
      %v2064 = vmul.f32 %v2055, 1.442695
      %v2065 = vpow.pop %v2064
      %v2066 = vmul.f32 %v2056, 1.442695
      %v2067 = vpow.pop %v2066
      %v2068 = vmul.f32 %v2057, 1.442695
      %v2069 = vpow.pop %v2068
      %v2070 = vsel %vm1559, %v2059, 0.0
      %2071 = vadd.xlane.f32.xlu0 %v2070
      %v2072 = vpop.xlane.xlu0 %2071
      %v2073 = vsel %vm1559, %v2061, 0.0
      %2074 = vadd.xlane.f32.xlu0 %v2073
      %v2075 = vpop.xlane.xlu0 %2074
      %v2076 = vsel %vm1566, %v2063, 0.0
      %2077 = vadd.xlane.f32.xlu0 %v2076
      %v2078 = vpop.xlane.xlu0 %2077
      %v2079 = vsel %vm1559, %v2065, 0.0
      %2080 = vadd.xlane.f32.xlu0 %v2079
      %v2081 = vpop.xlane.xlu0 %2080
      %v2082 = vsel %vm1559, %v2067, 0.0
      %2083 = vadd.xlane.f32.xlu0 %v2082
      %v2084 = vpop.xlane.xlu0 %2083
      %v2085 = vsel %vm1566, %v2069, 0.0
      %2086 = vadd.xlane.f32.xlu0 %v2085
      %v2087 = vpop.xlane.xlu0 %2086
      %v2088 = vrcp.pop %v2072
      %v2089 = vrcp.pop %v2075
      %v2090 = vrcp.pop %v2078
      %v2091 = vrcp.pop %v2081
      %v2092 = vrcp.pop %v2084
      %v2093 = vrcp.pop %v2087
      %v2094 = vmul.f32 %v2059, %v2088
      %v2095 = vmul.f32 %v2061, %v2089
      %v2096 = vmul.f32 %v2063, %v2090
      %v2097 = vmul.f32 %v2065, %v2091
      %v2098 = vmul.f32 %v2067, %v2092
      %v2099 = vmul.f32 %v2069, %v2093
      %2100 = vrot.lane.b32.xlu0 %v1186, 56
      %v2101 = vpop.permute.xlu0 %2100
      %2102 = vrot.lane.b32.xlu0 %v1235, 56
      %v2103 = vpop.permute.xlu0 %2102
      %2104 = vrot.lane.b32.xlu0 %v1249, 56
      %v2105 = vpop.permute.xlu0 %2104
      %v2109 = vsel %vm1559, %v2094, 0
      %v2112 = vsel %vm1559, %v2095, 0
      %v2115 = vsel %vm1559, %v2096, 0
      %v2117 = vsel %vm1644, %v2105, 0
      %2119 = vmatprep.subr.mxu0 0.0
      %2120 = vmatpush1.msra.mxu0 0.0
      %2121 = vmatprep.subr.mxu0 0.0
      %2122 = vmatpush1.msra.mxu0 0.0
      %2123 = vmatprep.subr.mxu0 0.0
      %2124 = vmatpush1.msra.mxu0 0.0
      %2125 = vmatprep.subr.mxu0 0.0
      %2126 = vmatpush1.msra.mxu0 0.0
      %2127 = vmatprep.subr.mxu0 0.0
      %2128 = vmatpush1.msra.mxu0 0.0
      %2129 = vmatprep.subr.mxu0 0.0
      %2130 = vmatpush1.msra.mxu0 0.0
      %2131 = vmatprep.subr.mxu0 0.0
      %2132 = vmatpush1.msra.mxu0 0.0
      %2133 = vmatprep.subr.mxu0 0.0
      %2134 = vmatpush1.msra.mxu0 0.0
      %2135 = vmatprep.subr.mxu0 0.0
      %2136 = vmatpush1.msra.mxu0 0.0
      %2137 = vmatprep.subr.mxu0 0.0
      %2138 = vmatpush1.msra.mxu0 0.0
      %2139 = vmatprep.subr.mxu0 0.0
      %2140 = vmatpush1.msra.mxu0 0.0
      %2141 = vmatprep.subr.mxu0 0.0
      %2142 = vmatpush1.msra.mxu0 0.0
      %2143 = vmatprep.subr.mxu0 0.0
      %2144 = vmatpush1.msra.mxu0 0.0
      %2145 = vmatprep.subr.mxu0 0.0
      %2146 = vmatpush1.msra.mxu0 %v2117
      %2147 = vmatprep.subr.mxu0 0.0
      %2148 = vmatpush1.msra.mxu0 %v2103
      %2149 = vmatprep.subr.mxu0 0.0
      %2150 = vmatpush1.msra.mxu0 %v2101
      %2151 = vmatprep.subr.mxu0 0.0
      %2152 = vmatpush2.msra.mxu0 0.0
      %2153 = vmatprep.subr.mxu0 0.0
      %2154 = vmatpush2.msra.mxu0 0.0
      %2155 = vmatprep.subr.mxu0 0.0
      %2156 = vmatpush2.msra.mxu0 0.0
      %2157 = vmatprep.subr.mxu0 0.0
      %2158 = vmatpush2.msra.mxu0 0.0
      %2159 = vmatprep.subr.mxu0 0.0
      %2160 = vmatpush2.msra.mxu0 0.0
      %2161 = vmatprep.subr.mxu0 0.0
      %2162 = vmatpush2.msra.mxu0 0.0
      %2163 = vmatprep.subr.mxu0 0.0
      %2164 = vmatpush2.msra.mxu0 0.0
      %2165 = vmatprep.subr.mxu0 0.0
      %2166 = vmatpush2.msra.mxu0 0.0
      %2167 = vmatprep.subr.mxu0 0.0
      %2168 = vmatpush2.msra.mxu0 0.0
      %2169 = vmatprep.subr.mxu0 0.0
      %2170 = vmatpush2.msra.mxu0 0.0
      %2171 = vmatprep.subr.mxu0 0.0
      %2172 = vmatpush2.msra.mxu0 0.0
      %2173 = vmatprep.subr.mxu0 0.0
      %2174 = vmatpush2.msra.mxu0 0.0
      %2175 = vmatprep.subr.mxu0 0.0
      %2176 = vmatpush2.msra.mxu0 0.0
      %2177 = vmatprep.subr.mxu0 0.0
      %2178 = vmatpush2.msra.mxu0 0.0
      %2179 = vmatprep.subr.mxu0 0.0
      %2180 = vmatpush2.msra.mxu0 0.0
      %2181 = vmatprep.subr.mxu0 0.0
      %2182 = vmatpush2.msra.mxu0 0.0
      %2183 = vmatprep.mubr.f32.mxu0 0.0
      %2184 = vmatmul.mubr.f32.gmra.mxu0 %v2109
      %v2185 = vpop.f32.mrf.mxu0
      %v2186 = vadd.f32 0.0, %v2185
      %v2187 = vpop.f32.mrf.mxu0
      %2188 = vmatprep.mubr.f32.mxu0 0.0
      %2189 = vmatmul.mubr.f32.gmra.mxu0 %v2112
      %v2190 = vpop.f32.mrf.mxu0
      %v2191 = vadd.f32 0.0, %v2190
      %v2192 = vpop.f32.mrf.mxu0
      %2193 = vmatprep.mubr.f32.mxu0 0.0
      %2194 = vmatmul.mubr.f32.gmra.mxu0 %v2115
      %v2195 = vpop.f32.mrf.mxu0
      %v2196 = vadd.f32 0.0, %v2195
      %v2197 = vpop.f32.mrf.mxu0
      %2198 = vdwg.mxu0
      %2199 = vrot.lane.b32.xlu0 %v1397, 56
      %v2200 = vpop.permute.xlu0 %2199
      %2201 = vrot.lane.b32.xlu0 %v1446, 56
      %v2202 = vpop.permute.xlu0 %2201
      %2203 = vrot.lane.b32.xlu0 %v1460, 56
      %v2204 = vpop.permute.xlu0 %2203
      %v2208 = vsel %vm1559, %v2097, 0
      %v2211 = vsel %vm1559, %v2098, 0
      %v2214 = vsel %vm1559, %v2099, 0
      %v2216 = vsel %vm1644, %v2204, 0
      %2218 = vmatprep.subr.mxu0 0.0
      %2219 = vmatpush1.msra.mxu0 0.0
      %2220 = vmatprep.subr.mxu0 0.0
      %2221 = vmatpush1.msra.mxu0 0.0
      %2222 = vmatprep.subr.mxu0 0.0
      %2223 = vmatpush1.msra.mxu0 0.0
      %2224 = vmatprep.subr.mxu0 0.0
      %2225 = vmatpush1.msra.mxu0 0.0
      %2226 = vmatprep.subr.mxu0 0.0
      %2227 = vmatpush1.msra.mxu0 0.0
      %2228 = vmatprep.subr.mxu0 0.0
      %2229 = vmatpush1.msra.mxu0 0.0
      %2230 = vmatprep.subr.mxu0 0.0
      %2231 = vmatpush1.msra.mxu0 0.0
      %2232 = vmatprep.subr.mxu0 0.0
      %2233 = vmatpush1.msra.mxu0 0.0
      %2234 = vmatprep.subr.mxu0 0.0
      %2235 = vmatpush1.msra.mxu0 0.0
      %2236 = vmatprep.subr.mxu0 0.0
      %2237 = vmatpush1.msra.mxu0 0.0
      %2238 = vmatprep.subr.mxu0 0.0
      %2239 = vmatpush1.msra.mxu0 0.0
      %2240 = vmatprep.subr.mxu0 0.0
      %2241 = vmatpush1.msra.mxu0 0.0
      %2242 = vmatprep.subr.mxu0 0.0
      %2243 = vmatpush1.msra.mxu0 0.0
      %2244 = vmatprep.subr.mxu0 0.0
      %2245 = vmatpush1.msra.mxu0 %v2216
      %2246 = vmatprep.subr.mxu0 0.0
      %2247 = vmatpush1.msra.mxu0 %v2202
      %2248 = vmatprep.subr.mxu0 0.0
      %2249 = vmatpush1.msra.mxu0 %v2200
      %2250 = vmatprep.subr.mxu0 0.0
      %2251 = vmatpush2.msra.mxu0 0.0
      %2252 = vmatprep.subr.mxu0 0.0
      %2253 = vmatpush2.msra.mxu0 0.0
      %2254 = vmatprep.subr.mxu0 0.0
      %2255 = vmatpush2.msra.mxu0 0.0
      %2256 = vmatprep.subr.mxu0 0.0
      %2257 = vmatpush2.msra.mxu0 0.0
      %2258 = vmatprep.subr.mxu0 0.0
      %2259 = vmatpush2.msra.mxu0 0.0
      %2260 = vmatprep.subr.mxu0 0.0
      %2261 = vmatpush2.msra.mxu0 0.0
      %2262 = vmatprep.subr.mxu0 0.0
      %2263 = vmatpush2.msra.mxu0 0.0
      %2264 = vmatprep.subr.mxu0 0.0
      %2265 = vmatpush2.msra.mxu0 0.0
      %2266 = vmatprep.subr.mxu0 0.0
      %2267 = vmatpush2.msra.mxu0 0.0
      %2268 = vmatprep.subr.mxu0 0.0
      %2269 = vmatpush2.msra.mxu0 0.0
      %2270 = vmatprep.subr.mxu0 0.0
      %2271 = vmatpush2.msra.mxu0 0.0
      %2272 = vmatprep.subr.mxu0 0.0
      %2273 = vmatpush2.msra.mxu0 0.0
      %2274 = vmatprep.subr.mxu0 0.0
      %2275 = vmatpush2.msra.mxu0 0.0
      %2276 = vmatprep.subr.mxu0 0.0
      %2277 = vmatpush2.msra.mxu0 0.0
      %2278 = vmatprep.subr.mxu0 0.0
      %2279 = vmatpush2.msra.mxu0 0.0
      %2280 = vmatprep.subr.mxu0 0.0
      %2281 = vmatpush2.msra.mxu0 0.0
      %2282 = vmatprep.mubr.f32.mxu0 0.0
      %2283 = vmatmul.mubr.f32.gmra.mxu0 %v2208
      %v2284 = vpop.f32.mrf.mxu0
      %v2285 = vadd.f32 0.0, %v2284
      %v2286 = vpop.f32.mrf.mxu0
      %2287 = vmatprep.mubr.f32.mxu0 0.0
      %2288 = vmatmul.mubr.f32.gmra.mxu0 %v2211
      %v2289 = vpop.f32.mrf.mxu0
      %v2290 = vadd.f32 0.0, %v2289
      %v2291 = vpop.f32.mrf.mxu0
      %2292 = vmatprep.mubr.f32.mxu0 0.0
      %2293 = vmatmul.mubr.f32.gmra.mxu0 %v2214
      %v2294 = vpop.f32.mrf.mxu0
      %v2295 = vadd.f32 0.0, %v2294
      %v2296 = vpop.f32.mrf.mxu0
      %2297 = vdwg.mxu0
      %2298 = vrot.lane.b32.xlu0 %v1186, 112
      %v2299 = vpop.permute.xlu0 %2298
      %2300 = vrot.lane.b32.xlu0 %v1235, 112
      %v2301 = vpop.permute.xlu0 %2300
      %2302 = vrot.lane.b32.xlu0 %v1249, 112
      %v2303 = vpop.permute.xlu0 %2302
      %2304 = vrot.lane.b32.xlu0 %v1186, 80
      %v2305 = vpop.permute.xlu0 %2304
      %2306 = vrot.lane.b32.xlu0 %v1235, 80
      %v2307 = vpop.permute.xlu0 %2306
      %2308 = vrot.lane.b32.xlu0 %v1249, 80
      %v2309 = vpop.permute.xlu0 %2308
      %v2310 = vsel %vm1256, %v2299, 0
      %v2312 = vsel %vm1256, %v2301, 0
      %v2314 = vsel %vm1256, %v2303, 0
      %v2316 = vsel %vm1256, %v2305, 0
      %v2318 = vsel %vm1256, %v2307, 0
      %v2320 = vsel %vm1256, %v2309, 0
      %2322 = vmatprep.subr.mxu0 0.0
      %2323 = vmatpush1.xpose.msra.mxu0 0.0
      %2324 = vmatprep.subr.mxu0 0.0
      %2325 = vmatpush1.xpose.msra.mxu0 0.0
      %2326 = vmatprep.subr.mxu0 0.0
      %2327 = vmatpush1.xpose.msra.mxu0 0.0
      %2328 = vmatprep.subr.mxu0 0.0
      %2329 = vmatpush1.xpose.msra.mxu0 0.0
      %2330 = vmatprep.subr.mxu0 0.0
      %2331 = vmatpush1.xpose.msra.mxu0 0.0
      %2332 = vmatprep.subr.mxu0 0.0
      %2333 = vmatpush1.xpose.msra.mxu0 0.0
      %2334 = vmatprep.subr.mxu0 0.0
      %2335 = vmatpush1.xpose.msra.mxu0 0.0
      %2336 = vmatprep.subr.mxu0 0.0
      %2337 = vmatpush1.xpose.msra.mxu0 0.0
      %2338 = vmatprep.subr.mxu0 0.0
      %2339 = vmatpush1.xpose.msra.mxu0 0.0
      %2340 = vmatprep.subr.mxu0 0.0
      %2341 = vmatpush1.xpose.msra.mxu0 0.0
      %2342 = vmatprep.subr.mxu0 0.0
      %2343 = vmatpush1.xpose.msra.mxu0 0.0
      %2344 = vmatprep.subr.mxu0 0.0
      %2345 = vmatpush1.xpose.msra.mxu0 0.0
      %2346 = vmatprep.subr.mxu0 0.0
      %2347 = vmatpush1.xpose.msra.mxu0 0.0
      %2348 = vmatprep.subr.mxu0 0.0
      %2349 = vmatpush1.xpose.msra.mxu0 %v2320
      %2350 = vmatprep.subr.mxu0 0.0
      %2351 = vmatpush1.xpose.msra.mxu0 %v2318
      %2352 = vmatprep.subr.mxu0 0.0
      %2353 = vmatpush1.xpose.msra.mxu0 %v2316
      %2354 = vmatprep.subr.mxu0 0.0
      %2355 = vmatpush2.xpose.msra.mxu0 0.0
      %2356 = vmatprep.subr.mxu0 0.0
      %2357 = vmatpush2.xpose.msra.mxu0 0.0
      %2358 = vmatprep.subr.mxu0 0.0
      %2359 = vmatpush2.xpose.msra.mxu0 0.0
      %2360 = vmatprep.subr.mxu0 0.0
      %2361 = vmatpush2.xpose.msra.mxu0 0.0
      %2362 = vmatprep.subr.mxu0 0.0
      %2363 = vmatpush2.xpose.msra.mxu0 0.0
      %2364 = vmatprep.subr.mxu0 0.0
      %2365 = vmatpush2.xpose.msra.mxu0 0.0
      %2366 = vmatprep.subr.mxu0 0.0
      %2367 = vmatpush2.xpose.msra.mxu0 0.0
      %2368 = vmatprep.subr.mxu0 0.0
      %2369 = vmatpush2.xpose.msra.mxu0 0.0
      %2370 = vmatprep.subr.mxu0 0.0
      %2371 = vmatpush2.xpose.msra.mxu0 0.0
      %2372 = vmatprep.subr.mxu0 0.0
      %2373 = vmatpush2.xpose.msra.mxu0 0.0
      %2374 = vmatprep.subr.mxu0 0.0
      %2375 = vmatpush2.xpose.msra.mxu0 0.0
      %2376 = vmatprep.subr.mxu0 0.0
      %2377 = vmatpush2.xpose.msra.mxu0 0.0
      %2378 = vmatprep.subr.mxu0 0.0
      %2379 = vmatpush2.xpose.msra.mxu0 0.0
      %2380 = vmatprep.subr.mxu0 0.0
      %2381 = vmatpush2.xpose.msra.mxu0 0.0
      %2382 = vmatprep.subr.mxu0 0.0
      %2383 = vmatpush2.xpose.msra.mxu0 0.0
      %2384 = vmatprep.subr.mxu0 0.0
      %2385 = vmatpush2.xpose.msra.mxu0 0.0
      %2386 = vmatprep.mubr.f32.mxu0 0.0
      %2387 = vmatmul.mubr.f32.gmra.mxu0 %v2310
      %v2388 = vpop.f32.mrf.mxu0
      %v2389 = vadd.f32 0.0, %v2388
      %v2390 = vpop.f32.mrf.mxu0
      %2391 = vmatprep.mubr.f32.mxu0 0.0
      %2392 = vmatmul.mubr.f32.gmra.mxu0 %v2312
      %v2393 = vpop.f32.mrf.mxu0
      %v2394 = vadd.f32 0.0, %v2393
      %v2395 = vpop.f32.mrf.mxu0
      %2396 = vmatprep.mubr.f32.mxu0 0.0
      %2397 = vmatmul.mubr.f32.gmra.mxu0 %v2314
      %v2398 = vpop.f32.mrf.mxu0
      %v2399 = vadd.f32 0.0, %v2398
      %v2400 = vpop.f32.mrf.mxu0
      %2401 = vdwg.mxu0
      %2402 = vrot.lane.b32.xlu0 %v1397, 112
      %v2403 = vpop.permute.xlu0 %2402
      %2404 = vrot.lane.b32.xlu0 %v1446, 112
      %v2405 = vpop.permute.xlu0 %2404
      %2406 = vrot.lane.b32.xlu0 %v1460, 112
      %v2407 = vpop.permute.xlu0 %2406
      %2408 = vrot.lane.b32.xlu0 %v1397, 80
      %v2409 = vpop.permute.xlu0 %2408
      %2410 = vrot.lane.b32.xlu0 %v1446, 80
      %v2411 = vpop.permute.xlu0 %2410
      %2412 = vrot.lane.b32.xlu0 %v1460, 80
      %v2413 = vpop.permute.xlu0 %2412
      %v2414 = vsel %vm1256, %v2403, 0
      %v2416 = vsel %vm1256, %v2405, 0
      %v2418 = vsel %vm1256, %v2407, 0
      %v2420 = vsel %vm1256, %v2409, 0
      %v2422 = vsel %vm1256, %v2411, 0
      %v2424 = vsel %vm1256, %v2413, 0
      %2426 = vmatprep.subr.mxu0 0.0
      %2427 = vmatpush1.xpose.msra.mxu0 0.0
      %2428 = vmatprep.subr.mxu0 0.0
      %2429 = vmatpush1.xpose.msra.mxu0 0.0
      %2430 = vmatprep.subr.mxu0 0.0
      %2431 = vmatpush1.xpose.msra.mxu0 0.0
      %2432 = vmatprep.subr.mxu0 0.0
      %2433 = vmatpush1.xpose.msra.mxu0 0.0
      %2434 = vmatprep.subr.mxu0 0.0
      %2435 = vmatpush1.xpose.msra.mxu0 0.0
      %2436 = vmatprep.subr.mxu0 0.0
      %2437 = vmatpush1.xpose.msra.mxu0 0.0
      %2438 = vmatprep.subr.mxu0 0.0
      %2439 = vmatpush1.xpose.msra.mxu0 0.0
      %2440 = vmatprep.subr.mxu0 0.0
      %2441 = vmatpush1.xpose.msra.mxu0 0.0
      %2442 = vmatprep.subr.mxu0 0.0
      %2443 = vmatpush1.xpose.msra.mxu0 0.0
      %2444 = vmatprep.subr.mxu0 0.0
      %2445 = vmatpush1.xpose.msra.mxu0 0.0
      %2446 = vmatprep.subr.mxu0 0.0
      %2447 = vmatpush1.xpose.msra.mxu0 0.0
      %2448 = vmatprep.subr.mxu0 0.0
      %2449 = vmatpush1.xpose.msra.mxu0 0.0
      %2450 = vmatprep.subr.mxu0 0.0
      %2451 = vmatpush1.xpose.msra.mxu0 0.0
      %2452 = vmatprep.subr.mxu0 0.0
      %2453 = vmatpush1.xpose.msra.mxu0 %v2424
      %2454 = vmatprep.subr.mxu0 0.0
      %2455 = vmatpush1.xpose.msra.mxu0 %v2422
      %2456 = vmatprep.subr.mxu0 0.0
      %2457 = vmatpush1.xpose.msra.mxu0 %v2420
      %2458 = vmatprep.subr.mxu0 0.0
      %2459 = vmatpush2.xpose.msra.mxu0 0.0
      %2460 = vmatprep.subr.mxu0 0.0
      %2461 = vmatpush2.xpose.msra.mxu0 0.0
      %2462 = vmatprep.subr.mxu0 0.0
      %2463 = vmatpush2.xpose.msra.mxu0 0.0
      %2464 = vmatprep.subr.mxu0 0.0
      %2465 = vmatpush2.xpose.msra.mxu0 0.0
      %2466 = vmatprep.subr.mxu0 0.0
      %2467 = vmatpush2.xpose.msra.mxu0 0.0
      %2468 = vmatprep.subr.mxu0 0.0
      %2469 = vmatpush2.xpose.msra.mxu0 0.0
      %2470 = vmatprep.subr.mxu0 0.0
      %2471 = vmatpush2.xpose.msra.mxu0 0.0
      %2472 = vmatprep.subr.mxu0 0.0
      %2473 = vmatpush2.xpose.msra.mxu0 0.0
      %2474 = vmatprep.subr.mxu0 0.0
      %2475 = vmatpush2.xpose.msra.mxu0 0.0
      %2476 = vmatprep.subr.mxu0 0.0
      %2477 = vmatpush2.xpose.msra.mxu0 0.0
      %2478 = vmatprep.subr.mxu0 0.0
      %2479 = vmatpush2.xpose.msra.mxu0 0.0
      %2480 = vmatprep.subr.mxu0 0.0
      %2481 = vmatpush2.xpose.msra.mxu0 0.0
      %2482 = vmatprep.subr.mxu0 0.0
      %2483 = vmatpush2.xpose.msra.mxu0 0.0
      %2484 = vmatprep.subr.mxu0 0.0
      %2485 = vmatpush2.xpose.msra.mxu0 0.0
      %2486 = vmatprep.subr.mxu0 0.0
      %2487 = vmatpush2.xpose.msra.mxu0 0.0
      %2488 = vmatprep.subr.mxu0 0.0
      %2489 = vmatpush2.xpose.msra.mxu0 0.0
      %2490 = vmatprep.mubr.f32.mxu0 0.0
      %2491 = vmatmul.mubr.f32.gmra.mxu0 %v2414
      %v2492 = vpop.f32.mrf.mxu0
      %v2493 = vadd.f32 0.0, %v2492
      %v2494 = vpop.f32.mrf.mxu0
      %2495 = vmatprep.mubr.f32.mxu0 0.0
      %2496 = vmatmul.mubr.f32.gmra.mxu0 %v2416
      %v2497 = vpop.f32.mrf.mxu0
      %v2498 = vadd.f32 0.0, %v2497
      %v2499 = vpop.f32.mrf.mxu0
      %2500 = vmatprep.mubr.f32.mxu0 0.0
      %2501 = vmatmul.mubr.f32.gmra.mxu0 %v2418
      %v2502 = vpop.f32.mrf.mxu0
      %v2503 = vadd.f32 0.0, %v2502
      %v2504 = vpop.f32.mrf.mxu0
      %2505 = vdwg.mxu0
      %v2506 = vsel %vm1559, %v2389, -inf
      %2507 = vmax.xlane.f32.xlu0 %v2506
      %v2508 = vpop.xlane.xlu0 %2507
      %v2509 = vsel %vm1559, %v2394, -inf
      %2510 = vmax.xlane.f32.xlu0 %v2509
      %v2511 = vpop.xlane.xlu0 %2510
      %v2512 = vsel %vm1566, %v2399, -inf
      %2513 = vmax.xlane.f32.xlu0 %v2512
      %v2514 = vpop.xlane.xlu0 %2513
      %v2515 = vsel %vm1559, %v2493, -inf
      %2516 = vmax.xlane.f32.xlu0 %v2515
      %v2517 = vpop.xlane.xlu0 %2516
      %v2518 = vsel %vm1559, %v2498, -inf
      %2519 = vmax.xlane.f32.xlu0 %v2518
      %v2520 = vpop.xlane.xlu0 %2519
      %v2521 = vsel %vm1566, %v2503, -inf
      %2522 = vmax.xlane.f32.xlu0 %v2521
      %v2523 = vpop.xlane.xlu0 %2522
      %v2524 = vsub.f32 %v2389, %v2508
      %v2525 = vsub.f32 %v2394, %v2511
      %v2526 = vsub.f32 %v2399, %v2514
      %v2527 = vsub.f32 %v2493, %v2517
      %v2528 = vsub.f32 %v2498, %v2520
      %v2529 = vsub.f32 %v2503, %v2523
      %v2530 = vmul.f32 %v2524, 1.442695
      %v2531 = vpow.pop %v2530
      %v2532 = vmul.f32 %v2525, 1.442695
      %v2533 = vpow.pop %v2532
      %v2534 = vmul.f32 %v2526, 1.442695
      %v2535 = vpow.pop %v2534
      %v2536 = vmul.f32 %v2527, 1.442695
      %v2537 = vpow.pop %v2536
      %v2538 = vmul.f32 %v2528, 1.442695
      %v2539 = vpow.pop %v2538
      %v2540 = vmul.f32 %v2529, 1.442695
      %v2541 = vpow.pop %v2540
      %v2542 = vsel %vm1559, %v2531, 0.0
      %2543 = vadd.xlane.f32.xlu0 %v2542
      %v2544 = vpop.xlane.xlu0 %2543
      %v2545 = vsel %vm1559, %v2533, 0.0
      %2546 = vadd.xlane.f32.xlu0 %v2545
      %v2547 = vpop.xlane.xlu0 %2546
      %v2548 = vsel %vm1566, %v2535, 0.0
      %2549 = vadd.xlane.f32.xlu0 %v2548
      %v2550 = vpop.xlane.xlu0 %2549
      %v2551 = vsel %vm1559, %v2537, 0.0
      %2552 = vadd.xlane.f32.xlu0 %v2551
      %v2553 = vpop.xlane.xlu0 %2552
      %v2554 = vsel %vm1559, %v2539, 0.0
      %2555 = vadd.xlane.f32.xlu0 %v2554
      %v2556 = vpop.xlane.xlu0 %2555
      %v2557 = vsel %vm1566, %v2541, 0.0
      %2558 = vadd.xlane.f32.xlu0 %v2557
      %v2559 = vpop.xlane.xlu0 %2558
      %v2560 = vrcp.pop %v2544
      %v2561 = vrcp.pop %v2547
      %v2562 = vrcp.pop %v2550
      %v2563 = vrcp.pop %v2553
      %v2564 = vrcp.pop %v2556
      %v2565 = vrcp.pop %v2559
      %v2566 = vmul.f32 %v2531, %v2560
      %v2567 = vmul.f32 %v2533, %v2561
      %v2568 = vmul.f32 %v2535, %v2562
      %v2569 = vmul.f32 %v2537, %v2563
      %v2570 = vmul.f32 %v2539, %v2564
      %v2571 = vmul.f32 %v2541, %v2565
      %2572 = vrot.lane.b32.xlu0 %v1186, 48
      %v2573 = vpop.permute.xlu0 %2572
      %2574 = vrot.lane.b32.xlu0 %v1235, 48
      %v2575 = vpop.permute.xlu0 %2574
      %2576 = vrot.lane.b32.xlu0 %v1249, 48
      %v2577 = vpop.permute.xlu0 %2576
      %v2581 = vsel %vm1559, %v2566, 0
      %v2584 = vsel %vm1559, %v2567, 0
      %v2587 = vsel %vm1559, %v2568, 0
      %v2589 = vsel %vm1644, %v2577, 0
      %2591 = vmatprep.subr.mxu0 0.0
      %2592 = vmatpush1.msra.mxu0 0.0
      %2593 = vmatprep.subr.mxu0 0.0
      %2594 = vmatpush1.msra.mxu0 0.0
      %2595 = vmatprep.subr.mxu0 0.0
      %2596 = vmatpush1.msra.mxu0 0.0
      %2597 = vmatprep.subr.mxu0 0.0
      %2598 = vmatpush1.msra.mxu0 0.0
      %2599 = vmatprep.subr.mxu0 0.0
      %2600 = vmatpush1.msra.mxu0 0.0
      %2601 = vmatprep.subr.mxu0 0.0
      %2602 = vmatpush1.msra.mxu0 0.0
      %2603 = vmatprep.subr.mxu0 0.0
      %2604 = vmatpush1.msra.mxu0 0.0
      %2605 = vmatprep.subr.mxu0 0.0
      %2606 = vmatpush1.msra.mxu0 0.0
      %2607 = vmatprep.subr.mxu0 0.0
      %2608 = vmatpush1.msra.mxu0 0.0
      %2609 = vmatprep.subr.mxu0 0.0
      %2610 = vmatpush1.msra.mxu0 0.0
      %2611 = vmatprep.subr.mxu0 0.0
      %2612 = vmatpush1.msra.mxu0 0.0
      %2613 = vmatprep.subr.mxu0 0.0
      %2614 = vmatpush1.msra.mxu0 0.0
      %2615 = vmatprep.subr.mxu0 0.0
      %2616 = vmatpush1.msra.mxu0 0.0
      %2617 = vmatprep.subr.mxu0 0.0
      %2618 = vmatpush1.msra.mxu0 %v2589
      %2619 = vmatprep.subr.mxu0 0.0
      %2620 = vmatpush1.msra.mxu0 %v2575
      %2621 = vmatprep.subr.mxu0 0.0
      %2622 = vmatpush1.msra.mxu0 %v2573
      %2623 = vmatprep.subr.mxu0 0.0
      %2624 = vmatpush2.msra.mxu0 0.0
      %2625 = vmatprep.subr.mxu0 0.0
      %2626 = vmatpush2.msra.mxu0 0.0
      %2627 = vmatprep.subr.mxu0 0.0
      %2628 = vmatpush2.msra.mxu0 0.0
      %2629 = vmatprep.subr.mxu0 0.0
      %2630 = vmatpush2.msra.mxu0 0.0
      %2631 = vmatprep.subr.mxu0 0.0
      %2632 = vmatpush2.msra.mxu0 0.0
      %2633 = vmatprep.subr.mxu0 0.0
      %2634 = vmatpush2.msra.mxu0 0.0
      %2635 = vmatprep.subr.mxu0 0.0
      %2636 = vmatpush2.msra.mxu0 0.0
      %2637 = vmatprep.subr.mxu0 0.0
      %2638 = vmatpush2.msra.mxu0 0.0
      %2639 = vmatprep.subr.mxu0 0.0
      %2640 = vmatpush2.msra.mxu0 0.0
      %2641 = vmatprep.subr.mxu0 0.0
      %2642 = vmatpush2.msra.mxu0 0.0
      %2643 = vmatprep.subr.mxu0 0.0
      %2644 = vmatpush2.msra.mxu0 0.0
      %2645 = vmatprep.subr.mxu0 0.0
      %2646 = vmatpush2.msra.mxu0 0.0
      %2647 = vmatprep.subr.mxu0 0.0
      %2648 = vmatpush2.msra.mxu0 0.0
      %2649 = vmatprep.subr.mxu0 0.0
      %2650 = vmatpush2.msra.mxu0 0.0
      %2651 = vmatprep.subr.mxu0 0.0
      %2652 = vmatpush2.msra.mxu0 0.0
      %2653 = vmatprep.subr.mxu0 0.0
      %2654 = vmatpush2.msra.mxu0 0.0
      %2655 = vmatprep.mubr.f32.mxu0 0.0
      %2656 = vmatmul.mubr.f32.gmra.mxu0 %v2581
      %v2657 = vpop.f32.mrf.mxu0
      %v2658 = vadd.f32 0.0, %v2657
      %v2659 = vpop.f32.mrf.mxu0
      %2660 = vmatprep.mubr.f32.mxu0 0.0
      %2661 = vmatmul.mubr.f32.gmra.mxu0 %v2584
      %v2662 = vpop.f32.mrf.mxu0
      %v2663 = vadd.f32 0.0, %v2662
      %v2664 = vpop.f32.mrf.mxu0
      %2665 = vmatprep.mubr.f32.mxu0 0.0
      %2666 = vmatmul.mubr.f32.gmra.mxu0 %v2587
      %v2667 = vpop.f32.mrf.mxu0
      %v2668 = vadd.f32 0.0, %v2667
      %v2669 = vpop.f32.mrf.mxu0
      %2670 = vdwg.mxu0
      %2671 = vrot.lane.b32.xlu0 %v1397, 48
      %v2672 = vpop.permute.xlu0 %2671
      %2673 = vrot.lane.b32.xlu0 %v1446, 48
      %v2674 = vpop.permute.xlu0 %2673
      %2675 = vrot.lane.b32.xlu0 %v1460, 48
      %v2676 = vpop.permute.xlu0 %2675
      %v2680 = vsel %vm1559, %v2569, 0
      %v2683 = vsel %vm1559, %v2570, 0
      %v2686 = vsel %vm1559, %v2571, 0
      %v2688 = vsel %vm1644, %v2676, 0
      %2690 = vmatprep.subr.mxu0 0.0
      %2691 = vmatpush1.msra.mxu0 0.0
      %2692 = vmatprep.subr.mxu0 0.0
      %2693 = vmatpush1.msra.mxu0 0.0
      %2694 = vmatprep.subr.mxu0 0.0
      %2695 = vmatpush1.msra.mxu0 0.0
      %2696 = vmatprep.subr.mxu0 0.0
      %2697 = vmatpush1.msra.mxu0 0.0
      %2698 = vmatprep.subr.mxu0 0.0
      %2699 = vmatpush1.msra.mxu0 0.0
      %2700 = vmatprep.subr.mxu0 0.0
      %2701 = vmatpush1.msra.mxu0 0.0
      %2702 = vmatprep.subr.mxu0 0.0
      %2703 = vmatpush1.msra.mxu0 0.0
      %2704 = vmatprep.subr.mxu0 0.0
      %2705 = vmatpush1.msra.mxu0 0.0
      %2706 = vmatprep.subr.mxu0 0.0
      %2707 = vmatpush1.msra.mxu0 0.0
      %2708 = vmatprep.subr.mxu0 0.0
      %2709 = vmatpush1.msra.mxu0 0.0
      %2710 = vmatprep.subr.mxu0 0.0
      %2711 = vmatpush1.msra.mxu0 0.0
      %2712 = vmatprep.subr.mxu0 0.0
      %2713 = vmatpush1.msra.mxu0 0.0
      %2714 = vmatprep.subr.mxu0 0.0
      %2715 = vmatpush1.msra.mxu0 0.0
      %2716 = vmatprep.subr.mxu0 0.0
      %2717 = vmatpush1.msra.mxu0 %v2688
      %2718 = vmatprep.subr.mxu0 0.0
      %2719 = vmatpush1.msra.mxu0 %v2674
      %2720 = vmatprep.subr.mxu0 0.0
      %2721 = vmatpush1.msra.mxu0 %v2672
      %2722 = vmatprep.subr.mxu0 0.0
      %2723 = vmatpush2.msra.mxu0 0.0
      %2724 = vmatprep.subr.mxu0 0.0
      %2725 = vmatpush2.msra.mxu0 0.0
      %2726 = vmatprep.subr.mxu0 0.0
      %2727 = vmatpush2.msra.mxu0 0.0
      %2728 = vmatprep.subr.mxu0 0.0
      %2729 = vmatpush2.msra.mxu0 0.0
      %2730 = vmatprep.subr.mxu0 0.0
      %2731 = vmatpush2.msra.mxu0 0.0
      %2732 = vmatprep.subr.mxu0 0.0
      %2733 = vmatpush2.msra.mxu0 0.0
      %2734 = vmatprep.subr.mxu0 0.0
      %2735 = vmatpush2.msra.mxu0 0.0
      %2736 = vmatprep.subr.mxu0 0.0
      %2737 = vmatpush2.msra.mxu0 0.0
      %2738 = vmatprep.subr.mxu0 0.0
      %2739 = vmatpush2.msra.mxu0 0.0
      %2740 = vmatprep.subr.mxu0 0.0
      %2741 = vmatpush2.msra.mxu0 0.0
      %2742 = vmatprep.subr.mxu0 0.0
      %2743 = vmatpush2.msra.mxu0 0.0
      %2744 = vmatprep.subr.mxu0 0.0
      %2745 = vmatpush2.msra.mxu0 0.0
      %2746 = vmatprep.subr.mxu0 0.0
      %2747 = vmatpush2.msra.mxu0 0.0
      %2748 = vmatprep.subr.mxu0 0.0
      %2749 = vmatpush2.msra.mxu0 0.0
      %2750 = vmatprep.subr.mxu0 0.0
      %2751 = vmatpush2.msra.mxu0 0.0
      %2752 = vmatprep.subr.mxu0 0.0
      %2753 = vmatpush2.msra.mxu0 0.0
      %2754 = vmatprep.mubr.f32.mxu0 0.0
      %2755 = vmatmul.mubr.f32.gmra.mxu0 %v2680
      %v2756 = vpop.f32.mrf.mxu0
      %v2757 = vadd.f32 0.0, %v2756
      %v2758 = vpop.f32.mrf.mxu0
      %2759 = vmatprep.mubr.f32.mxu0 0.0
      %2760 = vmatmul.mubr.f32.gmra.mxu0 %v2683
      %v2761 = vpop.f32.mrf.mxu0
      %v2762 = vadd.f32 0.0, %v2761
      %v2763 = vpop.f32.mrf.mxu0
      %2764 = vmatprep.mubr.f32.mxu0 0.0
      %2765 = vmatmul.mubr.f32.gmra.mxu0 %v2686
      %v2766 = vpop.f32.mrf.mxu0
      %v2767 = vadd.f32 0.0, %v2766
      %v2768 = vpop.f32.mrf.mxu0
      %2769 = vdwg.mxu0
      %2770 = vrot.lane.b32.xlu0 %v1186, 104
      %v2771 = vpop.permute.xlu0 %2770
      %2772 = vrot.lane.b32.xlu0 %v1235, 104
      %v2773 = vpop.permute.xlu0 %2772
      %2774 = vrot.lane.b32.xlu0 %v1249, 104
      %v2775 = vpop.permute.xlu0 %2774
      %2776 = vrot.lane.b32.xlu0 %v1186, 72
      %v2777 = vpop.permute.xlu0 %2776
      %2778 = vrot.lane.b32.xlu0 %v1235, 72
      %v2779 = vpop.permute.xlu0 %2778
      %2780 = vrot.lane.b32.xlu0 %v1249, 72
      %v2781 = vpop.permute.xlu0 %2780
      %v2782 = vsel %vm1256, %v2771, 0
      %v2784 = vsel %vm1256, %v2773, 0
      %v2786 = vsel %vm1256, %v2775, 0
      %v2788 = vsel %vm1256, %v2777, 0
      %v2790 = vsel %vm1256, %v2779, 0
      %v2792 = vsel %vm1256, %v2781, 0
      %2794 = vmatprep.subr.mxu0 0.0
      %2795 = vmatpush1.xpose.msra.mxu0 0.0
      %2796 = vmatprep.subr.mxu0 0.0
      %2797 = vmatpush1.xpose.msra.mxu0 0.0
      %2798 = vmatprep.subr.mxu0 0.0
      %2799 = vmatpush1.xpose.msra.mxu0 0.0
      %2800 = vmatprep.subr.mxu0 0.0
      %2801 = vmatpush1.xpose.msra.mxu0 0.0
      %2802 = vmatprep.subr.mxu0 0.0
      %2803 = vmatpush1.xpose.msra.mxu0 0.0
      %2804 = vmatprep.subr.mxu0 0.0
      %2805 = vmatpush1.xpose.msra.mxu0 0.0
      %2806 = vmatprep.subr.mxu0 0.0
      %2807 = vmatpush1.xpose.msra.mxu0 0.0
      %2808 = vmatprep.subr.mxu0 0.0
      %2809 = vmatpush1.xpose.msra.mxu0 0.0
      %2810 = vmatprep.subr.mxu0 0.0
      %2811 = vmatpush1.xpose.msra.mxu0 0.0
      %2812 = vmatprep.subr.mxu0 0.0
      %2813 = vmatpush1.xpose.msra.mxu0 0.0
      %2814 = vmatprep.subr.mxu0 0.0
      %2815 = vmatpush1.xpose.msra.mxu0 0.0
      %2816 = vmatprep.subr.mxu0 0.0
      %2817 = vmatpush1.xpose.msra.mxu0 0.0
      %2818 = vmatprep.subr.mxu0 0.0
      %2819 = vmatpush1.xpose.msra.mxu0 0.0
      %2820 = vmatprep.subr.mxu0 0.0
      %2821 = vmatpush1.xpose.msra.mxu0 %v2792
      %2822 = vmatprep.subr.mxu0 0.0
      %2823 = vmatpush1.xpose.msra.mxu0 %v2790
      %2824 = vmatprep.subr.mxu0 0.0
      %2825 = vmatpush1.xpose.msra.mxu0 %v2788
      %2826 = vmatprep.subr.mxu0 0.0
      %2827 = vmatpush2.xpose.msra.mxu0 0.0
      %2828 = vmatprep.subr.mxu0 0.0
      %2829 = vmatpush2.xpose.msra.mxu0 0.0
      %2830 = vmatprep.subr.mxu0 0.0
      %2831 = vmatpush2.xpose.msra.mxu0 0.0
      %2832 = vmatprep.subr.mxu0 0.0
      %2833 = vmatpush2.xpose.msra.mxu0 0.0
      %2834 = vmatprep.subr.mxu0 0.0
      %2835 = vmatpush2.xpose.msra.mxu0 0.0
      %2836 = vmatprep.subr.mxu0 0.0
      %2837 = vmatpush2.xpose.msra.mxu0 0.0
      %2838 = vmatprep.subr.mxu0 0.0
      %2839 = vmatpush2.xpose.msra.mxu0 0.0
      %2840 = vmatprep.subr.mxu0 0.0
      %2841 = vmatpush2.xpose.msra.mxu0 0.0
      %2842 = vmatprep.subr.mxu0 0.0
      %2843 = vmatpush2.xpose.msra.mxu0 0.0
      %2844 = vmatprep.subr.mxu0 0.0
      %2845 = vmatpush2.xpose.msra.mxu0 0.0
      %2846 = vmatprep.subr.mxu0 0.0
      %2847 = vmatpush2.xpose.msra.mxu0 0.0
      %2848 = vmatprep.subr.mxu0 0.0
      %2849 = vmatpush2.xpose.msra.mxu0 0.0
      %2850 = vmatprep.subr.mxu0 0.0
      %2851 = vmatpush2.xpose.msra.mxu0 0.0
      %2852 = vmatprep.subr.mxu0 0.0
      %2853 = vmatpush2.xpose.msra.mxu0 0.0
      %2854 = vmatprep.subr.mxu0 0.0
      %2855 = vmatpush2.xpose.msra.mxu0 0.0
      %2856 = vmatprep.subr.mxu0 0.0
      %2857 = vmatpush2.xpose.msra.mxu0 0.0
      %2858 = vmatprep.mubr.f32.mxu0 0.0
      %2859 = vmatmul.mubr.f32.gmra.mxu0 %v2782
      %v2860 = vpop.f32.mrf.mxu0
      %v2861 = vadd.f32 0.0, %v2860
      %v2862 = vpop.f32.mrf.mxu0
      %2863 = vmatprep.mubr.f32.mxu0 0.0
      %2864 = vmatmul.mubr.f32.gmra.mxu0 %v2784
      %v2865 = vpop.f32.mrf.mxu0
      %v2866 = vadd.f32 0.0, %v2865
      %v2867 = vpop.f32.mrf.mxu0
      %2868 = vmatprep.mubr.f32.mxu0 0.0
      %2869 = vmatmul.mubr.f32.gmra.mxu0 %v2786
      %v2870 = vpop.f32.mrf.mxu0
      %v2871 = vadd.f32 0.0, %v2870
      %v2872 = vpop.f32.mrf.mxu0
      %2873 = vdwg.mxu0
      %2874 = vrot.lane.b32.xlu0 %v1397, 104
      %v2875 = vpop.permute.xlu0 %2874
      %2876 = vrot.lane.b32.xlu0 %v1446, 104
      %v2877 = vpop.permute.xlu0 %2876
      %2878 = vrot.lane.b32.xlu0 %v1460, 104
      %v2879 = vpop.permute.xlu0 %2878
      %2880 = vrot.lane.b32.xlu0 %v1397, 72
      %v2881 = vpop.permute.xlu0 %2880
      %2882 = vrot.lane.b32.xlu0 %v1446, 72
      %v2883 = vpop.permute.xlu0 %2882
      %2884 = vrot.lane.b32.xlu0 %v1460, 72
      %v2885 = vpop.permute.xlu0 %2884
      %v2886 = vsel %vm1256, %v2875, 0
      %v2888 = vsel %vm1256, %v2877, 0
      %v2890 = vsel %vm1256, %v2879, 0
      %v2892 = vsel %vm1256, %v2881, 0
      %v2894 = vsel %vm1256, %v2883, 0
      %v2896 = vsel %vm1256, %v2885, 0
      %2898 = vmatprep.subr.mxu0 0.0
      %2899 = vmatpush1.xpose.msra.mxu0 0.0
      %2900 = vmatprep.subr.mxu0 0.0
      %2901 = vmatpush1.xpose.msra.mxu0 0.0
      %2902 = vmatprep.subr.mxu0 0.0
      %2903 = vmatpush1.xpose.msra.mxu0 0.0
      %2904 = vmatprep.subr.mxu0 0.0
      %2905 = vmatpush1.xpose.msra.mxu0 0.0
      %2906 = vmatprep.subr.mxu0 0.0
      %2907 = vmatpush1.xpose.msra.mxu0 0.0
      %2908 = vmatprep.subr.mxu0 0.0
      %2909 = vmatpush1.xpose.msra.mxu0 0.0
      %2910 = vmatprep.subr.mxu0 0.0
      %2911 = vmatpush1.xpose.msra.mxu0 0.0
      %2912 = vmatprep.subr.mxu0 0.0
      %2913 = vmatpush1.xpose.msra.mxu0 0.0
      %2914 = vmatprep.subr.mxu0 0.0
      %2915 = vmatpush1.xpose.msra.mxu0 0.0
      %2916 = vmatprep.subr.mxu0 0.0
      %2917 = vmatpush1.xpose.msra.mxu0 0.0
      %2918 = vmatprep.subr.mxu0 0.0
      %2919 = vmatpush1.xpose.msra.mxu0 0.0
      %2920 = vmatprep.subr.mxu0 0.0
      %2921 = vmatpush1.xpose.msra.mxu0 0.0
      %2922 = vmatprep.subr.mxu0 0.0
      %2923 = vmatpush1.xpose.msra.mxu0 0.0
      %2924 = vmatprep.subr.mxu0 0.0
      %2925 = vmatpush1.xpose.msra.mxu0 %v2896
      %2926 = vmatprep.subr.mxu0 0.0
      %2927 = vmatpush1.xpose.msra.mxu0 %v2894
      %2928 = vmatprep.subr.mxu0 0.0
      %2929 = vmatpush1.xpose.msra.mxu0 %v2892
      %2930 = vmatprep.subr.mxu0 0.0
      %2931 = vmatpush2.xpose.msra.mxu0 0.0
      %2932 = vmatprep.subr.mxu0 0.0
      %2933 = vmatpush2.xpose.msra.mxu0 0.0
      %2934 = vmatprep.subr.mxu0 0.0
      %2935 = vmatpush2.xpose.msra.mxu0 0.0
      %2936 = vmatprep.subr.mxu0 0.0
      %2937 = vmatpush2.xpose.msra.mxu0 0.0
      %2938 = vmatprep.subr.mxu0 0.0
      %2939 = vmatpush2.xpose.msra.mxu0 0.0
      %2940 = vmatprep.subr.mxu0 0.0
      %2941 = vmatpush2.xpose.msra.mxu0 0.0
      %2942 = vmatprep.subr.mxu0 0.0
      %2943 = vmatpush2.xpose.msra.mxu0 0.0
      %2944 = vmatprep.subr.mxu0 0.0
      %2945 = vmatpush2.xpose.msra.mxu0 0.0
      %2946 = vmatprep.subr.mxu0 0.0
      %2947 = vmatpush2.xpose.msra.mxu0 0.0
      %2948 = vmatprep.subr.mxu0 0.0
      %2949 = vmatpush2.xpose.msra.mxu0 0.0
      %2950 = vmatprep.subr.mxu0 0.0
      %2951 = vmatpush2.xpose.msra.mxu0 0.0
      %2952 = vmatprep.subr.mxu0 0.0
      %2953 = vmatpush2.xpose.msra.mxu0 0.0
      %2954 = vmatprep.subr.mxu0 0.0
      %2955 = vmatpush2.xpose.msra.mxu0 0.0
      %2956 = vmatprep.subr.mxu0 0.0
      %2957 = vmatpush2.xpose.msra.mxu0 0.0
      %2958 = vmatprep.subr.mxu0 0.0
      %2959 = vmatpush2.xpose.msra.mxu0 0.0
      %2960 = vmatprep.subr.mxu0 0.0
      %2961 = vmatpush2.xpose.msra.mxu0 0.0
      %2962 = vmatprep.mubr.f32.mxu0 0.0
      %2963 = vmatmul.mubr.f32.gmra.mxu0 %v2886
      %v2964 = vpop.f32.mrf.mxu0
      %v2965 = vadd.f32 0.0, %v2964
      %v2966 = vpop.f32.mrf.mxu0
      %2967 = vmatprep.mubr.f32.mxu0 0.0
      %2968 = vmatmul.mubr.f32.gmra.mxu0 %v2888
      %v2969 = vpop.f32.mrf.mxu0
      %v2970 = vadd.f32 0.0, %v2969
      %v2971 = vpop.f32.mrf.mxu0
      %2972 = vmatprep.mubr.f32.mxu0 0.0
      %2973 = vmatmul.mubr.f32.gmra.mxu0 %v2890
      %v2974 = vpop.f32.mrf.mxu0
      %v2975 = vadd.f32 0.0, %v2974
      %v2976 = vpop.f32.mrf.mxu0
      %2977 = vdwg.mxu0
      %v2978 = vsel %vm1559, %v2861, -inf
      %2979 = vmax.xlane.f32.xlu0 %v2978
      %v2980 = vpop.xlane.xlu0 %2979
      %v2981 = vsel %vm1559, %v2866, -inf
      %2982 = vmax.xlane.f32.xlu0 %v2981
      %v2983 = vpop.xlane.xlu0 %2982
      %v2984 = vsel %vm1566, %v2871, -inf
      %2985 = vmax.xlane.f32.xlu0 %v2984
      %v2986 = vpop.xlane.xlu0 %2985
      %v2987 = vsel %vm1559, %v2965, -inf
      %2988 = vmax.xlane.f32.xlu0 %v2987
      %v2989 = vpop.xlane.xlu0 %2988
      %v2990 = vsel %vm1559, %v2970, -inf
      %2991 = vmax.xlane.f32.xlu0 %v2990
      %v2992 = vpop.xlane.xlu0 %2991
      %v2993 = vsel %vm1566, %v2975, -inf
      %2994 = vmax.xlane.f32.xlu0 %v2993
      %v2995 = vpop.xlane.xlu0 %2994
      %v2996 = vsub.f32 %v2861, %v2980
      %v2997 = vsub.f32 %v2866, %v2983
      %v2998 = vsub.f32 %v2871, %v2986
      %v2999 = vsub.f32 %v2965, %v2989
      %v3000 = vsub.f32 %v2970, %v2992
      %v3001 = vsub.f32 %v2975, %v2995
      %v3002 = vmul.f32 %v2996, 1.442695
      %v3003 = vpow.pop %v3002
      %v3004 = vmul.f32 %v2997, 1.442695
      %v3005 = vpow.pop %v3004
      %v3006 = vmul.f32 %v2998, 1.442695
      %v3007 = vpow.pop %v3006
      %v3008 = vmul.f32 %v2999, 1.442695
      %v3009 = vpow.pop %v3008
      %v3010 = vmul.f32 %v3000, 1.442695
      %v3011 = vpow.pop %v3010
      %v3012 = vmul.f32 %v3001, 1.442695
      %v3013 = vpow.pop %v3012
      %v3014 = vsel %vm1559, %v3003, 0.0
      %3015 = vadd.xlane.f32.xlu0 %v3014
      %v3016 = vpop.xlane.xlu0 %3015
      %v3017 = vsel %vm1559, %v3005, 0.0
      %3018 = vadd.xlane.f32.xlu0 %v3017
      %v3019 = vpop.xlane.xlu0 %3018
      %v3020 = vsel %vm1566, %v3007, 0.0
      %3021 = vadd.xlane.f32.xlu0 %v3020
      %v3022 = vpop.xlane.xlu0 %3021
      %v3023 = vsel %vm1559, %v3009, 0.0
      %3024 = vadd.xlane.f32.xlu0 %v3023
      %v3025 = vpop.xlane.xlu0 %3024
      %v3026 = vsel %vm1559, %v3011, 0.0
      %3027 = vadd.xlane.f32.xlu0 %v3026
      %v3028 = vpop.xlane.xlu0 %3027
      %v3029 = vsel %vm1566, %v3013, 0.0
      %3030 = vadd.xlane.f32.xlu0 %v3029
      %v3031 = vpop.xlane.xlu0 %3030
      %v3032 = vrcp.pop %v3016
      %v3033 = vrcp.pop %v3019
      %v3034 = vrcp.pop %v3022
      %v3035 = vrcp.pop %v3025
      %v3036 = vrcp.pop %v3028
      %v3037 = vrcp.pop %v3031
      %v3038 = vmul.f32 %v3003, %v3032
      %v3039 = vmul.f32 %v3005, %v3033
      %v3040 = vmul.f32 %v3007, %v3034
      %v3041 = vmul.f32 %v3009, %v3035
      %v3042 = vmul.f32 %v3011, %v3036
      %v3043 = vmul.f32 %v3013, %v3037
      %3044 = vrot.lane.b32.xlu0 %v1186, 40
      %v3045 = vpop.permute.xlu0 %3044
      %3046 = vrot.lane.b32.xlu0 %v1235, 40
      %v3047 = vpop.permute.xlu0 %3046
      %3048 = vrot.lane.b32.xlu0 %v1249, 40
      %v3049 = vpop.permute.xlu0 %3048
      %v3053 = vsel %vm1559, %v3038, 0
      %v3056 = vsel %vm1559, %v3039, 0
      %v3059 = vsel %vm1559, %v3040, 0
      %v3061 = vsel %vm1644, %v3049, 0
      %3063 = vmatprep.subr.mxu0 0.0
      %3064 = vmatpush1.msra.mxu0 0.0
      %3065 = vmatprep.subr.mxu0 0.0
      %3066 = vmatpush1.msra.mxu0 0.0
      %3067 = vmatprep.subr.mxu0 0.0
      %3068 = vmatpush1.msra.mxu0 0.0
      %3069 = vmatprep.subr.mxu0 0.0
      %3070 = vmatpush1.msra.mxu0 0.0
      %3071 = vmatprep.subr.mxu0 0.0
      %3072 = vmatpush1.msra.mxu0 0.0
      %3073 = vmatprep.subr.mxu0 0.0
      %3074 = vmatpush1.msra.mxu0 0.0
      %3075 = vmatprep.subr.mxu0 0.0
      %3076 = vmatpush1.msra.mxu0 0.0
      %3077 = vmatprep.subr.mxu0 0.0
      %3078 = vmatpush1.msra.mxu0 0.0
      %3079 = vmatprep.subr.mxu0 0.0
      %3080 = vmatpush1.msra.mxu0 0.0
      %3081 = vmatprep.subr.mxu0 0.0
      %3082 = vmatpush1.msra.mxu0 0.0
      %3083 = vmatprep.subr.mxu0 0.0
      %3084 = vmatpush1.msra.mxu0 0.0
      %3085 = vmatprep.subr.mxu0 0.0
      %3086 = vmatpush1.msra.mxu0 0.0
      %3087 = vmatprep.subr.mxu0 0.0
      %3088 = vmatpush1.msra.mxu0 0.0
      %3089 = vmatprep.subr.mxu0 0.0
      %3090 = vmatpush1.msra.mxu0 %v3061
      %3091 = vmatprep.subr.mxu0 0.0
      %3092 = vmatpush1.msra.mxu0 %v3047
      %3093 = vmatprep.subr.mxu0 0.0
      %3094 = vmatpush1.msra.mxu0 %v3045
      %3095 = vmatprep.subr.mxu0 0.0
      %3096 = vmatpush2.msra.mxu0 0.0
      %3097 = vmatprep.subr.mxu0 0.0
      %3098 = vmatpush2.msra.mxu0 0.0
      %3099 = vmatprep.subr.mxu0 0.0
      %3100 = vmatpush2.msra.mxu0 0.0
      %3101 = vmatprep.subr.mxu0 0.0
      %3102 = vmatpush2.msra.mxu0 0.0
      %3103 = vmatprep.subr.mxu0 0.0
      %3104 = vmatpush2.msra.mxu0 0.0
      %3105 = vmatprep.subr.mxu0 0.0
      %3106 = vmatpush2.msra.mxu0 0.0
      %3107 = vmatprep.subr.mxu0 0.0
      %3108 = vmatpush2.msra.mxu0 0.0
      %3109 = vmatprep.subr.mxu0 0.0
      %3110 = vmatpush2.msra.mxu0 0.0
      %3111 = vmatprep.subr.mxu0 0.0
      %3112 = vmatpush2.msra.mxu0 0.0
      %3113 = vmatprep.subr.mxu0 0.0
      %3114 = vmatpush2.msra.mxu0 0.0
      %3115 = vmatprep.subr.mxu0 0.0
      %3116 = vmatpush2.msra.mxu0 0.0
      %3117 = vmatprep.subr.mxu0 0.0
      %3118 = vmatpush2.msra.mxu0 0.0
      %3119 = vmatprep.subr.mxu0 0.0
      %3120 = vmatpush2.msra.mxu0 0.0
      %3121 = vmatprep.subr.mxu0 0.0
      %3122 = vmatpush2.msra.mxu0 0.0
      %3123 = vmatprep.subr.mxu0 0.0
      %3124 = vmatpush2.msra.mxu0 0.0
      %3125 = vmatprep.subr.mxu0 0.0
      %3126 = vmatpush2.msra.mxu0 0.0
      %3127 = vmatprep.mubr.f32.mxu0 0.0
      %3128 = vmatmul.mubr.f32.gmra.mxu0 %v3053
      %v3129 = vpop.f32.mrf.mxu0
      %v3130 = vadd.f32 0.0, %v3129
      %v3131 = vpop.f32.mrf.mxu0
      %3132 = vmatprep.mubr.f32.mxu0 0.0
      %3133 = vmatmul.mubr.f32.gmra.mxu0 %v3056
      %v3134 = vpop.f32.mrf.mxu0
      %v3135 = vadd.f32 0.0, %v3134
      %v3136 = vpop.f32.mrf.mxu0
      %3137 = vmatprep.mubr.f32.mxu0 0.0
      %3138 = vmatmul.mubr.f32.gmra.mxu0 %v3059
      %v3139 = vpop.f32.mrf.mxu0
      %v3140 = vadd.f32 0.0, %v3139
      %v3141 = vpop.f32.mrf.mxu0
      %3142 = vdwg.mxu0
      %3143 = vrot.lane.b32.xlu0 %v1397, 40
      %v3144 = vpop.permute.xlu0 %3143
      %3145 = vrot.lane.b32.xlu0 %v1446, 40
      %v3146 = vpop.permute.xlu0 %3145
      %3147 = vrot.lane.b32.xlu0 %v1460, 40
      %v3148 = vpop.permute.xlu0 %3147
      %v3152 = vsel %vm1559, %v3041, 0
      %v3155 = vsel %vm1559, %v3042, 0
      %v3158 = vsel %vm1559, %v3043, 0
      %v3160 = vsel %vm1644, %v3148, 0
      %3162 = vmatprep.subr.mxu0 0.0
      %3163 = vmatpush1.msra.mxu0 0.0
      %3164 = vmatprep.subr.mxu0 0.0
      %3165 = vmatpush1.msra.mxu0 0.0
      %3166 = vmatprep.subr.mxu0 0.0
      %3167 = vmatpush1.msra.mxu0 0.0
      %3168 = vmatprep.subr.mxu0 0.0
      %3169 = vmatpush1.msra.mxu0 0.0
      %3170 = vmatprep.subr.mxu0 0.0
      %3171 = vmatpush1.msra.mxu0 0.0
      %3172 = vmatprep.subr.mxu0 0.0
      %3173 = vmatpush1.msra.mxu0 0.0
      %3174 = vmatprep.subr.mxu0 0.0
      %3175 = vmatpush1.msra.mxu0 0.0
      %3176 = vmatprep.subr.mxu0 0.0
      %3177 = vmatpush1.msra.mxu0 0.0
      %3178 = vmatprep.subr.mxu0 0.0
      %3179 = vmatpush1.msra.mxu0 0.0
      %3180 = vmatprep.subr.mxu0 0.0
      %3181 = vmatpush1.msra.mxu0 0.0
      %3182 = vmatprep.subr.mxu0 0.0
      %3183 = vmatpush1.msra.mxu0 0.0
      %3184 = vmatprep.subr.mxu0 0.0
      %3185 = vmatpush1.msra.mxu0 0.0
      %3186 = vmatprep.subr.mxu0 0.0
      %3187 = vmatpush1.msra.mxu0 0.0
      %3188 = vmatprep.subr.mxu0 0.0
      %3189 = vmatpush1.msra.mxu0 %v3160
      %3190 = vmatprep.subr.mxu0 0.0
      %3191 = vmatpush1.msra.mxu0 %v3146
      %3192 = vmatprep.subr.mxu0 0.0
      %3193 = vmatpush1.msra.mxu0 %v3144
      %3194 = vmatprep.subr.mxu0 0.0
      %3195 = vmatpush2.msra.mxu0 0.0
      %3196 = vmatprep.subr.mxu0 0.0
      %3197 = vmatpush2.msra.mxu0 0.0
      %3198 = vmatprep.subr.mxu0 0.0
      %3199 = vmatpush2.msra.mxu0 0.0
      %3200 = vmatprep.subr.mxu0 0.0
      %3201 = vmatpush2.msra.mxu0 0.0
      %3202 = vmatprep.subr.mxu0 0.0
      %3203 = vmatpush2.msra.mxu0 0.0
      %3204 = vmatprep.subr.mxu0 0.0
      %3205 = vmatpush2.msra.mxu0 0.0
      %3206 = vmatprep.subr.mxu0 0.0
      %3207 = vmatpush2.msra.mxu0 0.0
      %3208 = vmatprep.subr.mxu0 0.0
      %3209 = vmatpush2.msra.mxu0 0.0
      %3210 = vmatprep.subr.mxu0 0.0
      %3211 = vmatpush2.msra.mxu0 0.0
      %3212 = vmatprep.subr.mxu0 0.0
      %3213 = vmatpush2.msra.mxu0 0.0
      %3214 = vmatprep.subr.mxu0 0.0
      %3215 = vmatpush2.msra.mxu0 0.0
      %3216 = vmatprep.subr.mxu0 0.0
      %3217 = vmatpush2.msra.mxu0 0.0
      %3218 = vmatprep.subr.mxu0 0.0
      %3219 = vmatpush2.msra.mxu0 0.0
      %3220 = vmatprep.subr.mxu0 0.0
      %3221 = vmatpush2.msra.mxu0 0.0
      %3222 = vmatprep.subr.mxu0 0.0
      %3223 = vmatpush2.msra.mxu0 0.0
      %3224 = vmatprep.subr.mxu0 0.0
      %3225 = vmatpush2.msra.mxu0 0.0
      %3226 = vmatprep.mubr.f32.mxu0 0.0
      %3227 = vmatmul.mubr.f32.gmra.mxu0 %v3152
      %v3228 = vpop.f32.mrf.mxu0
      %v3229 = vadd.f32 0.0, %v3228
      %v3230 = vpop.f32.mrf.mxu0
      %3231 = vmatprep.mubr.f32.mxu0 0.0
      %3232 = vmatmul.mubr.f32.gmra.mxu0 %v3155
      %v3233 = vpop.f32.mrf.mxu0
      %v3234 = vadd.f32 0.0, %v3233
      %v3235 = vpop.f32.mrf.mxu0
      %3236 = vmatprep.mubr.f32.mxu0 0.0
      %3237 = vmatmul.mubr.f32.gmra.mxu0 %v3158
      %v3238 = vpop.f32.mrf.mxu0
      %v3239 = vadd.f32 0.0, %v3238
      %v3240 = vpop.f32.mrf.mxu0
      %3241 = vdwg.mxu0
      %3248 = vrot.lane.b32.xlu0 %v2186, 8
      %v3249 = vpop.permute.xlu0 %3248
      %3250 = vrot.lane.b32.xlu0 %v2191, 8
      %v3251 = vpop.permute.xlu0 %3250
      %3252 = vrot.lane.b32.xlu0 %v2196, 8
      %v3253 = vpop.permute.xlu0 %3252
      %3254 = vrot.lane.b32.xlu0 %v2285, 8
      %v3255 = vpop.permute.xlu0 %3254
      %3256 = vrot.lane.b32.xlu0 %v2290, 8
      %v3257 = vpop.permute.xlu0 %3256
      %3258 = vrot.lane.b32.xlu0 %v2295, 8
      %v3259 = vpop.permute.xlu0 %3258
      %3272 = vrot.lane.b32.xlu0 %v2658, 16
      %v3273 = vpop.permute.xlu0 %3272
      %3274 = vrot.lane.b32.xlu0 %v2663, 16
      %v3275 = vpop.permute.xlu0 %3274
      %3276 = vrot.lane.b32.xlu0 %v2668, 16
      %v3277 = vpop.permute.xlu0 %3276
      %3278 = vrot.lane.b32.xlu0 %v2757, 16
      %v3279 = vpop.permute.xlu0 %3278
      %3280 = vrot.lane.b32.xlu0 %v2762, 16
      %v3281 = vpop.permute.xlu0 %3280
      %3282 = vrot.lane.b32.xlu0 %v2767, 16
      %v3283 = vpop.permute.xlu0 %3282
      %3296 = vrot.lane.b32.xlu0 %v3130, 24
      %v3297 = vpop.permute.xlu0 %3296
      %3298 = vrot.lane.b32.xlu0 %v3135, 24
      %v3299 = vpop.permute.xlu0 %3298
      %3300 = vrot.lane.b32.xlu0 %v3140, 24
      %v3301 = vpop.permute.xlu0 %3300
      %3302 = vrot.lane.b32.xlu0 %v3229, 24
      %v3303 = vpop.permute.xlu0 %3302
      %3304 = vrot.lane.b32.xlu0 %v3234, 24
      %v3305 = vpop.permute.xlu0 %3304
      %3306 = vrot.lane.b32.xlu0 %v3239, 24
      %v3307 = vpop.permute.xlu0 %3306
      %v3314 = vsel %vm1256, %v1714, %v3249
      %v3315 = vsel %vm1256, %v1719, %v3251
      %v3316 = vsel %vm1256, %v1724, %v3253
      %v3317 = vsel %vm1256, %v1813, %v3255
      %v3318 = vsel %vm1256, %v1818, %v3257
      %v3319 = vsel %vm1256, %v1823, %v3259
      %vm3320 = vcmask 130048
      %v3321 = vsel %vm3320, %v3314, %v3273
      %v3322 = vsel %vm3320, %v3315, %v3275
      %v3323 = vsel %vm3320, %v3316, %v3277
      %v3324 = vsel %vm3320, %v3317, %v3279
      %v3325 = vsel %vm3320, %v3318, %v3281
      %v3326 = vsel %vm3320, %v3319, %v3283
      %vm3327 = vcmask 195584
      %v3328 = vsel %vm3327, %v3321, %v3297
      %v3329 = vsel %vm3327, %v3322, %v3299
      %v3330 = vsel %vm3327, %v3323, %v3301
      %v3331 = vsel %vm3327, %v3324, %v3303
      %v3332 = vsel %vm3327, %v3325, %v3305
      %v3333 = vsel %vm3327, %v3326, %v3307
      %v3340 = vcombine.high %v3328, %v3328
      %v3342 = vunpack.c.l.s4 1966171168
      %v3343 = vunpack.c.0.s8 %v3342
      %v3344 = vlaneseq
      %v3345 = vshrl.u32 %v3344, 7
      %v3346 = vsub.s32 %v3343, %v3345
      %v3347 = vrot.slane %v3328, %v3346
      %v3349 = vunpack.c.l.s4 1966171168
      %v3350 = vunpack.c.0.s8 %v3349
      %v3351 = vlaneseq
      %v3352 = vshrl.u32 %v3351, 7
      %v3353 = vsub.s32 %v3350, %v3352
      %v3354 = vrot.slane %v3340, %v3353
      %v3355 = vcombine.high %v3347, %v3347
      %v3356 = vcombine.high %v3354, %v3354
      %v3358 = vunpack.c.l.s4 1966171168
      %v3359 = vunpack.c.0.s8 %v3358
      %v3360 = vlaneseq
      %v3361 = vshrl.u32 %v3360, 7
      %v3362 = vsub.s32 %v3359, %v3361
      %v3363 = vrot.slane %v3347, %v3362
      %v3365 = vunpack.c.l.s4 1966171168
      %v3366 = vunpack.c.0.s8 %v3365
      %v3367 = vlaneseq
      %v3368 = vshrl.u32 %v3367, 7
      %v3369 = vsub.s32 %v3366, %v3368
      %v3370 = vrot.slane %v3354, %v3369
      %v3372 = vunpack.c.l.s4 1966171168
      %v3373 = vunpack.c.0.s8 %v3372
      %v3374 = vlaneseq
      %v3375 = vshrl.u32 %v3374, 7
      %v3376 = vsub.s32 %v3373, %v3375
      %v3377 = vrot.slane %v3355, %v3376
      %v3379 = vunpack.c.l.s4 1966171168
      %v3380 = vunpack.c.0.s8 %v3379
      %v3381 = vlaneseq
      %v3382 = vshrl.u32 %v3381, 7
      %v3383 = vsub.s32 %v3380, %v3382
      %v3384 = vrot.slane %v3356, %v3383
      %v3385 = vcombine.high %v3363, %v3363
      %v3386 = vcombine.high %v3370, %v3370
      %v3387 = vcombine.high %v3377, %v3377
      %v3388 = vcombine.high %v3384, %v3384
      %v3389 = vcombine.high %v3329, %v3329
      %v3391 = vunpack.c.l.s4 1966171168
      %v3392 = vunpack.c.0.s8 %v3391
      %v3393 = vlaneseq
      %v3394 = vshrl.u32 %v3393, 7
      %v3395 = vsub.s32 %v3392, %v3394
      %v3396 = vrot.slane %v3329, %v3395
      %v3398 = vunpack.c.l.s4 1966171168
      %v3399 = vunpack.c.0.s8 %v3398
      %v3400 = vlaneseq
      %v3401 = vshrl.u32 %v3400, 7
      %v3402 = vsub.s32 %v3399, %v3401
      %v3403 = vrot.slane %v3389, %v3402
      %v3404 = vcombine.high %v3396, %v3396
      %v3405 = vcombine.high %v3403, %v3403
      %v3407 = vunpack.c.l.s4 1966171168
      %v3408 = vunpack.c.0.s8 %v3407
      %v3409 = vlaneseq
      %v3410 = vshrl.u32 %v3409, 7
      %v3411 = vsub.s32 %v3408, %v3410
      %v3412 = vrot.slane %v3396, %v3411
      %v3414 = vunpack.c.l.s4 1966171168
      %v3415 = vunpack.c.0.s8 %v3414
      %v3416 = vlaneseq
      %v3417 = vshrl.u32 %v3416, 7
      %v3418 = vsub.s32 %v3415, %v3417
      %v3419 = vrot.slane %v3403, %v3418
      %v3421 = vunpack.c.l.s4 1966171168
      %v3422 = vunpack.c.0.s8 %v3421
      %v3423 = vlaneseq
      %v3424 = vshrl.u32 %v3423, 7
      %v3425 = vsub.s32 %v3422, %v3424
      %v3426 = vrot.slane %v3404, %v3425
      %v3428 = vunpack.c.l.s4 1966171168
      %v3429 = vunpack.c.0.s8 %v3428
      %v3430 = vlaneseq
      %v3431 = vshrl.u32 %v3430, 7
      %v3432 = vsub.s32 %v3429, %v3431
      %v3433 = vrot.slane %v3405, %v3432
      %v3434 = vcombine.high %v3412, %v3412
      %v3435 = vcombine.high %v3419, %v3419
      %v3436 = vcombine.high %v3426, %v3426
      %v3437 = vcombine.high %v3433, %v3433
      %v3439 = vunpack.c.l.s4 1966171168
      %v3440 = vunpack.c.0.s8 %v3439
      %v3441 = vlaneseq
      %v3442 = vshrl.u32 %v3441, 7
      %v3443 = vsub.s32 %v3440, %v3442
      %v3444 = vrot.slane %v3330, %v3443
      %v3446 = vunpack.c.l.s4 1966171168
      %v3447 = vunpack.c.0.s8 %v3446
      %v3448 = vlaneseq
      %v3449 = vshrl.u32 %v3448, 7
      %v3450 = vsub.s32 %v3447, %v3449
      %v3451 = vrot.slane %v3444, %v3450
      %v3452 = vcombine.high %v3331, %v3331
      %v3454 = vunpack.c.l.s4 1966171168
      %v3455 = vunpack.c.0.s8 %v3454
      %v3456 = vlaneseq
      %v3457 = vshrl.u32 %v3456, 7
      %v3458 = vsub.s32 %v3455, %v3457
      %v3459 = vrot.slane %v3331, %v3458
      %v3461 = vunpack.c.l.s4 1966171168
      %v3462 = vunpack.c.0.s8 %v3461
      %v3463 = vlaneseq
      %v3464 = vshrl.u32 %v3463, 7
      %v3465 = vsub.s32 %v3462, %v3464
      %v3466 = vrot.slane %v3452, %v3465
      %v3467 = vcombine.high %v3459, %v3459
      %v3468 = vcombine.high %v3466, %v3466
      %v3470 = vunpack.c.l.s4 1966171168
      %v3471 = vunpack.c.0.s8 %v3470
      %v3472 = vlaneseq
      %v3473 = vshrl.u32 %v3472, 7
      %v3474 = vsub.s32 %v3471, %v3473
      %v3475 = vrot.slane %v3459, %v3474
      %v3477 = vunpack.c.l.s4 1966171168
      %v3478 = vunpack.c.0.s8 %v3477
      %v3479 = vlaneseq
      %v3480 = vshrl.u32 %v3479, 7
      %v3481 = vsub.s32 %v3478, %v3480
      %v3482 = vrot.slane %v3466, %v3481
      %v3484 = vunpack.c.l.s4 1966171168
      %v3485 = vunpack.c.0.s8 %v3484
      %v3486 = vlaneseq
      %v3487 = vshrl.u32 %v3486, 7
      %v3488 = vsub.s32 %v3485, %v3487
      %v3489 = vrot.slane %v3467, %v3488
      %v3491 = vunpack.c.l.s4 1966171168
      %v3492 = vunpack.c.0.s8 %v3491
      %v3493 = vlaneseq
      %v3494 = vshrl.u32 %v3493, 7
      %v3495 = vsub.s32 %v3492, %v3494
      %v3496 = vrot.slane %v3468, %v3495
      %v3497 = vcombine.high %v3475, %v3475
      %v3498 = vcombine.high %v3482, %v3482
      %v3499 = vcombine.high %v3489, %v3489
      %v3500 = vcombine.high %v3496, %v3496
      %v3501 = vcombine.high %v3332, %v3332
      %v3503 = vunpack.c.l.s4 1966171168
      %v3504 = vunpack.c.0.s8 %v3503
      %v3505 = vlaneseq
      %v3506 = vshrl.u32 %v3505, 7
      %v3507 = vsub.s32 %v3504, %v3506
      %v3508 = vrot.slane %v3332, %v3507
      %v3510 = vunpack.c.l.s4 1966171168
      %v3511 = vunpack.c.0.s8 %v3510
      %v3512 = vlaneseq
      %v3513 = vshrl.u32 %v3512, 7
      %v3514 = vsub.s32 %v3511, %v3513
      %v3515 = vrot.slane %v3501, %v3514
      %v3516 = vcombine.high %v3508, %v3508
      %v3517 = vcombine.high %v3515, %v3515
      %v3519 = vunpack.c.l.s4 1966171168
      %v3520 = vunpack.c.0.s8 %v3519
      %v3521 = vlaneseq
      %v3522 = vshrl.u32 %v3521, 7
      %v3523 = vsub.s32 %v3520, %v3522
      %v3524 = vrot.slane %v3508, %v3523
      %v3526 = vunpack.c.l.s4 1966171168
      %v3527 = vunpack.c.0.s8 %v3526
      %v3528 = vlaneseq
      %v3529 = vshrl.u32 %v3528, 7
      %v3530 = vsub.s32 %v3527, %v3529
      %v3531 = vrot.slane %v3515, %v3530
      %v3533 = vunpack.c.l.s4 1966171168
      %v3534 = vunpack.c.0.s8 %v3533
      %v3535 = vlaneseq
      %v3536 = vshrl.u32 %v3535, 7
      %v3537 = vsub.s32 %v3534, %v3536
      %v3538 = vrot.slane %v3516, %v3537
      %v3540 = vunpack.c.l.s4 1966171168
      %v3541 = vunpack.c.0.s8 %v3540
      %v3542 = vlaneseq
      %v3543 = vshrl.u32 %v3542, 7
      %v3544 = vsub.s32 %v3541, %v3543
      %v3545 = vrot.slane %v3517, %v3544
      %v3546 = vcombine.high %v3524, %v3524
      %v3547 = vcombine.high %v3531, %v3531
      %v3548 = vcombine.high %v3538, %v3538
      %v3549 = vcombine.high %v3545, %v3545
      %v3551 = vunpack.c.l.s4 1966171168
      %v3552 = vunpack.c.0.s8 %v3551
      %v3553 = vlaneseq
      %v3554 = vshrl.u32 %v3553, 7
      %v3555 = vsub.s32 %v3552, %v3554
      %v3556 = vrot.slane %v3333, %v3555
      %v3558 = vunpack.c.l.s4 1966171168
      %v3559 = vunpack.c.0.s8 %v3558
      %v3560 = vlaneseq
      %v3561 = vshrl.u32 %v3560, 7
      %v3562 = vsub.s32 %v3559, %v3561
      %v3563 = vrot.slane %v3556, %v3562
      %v3564 = vld [vmem:[%s459] sm:$0xff]
      %v3565 = vld [vmem:[%s459 + $0x8] sm:$0xff]
      %v3566 = vld [vmem:[%s459 + $0x10] sm:$0xff]
      %v3567 = vld [vmem:[%s459 + $0x18] sm:$0xff]
      %v3568 = vcombine.low %v3363, %v3377
      %v3569 = vcombine.low %v3385, %v3387
      %v3570 = vcombine.low %v3370, %v3384
      %v3571 = vcombine.low %v3386, %v3388
      %v3573 = vunpack.c.l.s4 1966171168
      %v3574 = vunpack.c.0.s8 %v3573
      %v3575 = vlaneseq
      %v3576 = vshrl.u32 %v3575, 7
      %v3577 = vsub.s32 %v3574, %v3576
      %v3578 = vrot.slane %v3568, %v3577
      %v3580 = vunpack.c.l.s4 1966171168
      %v3581 = vunpack.c.0.s8 %v3580
      %v3582 = vlaneseq
      %v3583 = vshrl.u32 %v3582, 7
      %v3584 = vsub.s32 %v3581, %v3583
      %v3585 = vrot.slane %v3569, %v3584
      %v3587 = vunpack.c.l.s4 1966171168
      %v3588 = vunpack.c.0.s8 %v3587
      %v3589 = vlaneseq
      %v3590 = vshrl.u32 %v3589, 7
      %v3591 = vsub.s32 %v3588, %v3590
      %v3592 = vrot.slane %v3570, %v3591
      %v3594 = vunpack.c.l.s4 1966171168
      %v3595 = vunpack.c.0.s8 %v3594
      %v3596 = vlaneseq
      %v3597 = vshrl.u32 %v3596, 7
      %v3598 = vsub.s32 %v3595, %v3597
      %v3599 = vrot.slane %v3571, %v3598
      %v3600 = vcombine.low %v3578, %v3585
      %v3601 = vcombine.low %v3592, %v3599
      %v3603 = vunpack.c.l.s4 1966171168
      %v3604 = vunpack.c.0.s8 %v3603
      %v3605 = vlaneseq
      %v3606 = vshrl.u32 %v3605, 7
      %v3607 = vsub.s32 %v3604, %v3606
      %v3608 = vrot.slane %v3600, %v3607
      %v3610 = vunpack.c.l.s4 1966171168
      %v3611 = vunpack.c.0.s8 %v3610
      %v3612 = vlaneseq
      %v3613 = vshrl.u32 %v3612, 7
      %v3614 = vsub.s32 %v3611, %v3613
      %v3615 = vrot.slane %v3601, %v3614
      %v3616 = vcombine.low %v3608, %v3615
      %v3617 = vcombine.low %v3412, %v3426
      %v3618 = vcombine.low %v3434, %v3436
      %v3619 = vcombine.low %v3419, %v3433
      %v3620 = vcombine.low %v3435, %v3437
      %v3622 = vunpack.c.l.s4 1966171168
      %v3623 = vunpack.c.0.s8 %v3622
      %v3624 = vlaneseq
      %v3625 = vshrl.u32 %v3624, 7
      %v3626 = vsub.s32 %v3623, %v3625
      %v3627 = vrot.slane %v3617, %v3626
      %v3629 = vunpack.c.l.s4 1966171168
      %v3630 = vunpack.c.0.s8 %v3629
      %v3631 = vlaneseq
      %v3632 = vshrl.u32 %v3631, 7
      %v3633 = vsub.s32 %v3630, %v3632
      %v3634 = vrot.slane %v3618, %v3633
      %v3636 = vunpack.c.l.s4 1966171168
      %v3637 = vunpack.c.0.s8 %v3636
      %v3638 = vlaneseq
      %v3639 = vshrl.u32 %v3638, 7
      %v3640 = vsub.s32 %v3637, %v3639
      %v3641 = vrot.slane %v3619, %v3640
      %v3643 = vunpack.c.l.s4 1966171168
      %v3644 = vunpack.c.0.s8 %v3643
      %v3645 = vlaneseq
      %v3646 = vshrl.u32 %v3645, 7
      %v3647 = vsub.s32 %v3644, %v3646
      %v3648 = vrot.slane %v3620, %v3647
      %v3649 = vcombine.low %v3627, %v3634
      %v3650 = vcombine.low %v3641, %v3648
      %v3652 = vunpack.c.l.s4 1966171168
      %v3653 = vunpack.c.0.s8 %v3652
      %v3654 = vlaneseq
      %v3655 = vshrl.u32 %v3654, 7
      %v3656 = vsub.s32 %v3653, %v3655
      %v3657 = vrot.slane %v3649, %v3656
      %v3659 = vunpack.c.l.s4 1966171168
      %v3660 = vunpack.c.0.s8 %v3659
      %v3661 = vlaneseq
      %v3662 = vshrl.u32 %v3661, 7
      %v3663 = vsub.s32 %v3660, %v3662
      %v3664 = vrot.slane %v3650, %v3663
      %v3665 = vcombine.low %v3657, %v3664
      %v3666 = vcombine.low %v3451, %v3475
      %v3667 = vcombine.low %v3489, %v3497
      %v3668 = vcombine.low %v3499, %v3482
      %v3669 = vcombine.low %v3496, %v3498
      %v3671 = vunpack.c.l.s4 1966171168
      %v3672 = vunpack.c.0.s8 %v3671
      %v3673 = vlaneseq
      %v3674 = vshrl.u32 %v3673, 7
      %v3675 = vsub.s32 %v3672, %v3674
      %v3676 = vrot.slane %v3666, %v3675
      %v3678 = vunpack.c.l.s4 1966171168
      %v3679 = vunpack.c.0.s8 %v3678
      %v3680 = vlaneseq
      %v3681 = vshrl.u32 %v3680, 7
      %v3682 = vsub.s32 %v3679, %v3681
      %v3683 = vrot.slane %v3667, %v3682
      %v3685 = vunpack.c.l.s4 1966171168
      %v3686 = vunpack.c.0.s8 %v3685
      %v3687 = vlaneseq
      %v3688 = vshrl.u32 %v3687, 7
      %v3689 = vsub.s32 %v3686, %v3688
      %v3690 = vrot.slane %v3668, %v3689
      %v3692 = vunpack.c.l.s4 1966171168
      %v3693 = vunpack.c.0.s8 %v3692
      %v3694 = vlaneseq
      %v3695 = vshrl.u32 %v3694, 7
      %v3696 = vsub.s32 %v3693, %v3695
      %v3697 = vrot.slane %v3669, %v3696
      %v3698 = vcombine.low %v3676, %v3683
      %v3699 = vcombine.low %v3690, %v3697
      %v3701 = vunpack.c.l.s4 1966171168
      %v3702 = vunpack.c.0.s8 %v3701
      %v3703 = vlaneseq
      %v3704 = vshrl.u32 %v3703, 7
      %v3705 = vsub.s32 %v3702, %v3704
      %v3706 = vrot.slane %v3698, %v3705
      %v3708 = vunpack.c.l.s4 1966171168
      %v3709 = vunpack.c.0.s8 %v3708
      %v3710 = vlaneseq
      %v3711 = vshrl.u32 %v3710, 7
      %v3712 = vsub.s32 %v3709, %v3711
      %v3713 = vrot.slane %v3699, %v3712
      %v3714 = vcombine.low %v3706, %v3713
      %v3715 = vcombine.low %v3500, %v3524
      %v3716 = vcombine.low %v3538, %v3546
      %v3717 = vcombine.low %v3548, %v3531
      %v3718 = vcombine.low %v3545, %v3547
      %v3720 = vunpack.c.l.s4 1966171168
      %v3721 = vunpack.c.0.s8 %v3720
      %v3722 = vlaneseq
      %v3723 = vshrl.u32 %v3722, 7
      %v3724 = vsub.s32 %v3721, %v3723
      %v3725 = vrot.slane %v3715, %v3724
      %v3727 = vunpack.c.l.s4 1966171168
      %v3728 = vunpack.c.0.s8 %v3727
      %v3729 = vlaneseq
      %v3730 = vshrl.u32 %v3729, 7
      %v3731 = vsub.s32 %v3728, %v3730
      %v3732 = vrot.slane %v3716, %v3731
      %v3734 = vunpack.c.l.s4 1966171168
      %v3735 = vunpack.c.0.s8 %v3734
      %v3736 = vlaneseq
      %v3737 = vshrl.u32 %v3736, 7
      %v3738 = vsub.s32 %v3735, %v3737
      %v3739 = vrot.slane %v3717, %v3738
      %v3741 = vunpack.c.l.s4 1966171168
      %v3742 = vunpack.c.0.s8 %v3741
      %v3743 = vlaneseq
      %v3744 = vshrl.u32 %v3743, 7
      %v3745 = vsub.s32 %v3742, %v3744
      %v3746 = vrot.slane %v3718, %v3745
      %v3747 = vcombine.low %v3725, %v3732
      %v3748 = vcombine.low %v3739, %v3746
      %v3750 = vunpack.c.l.s4 1966171168
      %v3751 = vunpack.c.0.s8 %v3750
      %v3752 = vlaneseq
      %v3753 = vshrl.u32 %v3752, 7
      %v3754 = vsub.s32 %v3751, %v3753
      %v3755 = vrot.slane %v3747, %v3754
      %v3757 = vunpack.c.l.s4 1966171168
      %v3758 = vunpack.c.0.s8 %v3757
      %v3759 = vlaneseq
      %v3760 = vshrl.u32 %v3759, 7
      %v3761 = vsub.s32 %v3758, %v3760
      %v3762 = vrot.slane %v3748, %v3761
      %v3763 = vcombine.low %v3755, %v3762
      %v3764 = vcombine.low %v3549, %v3563
      %v3766 = vunpack.c.l.s4 1966171168
      %v3767 = vunpack.c.0.s8 %v3766
      %v3768 = vlaneseq
      %v3769 = vshrl.u32 %v3768, 7
      %v3770 = vsub.s32 %v3767, %v3769
      %v3771 = vrot.slane %v3764, %v3770
      %v3773 = vunpack.c.l.s4 1966171168
      %v3774 = vunpack.c.0.s8 %v3773
      %v3775 = vlaneseq
      %v3776 = vshrl.u32 %v3775, 7
      %v3777 = vsub.s32 %v3774, %v3776
      %v3778 = vrot.slane %v3771, %v3777
      %v3779 = vsel %vm713, %v3616, 0
      %v3781 = vsel %vm713, %v3665, 0
      %v3783 = vsel %vm713, %v3714, 0
      %v3785 = vsel %vm713, %v3763, 0
      %v3787 = vsel %vm713, %v3778, 0
      %3789 = vmatprep.subr.mxu0 0.0
      %3790 = vmatpush1.msra.mxu0 0.0
      %3791 = vmatprep.subr.mxu0 0.0
      %3792 = vmatpush1.msra.mxu0 0.0
      %3793 = vmatprep.subr.mxu0 0.0
      %3794 = vmatpush1.msra.mxu0 0.0
      %3795 = vmatprep.subr.mxu0 0.0
      %3796 = vmatpush1.msra.mxu0 0.0
      %3797 = vmatprep.subr.mxu0 0.0
      %3798 = vmatpush1.msra.mxu0 0.0
      %3799 = vmatprep.subr.mxu0 0.0
      %3800 = vmatpush1.msra.mxu0 0.0
      %3801 = vmatprep.subr.mxu0 0.0
      %3802 = vmatpush1.msra.mxu0 0.0
      %3803 = vmatprep.subr.mxu0 0.0
      %3804 = vmatpush1.msra.mxu0 0.0
      %3805 = vmatprep.subr.mxu0 0.0
      %3806 = vmatpush1.msra.mxu0 0.0
      %3807 = vmatprep.subr.mxu0 0.0
      %3808 = vmatpush1.msra.mxu0 0.0
      %3809 = vmatprep.subr.mxu0 0.0
      %3810 = vmatpush1.msra.mxu0 0.0
      %3811 = vmatprep.subr.mxu0 0.0
      %3812 = vmatpush1.msra.mxu0 0.0
      %3813 = vmatprep.subr.mxu0 0.0
      %3814 = vmatpush1.msra.mxu0 %v3567
      %3815 = vmatprep.subr.mxu0 0.0
      %3816 = vmatpush1.msra.mxu0 %v3566
      %3817 = vmatprep.subr.mxu0 0.0
      %3818 = vmatpush1.msra.mxu0 %v3565
      %3819 = vmatprep.subr.mxu0 0.0
      %3820 = vmatpush1.msra.mxu0 %v3564
      %3821 = vmatprep.subr.mxu0 0.0
      %3822 = vmatpush2.msra.mxu0 0.0
      %3823 = vmatprep.subr.mxu0 0.0
      %3824 = vmatpush2.msra.mxu0 0.0
      %3825 = vmatprep.subr.mxu0 0.0
      %3826 = vmatpush2.msra.mxu0 0.0
      %3827 = vmatprep.subr.mxu0 0.0
      %3828 = vmatpush2.msra.mxu0 0.0
      %3829 = vmatprep.subr.mxu0 0.0
      %3830 = vmatpush2.msra.mxu0 0.0
      %3831 = vmatprep.subr.mxu0 0.0
      %3832 = vmatpush2.msra.mxu0 0.0
      %3833 = vmatprep.subr.mxu0 0.0
      %3834 = vmatpush2.msra.mxu0 0.0
      %3835 = vmatprep.subr.mxu0 0.0
      %3836 = vmatpush2.msra.mxu0 0.0
      %3837 = vmatprep.subr.mxu0 0.0
      %3838 = vmatpush2.msra.mxu0 0.0
      %3839 = vmatprep.subr.mxu0 0.0
      %3840 = vmatpush2.msra.mxu0 0.0
      %3841 = vmatprep.subr.mxu0 0.0
      %3842 = vmatpush2.msra.mxu0 0.0
      %3843 = vmatprep.subr.mxu0 0.0
      %3844 = vmatpush2.msra.mxu0 0.0
      %3845 = vmatprep.subr.mxu0 0.0
      %3846 = vmatpush2.msra.mxu0 0.0
      %3847 = vmatprep.subr.mxu0 0.0
      %3848 = vmatpush2.msra.mxu0 0.0
      %3849 = vmatprep.subr.mxu0 0.0
      %3850 = vmatpush2.msra.mxu0 0.0
      %3851 = vmatprep.subr.mxu0 0.0
      %3852 = vmatpush2.msra.mxu0 0.0
      %3853 = vmatprep.mubr.f32.mxu0 0.0
      %3854 = vmatmul.mubr.f32.gmra.mxu0 %v3779
      %v3855 = vpop.f32.mrf.mxu0
      %v3856 = vadd.f32 0.0, %v3855
      %v3857 = vpop.f32.mrf.mxu0
      %3858 = vmatprep.mubr.f32.mxu0 0.0
      %3859 = vmatmul.mubr.f32.gmra.mxu0 %v3781
      %v3860 = vpop.f32.mrf.mxu0
      %v3861 = vadd.f32 0.0, %v3860
      %v3862 = vpop.f32.mrf.mxu0
      %3863 = vmatprep.mubr.f32.mxu0 0.0
      %3864 = vmatmul.mubr.f32.gmra.mxu0 %v3783
      %v3865 = vpop.f32.mrf.mxu0
      %v3866 = vadd.f32 0.0, %v3865
      %v3867 = vpop.f32.mrf.mxu0
      %3868 = vmatprep.mubr.f32.mxu0 0.0
      %3869 = vmatmul.mubr.f32.gmra.mxu0 %v3785
      %v3870 = vpop.f32.mrf.mxu0
      %v3871 = vadd.f32 0.0, %v3870
      %v3872 = vpop.f32.mrf.mxu0
      %3873 = vmatprep.mubr.f32.mxu0 0.0
      %3874 = vmatmul.mubr.f32.gmra.mxu0 %v3787
      %v3875 = vpop.f32.mrf.mxu0
      %v3876 = vadd.f32 0.0, %v3875
      %v3877 = vpop.f32.mrf.mxu0
      %3878 = vdwg.mxu0
      %v3879 = vadd.f32 %v708, %v3856
      %v3880 = vadd.f32 %v709, %v3861
      %v3881 = vadd.f32 %v710, %v3866
      %v3882 = vadd.f32 %v711, %v3871
      %v3883 = vadd.f32 %v712, %v3876
      %v3884 = vlaneseq
      %v3885 = vshrl.u32 %v3884, 7
      %v3886 = vsub.s32 4, %v3885
      %v3887 = vrot.slane %v707, %v3886
      %v3888 = vadd.f32 %v3879, %v3887
      %v3889 = vadd.f32 %v3880, %v3887
      %v3890 = vadd.f32 %v3881, %v3887
      %v3891 = vadd.f32 %v3882, %v3887
      %v3892 = vadd.f32 %v3883, %v3887
      %v3893 = vsel %vm713, %v3888, 0.0
      %3894 = vadd.xlane.f32.xlu0 %v3893
      %v3895 = vpop.xlane.xlu0 %3894
      %v3896 = vsel %vm713, %v3889, 0.0
      %3897 = vadd.xlane.f32.xlu0 %v3896
      %v3898 = vpop.xlane.xlu0 %3897
      %v3899 = vsel %vm713, %v3890, 0.0
      %3900 = vadd.xlane.f32.xlu0 %v3899
      %v3901 = vpop.xlane.xlu0 %3900
      %v3902 = vsel %vm713, %v3891, 0.0
      %3903 = vadd.xlane.f32.xlu0 %v3902
      %v3904 = vpop.xlane.xlu0 %3903
      %v3905 = vsel %vm726, %v3892, 0.0
      %3906 = vadd.xlane.f32.xlu0 %v3905
      %v3907 = vpop.xlane.xlu0 %3906
      %v3908 = vmul.f32 %v3895, %v730
      %v3909 = vmul.f32 %v3898, %v730
      %v3910 = vmul.f32 %v3901, %v730
      %v3911 = vmul.f32 %v3904, %v730
      %v3912 = vmul.f32 %v3907, %v730
      %v3913 = vsub.f32 %v3888, %v3908
      %v3914 = vsub.f32 %v3889, %v3909
      %v3915 = vsub.f32 %v3890, %v3910
      %v3916 = vsub.f32 %v3891, %v3911
      %v3917 = vsub.f32 %v3892, %v3912
      %v3918 = vmul.f32 %v3913, %v3913
      %v3919 = vmul.f32 %v3914, %v3914
      %v3920 = vmul.f32 %v3915, %v3915
      %v3921 = vmul.f32 %v3916, %v3916
      %v3922 = vmul.f32 %v3917, %v3917
      %v3923 = vsel %vm713, %v3918, 0.0
      %3924 = vadd.xlane.f32.xlu0 %v3923
      %v3925 = vpop.xlane.xlu0 %3924
      %v3926 = vsel %vm713, %v3919, 0.0
      %3927 = vadd.xlane.f32.xlu0 %v3926
      %v3928 = vpop.xlane.xlu0 %3927
      %v3929 = vsel %vm713, %v3920, 0.0
      %3930 = vadd.xlane.f32.xlu0 %v3929
      %v3931 = vpop.xlane.xlu0 %3930
      %v3932 = vsel %vm713, %v3921, 0.0
      %3933 = vadd.xlane.f32.xlu0 %v3932
      %v3934 = vpop.xlane.xlu0 %3933
      %v3935 = vsel %vm726, %v3922, 0.0
      %3936 = vadd.xlane.f32.xlu0 %v3935
      %v3937 = vpop.xlane.xlu0 %3936
      %v3938 = vmul.f32 %v3925, %v730
      %v3939 = vmul.f32 %v3928, %v730
      %v3940 = vmul.f32 %v3931, %v730
      %v3941 = vmul.f32 %v3934, %v730
      %v3942 = vmul.f32 %v3937, %v730
      %v3943 = vadd.f32 %v3938, 1e-05
      %v3944 = vadd.f32 %v3939, 1e-05
      %v3945 = vadd.f32 %v3940, 1e-05
      %v3946 = vadd.f32 %v3941, 1e-05
      %v3947 = vadd.f32 %v3942, 1e-05
      %v3948 = vrsqrt.pop %v3943
      %v3949 = vrsqrt.pop %v3944
      %v3950 = vrsqrt.pop %v3945
      %v3951 = vrsqrt.pop %v3946
      %v3952 = vrsqrt.pop %v3947
      %v3953 = vmul.f32 %v3913, %v3948
      %v3954 = vmul.f32 %v3914, %v3949
      %v3955 = vmul.f32 %v3915, %v3950
      %v3956 = vmul.f32 %v3916, %v3951
      %v3957 = vmul.f32 %v3917, %v3952
      %v3958 = vlaneseq
      %v3959 = vshrl.u32 %v3958, 7
      %v3960 = vsub.s32 2, %v3959
      %v3961 = vrot.slane %v707, %v3960
      %v3962 = vmul.f32 %v3953, %v3961
      %v3963 = vmul.f32 %v3954, %v3961
      %v3964 = vmul.f32 %v3955, %v3961
      %v3965 = vmul.f32 %v3956, %v3961
      %v3966 = vmul.f32 %v3957, %v3961
      %v3967 = vlaneseq
      %v3968 = vshrl.u32 %v3967, 7
      %v3969 = vsub.s32 3, %v3968
      %v3970 = vrot.slane %v707, %v3969
      %v3971 = vadd.f32 %v3962, %v3970
      %v3972 = vadd.f32 %v3963, %v3970
      %v3973 = vadd.f32 %v3964, %v3970
      %v3974 = vadd.f32 %v3965, %v3970
      %v3975 = vadd.f32 %v3966, %v3970
      %v3976 = vld [vmem:[%s464] sm:$0xff]
      %v3977 = vld [vmem:[%s464 + $0x8] sm:$0xff]
      %v3978 = vld [vmem:[%s464 + $0x10] sm:$0xff]
      %v3979 = vld [vmem:[%s464 + $0x18] sm:$0xff]
      %v3980 = vld [vmem:[%s472] sm:$0x1]
      %v3982 = vlaneseq
      %v3983 = vshrl.u32 %v3982, 7
      %v3984 = vsub.s32 0, %v3983
      %v3985 = vrot.slane %v3980, %v3984
      %v3988 = vsel %vm713, %v3971, 0
      %v3991 = vsel %vm713, %v3972, 0
      %v3994 = vsel %vm713, %v3973, 0
      %v3997 = vsel %vm713, %v3974, 0
      %v4000 = vsel %vm713, %v3975, 0
      %4002 = vmatprep.subr.mxu0 0.0
      %4003 = vmatpush1.msra.mxu0 0.0
      %4004 = vmatprep.subr.mxu0 0.0
      %4005 = vmatpush1.msra.mxu0 0.0
      %4006 = vmatprep.subr.mxu0 0.0
      %4007 = vmatpush1.msra.mxu0 0.0
      %4008 = vmatprep.subr.mxu0 0.0
      %4009 = vmatpush1.msra.mxu0 0.0
      %4010 = vmatprep.subr.mxu0 0.0
      %4011 = vmatpush1.msra.mxu0 0.0
      %4012 = vmatprep.subr.mxu0 0.0
      %4013 = vmatpush1.msra.mxu0 0.0
      %4014 = vmatprep.subr.mxu0 0.0
      %4015 = vmatpush1.msra.mxu0 0.0
      %4016 = vmatprep.subr.mxu0 0.0
      %4017 = vmatpush1.msra.mxu0 0.0
      %4018 = vmatprep.subr.mxu0 0.0
      %4019 = vmatpush1.msra.mxu0 0.0
      %4020 = vmatprep.subr.mxu0 0.0
      %4021 = vmatpush1.msra.mxu0 0.0
      %4022 = vmatprep.subr.mxu0 0.0
      %4023 = vmatpush1.msra.mxu0 0.0
      %4024 = vmatprep.subr.mxu0 0.0
      %4025 = vmatpush1.msra.mxu0 0.0
      %4026 = vmatprep.subr.mxu0 0.0
      %4027 = vmatpush1.msra.mxu0 %v3979
      %4028 = vmatprep.subr.mxu0 0.0
      %4029 = vmatpush1.msra.mxu0 %v3978
      %4030 = vmatprep.subr.mxu0 0.0
      %4031 = vmatpush1.msra.mxu0 %v3977
      %4032 = vmatprep.subr.mxu0 0.0
      %4033 = vmatpush1.msra.mxu0 %v3976
      %4034 = vmatprep.subr.mxu0 0.0
      %4035 = vmatpush2.msra.mxu0 0.0
      %4036 = vmatprep.subr.mxu0 0.0
      %4037 = vmatpush2.msra.mxu0 0.0
      %4038 = vmatprep.subr.mxu0 0.0
      %4039 = vmatpush2.msra.mxu0 0.0
      %4040 = vmatprep.subr.mxu0 0.0
      %4041 = vmatpush2.msra.mxu0 0.0
      %4042 = vmatprep.subr.mxu0 0.0
      %4043 = vmatpush2.msra.mxu0 0.0
      %4044 = vmatprep.subr.mxu0 0.0
      %4045 = vmatpush2.msra.mxu0 0.0
      %4046 = vmatprep.subr.mxu0 0.0
      %4047 = vmatpush2.msra.mxu0 0.0
      %4048 = vmatprep.subr.mxu0 0.0
      %4049 = vmatpush2.msra.mxu0 0.0
      %4050 = vmatprep.subr.mxu0 0.0
      %4051 = vmatpush2.msra.mxu0 0.0
      %4052 = vmatprep.subr.mxu0 0.0
      %4053 = vmatpush2.msra.mxu0 0.0
      %4054 = vmatprep.subr.mxu0 0.0
      %4055 = vmatpush2.msra.mxu0 0.0
      %4056 = vmatprep.subr.mxu0 0.0
      %4057 = vmatpush2.msra.mxu0 0.0
      %4058 = vmatprep.subr.mxu0 0.0
      %4059 = vmatpush2.msra.mxu0 0.0
      %4060 = vmatprep.subr.mxu0 0.0
      %4061 = vmatpush2.msra.mxu0 0.0
      %4062 = vmatprep.subr.mxu0 0.0
      %4063 = vmatpush2.msra.mxu0 0.0
      %4064 = vmatprep.subr.mxu0 0.0
      %4065 = vmatpush2.msra.mxu0 0.0
      %4066 = vmatprep.mubr.f32.mxu0 0.0
      %4067 = vmatmul.mubr.f32.gmra.mxu0 %v3988
      %v4068 = vpop.f32.mrf.mxu0
      %v4069 = vadd.f32 %v3985, %v4068
      %v4070 = vpop.f32.mrf.mxu0
      %4071 = vmatprep.mubr.f32.mxu0 0.0
      %4072 = vmatmul.mubr.f32.gmra.mxu0 %v3991
      %v4073 = vpop.f32.mrf.mxu0
      %v4074 = vadd.f32 %v3985, %v4073
      %v4075 = vpop.f32.mrf.mxu0
      %4076 = vmatprep.mubr.f32.mxu0 0.0
      %4077 = vmatmul.mubr.f32.gmra.mxu0 %v3994
      %v4078 = vpop.f32.mrf.mxu0
      %v4079 = vadd.f32 %v3985, %v4078
      %v4080 = vpop.f32.mrf.mxu0
      %4081 = vmatprep.mubr.f32.mxu0 0.0
      %4082 = vmatmul.mubr.f32.gmra.mxu0 %v3997
      %v4083 = vpop.f32.mrf.mxu0
      %v4084 = vadd.f32 %v3985, %v4083
      %v4085 = vpop.f32.mrf.mxu0
      %4086 = vmatprep.mubr.f32.mxu0 0.0
      %4087 = vmatmul.mubr.f32.gmra.mxu0 %v4000
      %v4088 = vpop.f32.mrf.mxu0
      %v4089 = vadd.f32 %v3985, %v4088
      %v4090 = vpop.f32.mrf.mxu0
      %4091 = vdwg.mxu0
      %v4092 = vmul.f32 %v4069, 1.702
      %v4093 = vmul.f32 %v4074, 1.702
      %v4094 = vmul.f32 %v4079, 1.702
      %v4095 = vmul.f32 %v4084, 1.702
      %v4096 = vmul.f32 %v4089, 1.702
      %v4097 = vxor.u32 %v4092, 2147483648
      %v4098 = vxor.u32 %v4093, 2147483648
      %v4099 = vxor.u32 %v4094, 2147483648
      %v4100 = vxor.u32 %v4095, 2147483648
      %v4101 = vxor.u32 %v4096, 2147483648
      %v4102 = vmul.f32 %v4097, 1.442695
      %v4103 = vpow.pop %v4102
      %v4104 = vmul.f32 %v4098, 1.442695
      %v4105 = vpow.pop %v4104
      %v4106 = vmul.f32 %v4099, 1.442695
      %v4107 = vpow.pop %v4106
      %v4108 = vmul.f32 %v4100, 1.442695
      %v4109 = vpow.pop %v4108
      %v4110 = vmul.f32 %v4101, 1.442695
      %v4111 = vpow.pop %v4110
      %v4112 = vadd.f32 %v4103, 1.0
      %v4113 = vadd.f32 %v4105, 1.0
      %v4114 = vadd.f32 %v4107, 1.0
      %v4115 = vadd.f32 %v4109, 1.0
      %v4116 = vadd.f32 %v4111, 1.0
      %v4117 = vrcp.pop %v4112
      %v4118 = vmul.f32 1.0, %v4117
      %v4119 = vrcp.pop %v4113
      %v4120 = vmul.f32 1.0, %v4119
      %v4121 = vrcp.pop %v4114
      %v4122 = vmul.f32 1.0, %v4121
      %v4123 = vrcp.pop %v4115
      %v4124 = vmul.f32 1.0, %v4123
      %v4125 = vrcp.pop %v4116
      %v4126 = vmul.f32 1.0, %v4125
      %v4127 = vmul.f32 %v4069, %v4118
      %v4128 = vmul.f32 %v4074, %v4120
      %v4129 = vmul.f32 %v4079, %v4122
      %v4130 = vmul.f32 %v4084, %v4124
      %v4131 = vmul.f32 %v4089, %v4126
      %v4132 = vld [vmem:[%s469] sm:$0xff]
      %v4133 = vld [vmem:[%s469 + $0x8] sm:$0xff]
      %v4134 = vld [vmem:[%s469 + $0x10] sm:$0xff]
      %v4135 = vld [vmem:[%s469 + $0x18] sm:$0xff]
      %v4136 = vld [vmem:[%s469 + $0x20] sm:$0xff]
      %v4137 = vld [vmem:[%s469 + $0x28] sm:$0xff]
      %v4138 = vld [vmem:[%s469 + $0x30] sm:$0xff]
      %v4139 = vld [vmem:[%s469 + $0x38] sm:$0xff]
      %v4140 = vld [vmem:[%s469 + $0x40] sm:$0xff]
      %v4141 = vld [vmem:[%s469 + $0x48] sm:$0xff]
      %v4142 = vld [vmem:[%s469 + $0x50] sm:$0xff]
      %v4143 = vld [vmem:[%s469 + $0x58] sm:$0xff]
      %v4144 = vld [vmem:[%s469 + $0x60] sm:$0xff]
      %v4145 = vld [vmem:[%s469 + $0x68] sm:$0xff]
      %v4146 = vld [vmem:[%s469 + $0x70] sm:$0xff]
      %v4147 = vld [vmem:[%s469 + $0x78] sm:$0xff]
      %4148 = vmatprep.subr.mxu0 0.0
      %4149 = vmatpush1.msra.mxu0 %v4147
      %4150 = vmatprep.subr.mxu0 0.0
      %4151 = vmatpush1.msra.mxu0 %v4146
      %4152 = vmatprep.subr.mxu0 0.0
      %4153 = vmatpush1.msra.mxu0 %v4145
      %4154 = vmatprep.subr.mxu0 0.0
      %4155 = vmatpush1.msra.mxu0 %v4144
      %4156 = vmatprep.subr.mxu0 0.0
      %4157 = vmatpush1.msra.mxu0 %v4143
      %4158 = vmatprep.subr.mxu0 0.0
      %4159 = vmatpush1.msra.mxu0 %v4142
      %4160 = vmatprep.subr.mxu0 0.0
      %4161 = vmatpush1.msra.mxu0 %v4141
      %4162 = vmatprep.subr.mxu0 0.0
      %4163 = vmatpush1.msra.mxu0 %v4140
      %4164 = vmatprep.subr.mxu0 0.0
      %4165 = vmatpush1.msra.mxu0 %v4139
      %4166 = vmatprep.subr.mxu0 0.0
      %4167 = vmatpush1.msra.mxu0 %v4138
      %4168 = vmatprep.subr.mxu0 0.0
      %4169 = vmatpush1.msra.mxu0 %v4137
      %4170 = vmatprep.subr.mxu0 0.0
      %4171 = vmatpush1.msra.mxu0 %v4136
      %4172 = vmatprep.subr.mxu0 0.0
      %4173 = vmatpush1.msra.mxu0 %v4135
      %4174 = vmatprep.subr.mxu0 0.0
      %4175 = vmatpush1.msra.mxu0 %v4134
      %4176 = vmatprep.subr.mxu0 0.0
      %4177 = vmatpush1.msra.mxu0 %v4133
      %4178 = vmatprep.subr.mxu0 0.0
      %4179 = vmatpush1.msra.mxu0 %v4132
      %4180 = vmatprep.subr.mxu0 0.0
      %4181 = vmatpush2.msra.mxu0 0.0
      %4182 = vmatprep.subr.mxu0 0.0
      %4183 = vmatpush2.msra.mxu0 0.0
      %4184 = vmatprep.subr.mxu0 0.0
      %4185 = vmatpush2.msra.mxu0 0.0
      %4186 = vmatprep.subr.mxu0 0.0
      %4187 = vmatpush2.msra.mxu0 0.0
      %4188 = vmatprep.subr.mxu0 0.0
      %4189 = vmatpush2.msra.mxu0 0.0
      %4190 = vmatprep.subr.mxu0 0.0
      %4191 = vmatpush2.msra.mxu0 0.0
      %4192 = vmatprep.subr.mxu0 0.0
      %4193 = vmatpush2.msra.mxu0 0.0
      %4194 = vmatprep.subr.mxu0 0.0
      %4195 = vmatpush2.msra.mxu0 0.0
      %4196 = vmatprep.subr.mxu0 0.0
      %4197 = vmatpush2.msra.mxu0 0.0
      %4198 = vmatprep.subr.mxu0 0.0
      %4199 = vmatpush2.msra.mxu0 0.0
      %4200 = vmatprep.subr.mxu0 0.0
      %4201 = vmatpush2.msra.mxu0 0.0
      %4202 = vmatprep.subr.mxu0 0.0
      %4203 = vmatpush2.msra.mxu0 0.0
      %4204 = vmatprep.subr.mxu0 0.0
      %4205 = vmatpush2.msra.mxu0 0.0
      %4206 = vmatprep.subr.mxu0 0.0
      %4207 = vmatpush2.msra.mxu0 0.0
      %4208 = vmatprep.subr.mxu0 0.0
      %4209 = vmatpush2.msra.mxu0 0.0
      %4210 = vmatprep.subr.mxu0 0.0
      %4211 = vmatpush2.msra.mxu0 0.0
      %4212 = vmatprep.mubr.f32.mxu0 0.0
      %4213 = vmatmul.mubr.f32.gmra.mxu0 %v4127
      %v4214 = vpop.f32.mrf.mxu0
      %v4215 = vadd.f32 0.0, %v4214
      %v4216 = vpop.f32.mrf.mxu0
      %4217 = vmatprep.mubr.f32.mxu0 0.0
      %4218 = vmatmul.mubr.f32.gmra.mxu0 %v4128
      %v4219 = vpop.f32.mrf.mxu0
      %v4220 = vadd.f32 0.0, %v4219
      %v4221 = vpop.f32.mrf.mxu0
      %4222 = vmatprep.mubr.f32.mxu0 0.0
      %4223 = vmatmul.mubr.f32.gmra.mxu0 %v4129
      %v4224 = vpop.f32.mrf.mxu0
      %v4225 = vadd.f32 0.0, %v4224
      %v4226 = vpop.f32.mrf.mxu0
      %4227 = vmatprep.mubr.f32.mxu0 0.0
      %4228 = vmatmul.mubr.f32.gmra.mxu0 %v4130
      %v4229 = vpop.f32.mrf.mxu0
      %v4230 = vadd.f32 0.0, %v4229
      %v4231 = vpop.f32.mrf.mxu0
      %4232 = vmatprep.mubr.f32.mxu0 0.0
      %4233 = vmatmul.mubr.f32.gmra.mxu0 %v4131
      %v4234 = vpop.f32.mrf.mxu0
      %v4235 = vadd.f32 0.0, %v4234
      %v4236 = vpop.f32.mrf.mxu0
      %4237 = vdwg.mxu0
      %v4238 = vadd.f32 %v3888, %v4215
      %v4239 = vadd.f32 %v3889, %v4220
      %v4240 = vadd.f32 %v3890, %v4225
      %v4241 = vadd.f32 %v3891, %v4230
      %v4242 = vadd.f32 %v3892, %v4235
      %v4243 = vlaneseq
      %v4244 = vshrl.u32 %v4243, 7
      %v4245 = vsub.s32 5, %v4244
      %v4246 = vrot.slane %v707, %v4245
      %v4247 = vadd.f32 %v4238, %v4246
      %v4248 = vadd.f32 %v4239, %v4246
      %v4249 = vadd.f32 %v4240, %v4246
      %v4250 = vadd.f32 %v4241, %v4246
      %v4251 = vadd.f32 %v4242, %v4246
      %4252 = vst.msk [vmem:[#allocation2] sm:$0xff] %vm713, %v4247
      %4253 = vst.msk [vmem:[#allocation2 + $0x8] sm:$0xff] %vm713, %v4248
      %4254 = vst.msk [vmem:[#allocation2 + $0x10] sm:$0xff] %vm713, %v4249
      %4255 = vst.msk [vmem:[#allocation2 + $0x18] sm:$0xff] %vm713, %v4250
      %4256 = vst.msk [vmem:[#allocation2 + $0x20] sm:$0x3] %vm726, %v4251
      %p4257 = scmp.eq.s32.totalorder %s22, 1
      // Predicated region
      $region69: #{tpu_custom_call.1} parent=63 // pred_check
        %p4258 = pneg %p4257
      $region70: #{tpu_custom_call.1} parent=63 // pred_check_branch
        %4260 = sbr.rel (%p4258) target = $region72
      $region71: #{tpu_custom_call.1} parent=63 // pred_region
        %4261 = vst.msk [vmem:[%s11] sm:$0xff] %vm713, %v4247
        %4262 = vst.msk [vmem:[%s11 + $0x8] sm:$0xff] %vm713, %v4248
        %4263 = vst.msk [vmem:[%s11 + $0x10] sm:$0xff] %vm713, %v4249
        %4264 = vst.msk [vmem:[%s11 + $0x18] sm:$0xff] %vm713, %v4250
        %4265 = vst.msk [vmem:[%s11 + $0x20] sm:$0x3] %vm726, %v4251
      $region72: #{tpu_custom_call.1} parent=63 // pred_fallthru
        _
      // Predicated region
      $region73: #{tpu_custom_call.1} parent=63 // pred_check
        %p4266 = pneg %p301
      $region74: #{tpu_custom_call.1} parent=63 // pred_check_branch
        %4268 = sbr.rel (%p4266) target = $region76
      $region75: #{tpu_custom_call.1} parent=63 // pred_region
        _
      $region76: #{tpu_custom_call.1} parent=63 // pred_fallthru
        _
      // Predicated region
      $region77: #{tpu_custom_call.1} parent=63 // pred_check
        %p4269 = pneg %p301
      $region78: #{tpu_custom_call.1} parent=63 // pred_check_branch
        %4271 = sbr.rel (%p4269) target = $region80
      $region79: #{tpu_custom_call.1} parent=63 // pred_region
        _
      $region80: #{tpu_custom_call.1} parent=63 // pred_fallthru
        _
    $region64: #{tpu_custom_call.1} parent=5 // pred_fallthru
      _
    %p4272 = scmp.le.s32.totalorder 2, %s17
    // Predicated region
    $region81: #{tpu_custom_call.1} parent=5 // pred_check
      %p4273 = pneg %p4272
    $region82: #{tpu_custom_call.1} parent=5 // pred_check_branch
      %4275 = sbr.rel (%p4273) target = $region84
    $region83: #{tpu_custom_call.1} parent=5 // pred_region
      %s4276 = ssub.s32 %s17, 2
    $region84: #{tpu_custom_call.1} parent=5 // pred_fallthru
      _
  $region6: #{tpu_custom_call.1} parent=0 // loop_footer
    %s21 = sadd.s32 1, %s17
  $region7: #{tpu_custom_call.1} parent=0 // loop_footer_branch
    %16 = sbr.rel target = $region3
  $region8: #{tpu_custom_call.1} parent=0 // loop_exit
    _

</llo_original>
